<compile_context>
chip_gen: v7x
topology: tpu7x:2x2x1
jax: 0.10.0
libtpu: 0.0.40
codegen_flags: <defaults>
</compile_context>

<pallas_src>
import math

import jax
import jax.numpy as jnp
import numpy as np
from jax.experimental import pallas as pl
from jax.experimental.pallas import tpu as pltpu  # noqa: F401

# ----------------------------- configuration -------------------------------
B = 2                              # batch
C_IN = 3                           # input channels
IMG = 16                           # image size
PATCH = 4                          # patch size -> 16 patches
N_PATCHES = (IMG // PATCH) * (IMG // PATCH)
SEQ = N_PATCHES + 1                # +1 cls token = 17
HIDDEN = 32                        # config.hidden_size
HEADS = 4                          # config.transformer['num_heads']
HEAD_DIM = HIDDEN // HEADS         # 8
MLP = 64                           # config.transformer['mlp_dim']
LAYERS = 2                         # config.transformer['num_layers']
K = 4                              # config.K (RKR rank)
PATCH_DIM = C_IN * PATCH * PATCH   # 48
N_TOK = B * SEQ                    # 34 tokens total
LN_EPS = 1e-6
GELU_C = math.sqrt(2.0 / math.pi)

# ----- packed-slab layout constants -----
LANES = 128
AUG_K = 56                         # PATCH_DIM + 1 (=49) padded up to a multiple of 8
OFF_MASK = 128                     # tok slab: attention mask section start
OFF_POS = 256                      # tok slab: position/conv-bias section start
TOK_W = 3 * LANES                  # tok slab lane width (384)
W_ROWS = 3 * HIDDEN + MLP          # weight slab rows (160)
# weight slab (LAYERS+1, 160, 128):
#   [l, 0:32,   0:96]  wqkv  (cols: q heads 0..3 | k heads 0..3 | v heads 0..3)
#   [l, 32:64,  0:32]  wo
#   [l, 64:96,  0:64]  w1
#   [l, 96:160, 0:32]  w2
#   [LAYERS, 0:56, 0:32]  augmented embedding weight (conv + cls indicator row)
# bias slab (LAYERS+1, 8, 128):
#   rows 0..7 of layer l: bqkv(96) | bo(32) | b1(64) | b2(32) | ln1w | ln1b | ln2w | ln2b
#   slot LAYERS rows 0,1: final encoder_norm weight / bias


# ------------------------------ Pallas kernel --------------------------------
def vit_fused_kernel(tok_ref, w_ref, b_ref, out_ref):
    """Entire ViT forward for all B*SEQ tokens in one invocation."""

    def layernorm(v, w, b):
        # single-pass LN: var = E[v^2] - mu^2
        mu = jnp.mean(v, axis=-1, keepdims=True)
        var = jnp.mean(v * v, axis=-1, keepdims=True) - mu * mu
        return (v - mu) * jax.lax.rsqrt(var + LN_EPS) * w + b

    # per-token slab sections (loaded once, reused as values)
    aug = tok_ref[:, 0:AUG_K]                                # (34, 56) im2col + cls col
    attn_bias = tok_ref[:, OFF_MASK:OFF_MASK + N_TOK]        # (34, 34) 0 / -1e30 block-diag
    pos_b = tok_ref[:, OFF_POS:OFF_POS + HIDDEN]             # (34, 32) pos emb + conv bias

    # ---- embedding: single matmul over all tokens ----
    w_emb = w_ref[LAYERS, 0:AUG_K, 0:HIDDEN]                 # (56, 32)
    x = jnp.dot(aug, w_emb, preferred_element_type=jnp.float32) + pos_b   # (34, 32)

    for l in range(LAYERS):                                  # static unroll of the encoder
        # ---- layer parameter slices (all static) ----
        w_qkv = w_ref[l, 0:HIDDEN, 0:3 * HIDDEN]             # (32, 96)
        w_o = w_ref[l, HIDDEN:2 * HIDDEN, 0:HIDDEN]          # (32, 32)
        w_1 = w_ref[l, 2 * HIDDEN:3 * HIDDEN, 0:MLP]         # (32, 64)
        w_2 = w_ref[l, 3 * HIDDEN:3 * HIDDEN + MLP, 0:HIDDEN]  # (64, 32)
        b_qkv = b_ref[l, 0:1, 0:3 * HIDDEN]                  # (1, 96)
        b_o = b_ref[l, 1:2, 0:HIDDEN]
        b_1 = b_ref[l, 2:3, 0:MLP]
        b_2 = b_ref[l, 3:4, 0:HIDDEN]
        ln1w = b_ref[l, 4:5, 0:HIDDEN]
        ln1b = b_ref[l, 5:6, 0:HIDDEN]
        ln2w = b_ref[l, 6:7, 0:HIDDEN]
        ln2b = b_ref[l, 7:8, 0:HIDDEN]

        # ----------------- attention sub-block -----------------
        h = layernorm(x, ln1w, ln1b)
        # fused QKV projection: one matmul + one lane-dense bias add
        qkv = jnp.dot(h, w_qkv, preferred_element_type=jnp.float32) + b_qkv  # (34, 96)

        ctx_heads = []
        for hh in range(HEADS):                              # static width-8 lane slices
            off = hh * HEAD_DIM
            qh = qkv[:, off:off + HEAD_DIM]                  # 1/sqrt(d) & SFG folded in
            kh = qkv[:, HIDDEN + off:HIDDEN + off + HEAD_DIM]
            vh = qkv[:, 2 * HIDDEN + off:2 * HIDDEN + off + HEAD_DIM]
            # scores for all B*SEQ tokens; cross-batch pairs masked to -1e30.
            # NOTE: keep the row-max subtraction coupled with the -1e30 mask.
            sc = jax.lax.dot_general(qh, kh, (((1,), (1,)), ((), ())),
                                     preferred_element_type=jnp.float32) + attn_bias
            sc = sc - jnp.max(sc, axis=-1, keepdims=True)
            p = jnp.exp(sc)
            p = p * pl.reciprocal(jnp.sum(p, axis=-1, keepdims=True), approx=True)
            ctx_heads.append(jnp.dot(p, vh, preferred_element_type=jnp.float32))
        ctx = jnp.concatenate(ctx_heads, axis=-1)            # (34, 32) lane concat (XLU)
        x = x + jnp.dot(ctx, w_o, preferred_element_type=jnp.float32) + b_o

        # ----------------- MLP sub-block -----------------
        h2 = layernorm(x, ln2w, ln2b)
        m = jnp.dot(h2, w_1, preferred_element_type=jnp.float32) + b_1
        # tanh-approximate GELU (EUP), ~2e-4 deviation from exact erf gelu here
        m = 0.5 * m * (1.0 + jnp.tanh(GELU_C * (m + 0.044715 * (m * m * m))))
        x = x + jnp.dot(m, w_2, preferred_element_type=jnp.float32) + b_2

    nw = b_ref[LAYERS, 0:1, 0:HIDDEN]
    nb = b_ref[LAYERS, 1:2, 0:HIDDEN]
    out_ref[...] = layernorm(x, nw, nb).astype(out_ref.dtype)


# ------------------------------ JAX glue --------------------------------------
def extract_patches(x_nchw, ph, pw):
    """NCHW image -> (B, n_patches, C*ph*pw), matching Conv2d(stride=kernel)."""
    bsz, c, hh, ww = x_nchw.shape
    gh, gw = hh // ph, ww // pw
    x = x_nchw.reshape(bsz, c, gh, ph, gw, pw)
    x = jnp.transpose(x, (0, 2, 4, 1, 3, 5))       # (B, gh, gw, C, ph, pw)
    return x.reshape(bsz, gh * gw, c * ph * pw)


def _fold(w, b, scale, extra=1.0):
    """Fold SFG per-channel scale (and optional scalar) into weight & bias."""
    return w * scale * extra, b * scale * extra


def prepare_fused_operands(params):
    """Pack all parameters into two lane-dense slabs (one weight, one bias/LN)."""
    p = jax.tree_util.tree_map(lambda a: np.asarray(a, np.float32), params)
    emb = p["embed"]
    # augmented embedding weight: last row maps the cls indicator column to
    # (cls - conv_bias) so a single "+ pos_bias" works for every row.
    w_aug = np.concatenate([emb["w"], emb["cls"] - emb["b"]], axis=0)     # (49, 32)
    pos_bias = np.tile(emb["pos"], (B, 1)) + emb["b"]                     # (34, 32)

    ids = np.repeat(np.arange(B), SEQ)
    attn_bias = np.where(ids[:, None] == ids[None, :], 0.0, -1e30).astype(np.float32)

    inv_sqrt_d = 1.0 / math.sqrt(HEAD_DIM)

    wslab = np.zeros((LAYERS + 1, W_ROWS, LANES), np.float32)
    bslab = np.zeros((LAYERS + 1, 8, LANES), np.float32)
    for l, lp in enumerate(p["layers"]):
        wq, bq = _fold(lp["wq"], lp["bq"], lp["sq"], inv_sqrt_d)
        wk, bk = _fold(lp["wk"], lp["bk"], lp["sk"])
        wv, bv = _fold(lp["wv"], lp["bv"], lp["sv"])
        wo, bo = _fold(lp["wo"], lp["bo"], lp["so"])
        w1, b1 = _fold(lp["w1"], lp["b1"], lp["s1"])
        w2, b2 = _fold(lp["w2"], lp["b2"], lp["s2"])
        wslab[l, 0:HIDDEN, 0:3 * HIDDEN] = np.concatenate([wq, wk, wv], axis=1)
        wslab[l, HIDDEN:2 * HIDDEN, 0:HIDDEN] = wo
        wslab[l, 2 * HIDDEN:3 * HIDDEN, 0:MLP] = w1
        wslab[l, 3 * HIDDEN:3 * HIDDEN + MLP, 0:HIDDEN] = w2
        bslab[l, 0, 0:3 * HIDDEN] = np.concatenate([bq, bk, bv], axis=1)[0]
        bslab[l, 1, 0:HIDDEN] = bo[0]
        bslab[l, 2, 0:MLP] = b1[0]
        bslab[l, 3, 0:HIDDEN] = b2[0]
        bslab[l, 4, 0:HIDDEN] = lp["ln1_w"][0]
        bslab[l, 5, 0:HIDDEN] = lp["ln1_b"][0]
        bslab[l, 6, 0:HIDDEN] = lp["ln2_w"][0]
        bslab[l, 7, 0:HIDDEN] = lp["ln2_b"][0]
    wslab[LAYERS, 0:PATCH_DIM + 1, 0:HIDDEN] = w_aug         # rows 49:56 stay zero
    bslab[LAYERS, 0, 0:HIDDEN] = p["norm_w"][0]
    bslab[LAYERS, 1, 0:HIDDEN] = p["norm_b"][0]

    return (jnp.asarray(wslab), jnp.asarray(bslab),
            jnp.asarray(pos_bias), jnp.asarray(attn_bias))


def transformer_forward(x_img, params, task=0):
    """Equivalent of Transformer.forward(input_ids, task) with vis=False."""
    del task  # task==0 low-rank (RKR) path folded into effective weights in glue
    wslab, bslab, pos_bias, attn_bias = prepare_fused_operands(params)

    patches = extract_patches(x_img, PATCH, PATCH)                        # (B, P, D)
    # token rows in [cls, patch_0, ..., patch_{P-1}] order, augmented with a
    # cls-indicator column so the embedding is a single matmul in the kernel.
    cls_rows = jnp.concatenate(
        [jnp.zeros((B, 1, PATCH_DIM), jnp.float32),
         jnp.ones((B, 1, 1), jnp.float32)], axis=-1)
    patch_rows = jnp.concatenate(
        [patches, jnp.zeros((B, N_PATCHES, 1), jnp.float32)], axis=-1)
    aug = jnp.concatenate([cls_rows, patch_rows], axis=1).reshape(N_TOK, PATCH_DIM + 1)

    # per-token slab: [aug | pad | attn mask | pad | pos+conv bias | pad], 128-aligned
    tok = jnp.concatenate([
        aug, jnp.zeros((N_TOK, LANES - (PATCH_DIM + 1)), jnp.float32),
        attn_bias, jnp.zeros((N_TOK, LANES - N_TOK), jnp.float32),
        pos_bias, jnp.zeros((N_TOK, LANES - HIDDEN), jnp.float32),
    ], axis=-1)                                                           # (34, 384)

    out_flat = pl.pallas_call(
        vit_fused_kernel,
        out_shape=jax.ShapeDtypeStruct((N_TOK, HIDDEN), jnp.float32),
        # no grid / BlockSpecs: three small slabs (~0.3 MiB) live whole in VMEM
        # for the single invocation — the whole network is one kernel launch.
    )(tok, wslab, bslab)

    encoded = out_flat.reshape(B, SEQ, HIDDEN)
    attn_weights = []                              # vis=False -> empty list
    return encoded, attn_weights


# --------------------------- parameter creation ------------------------------
def init_params(key):
    keys = iter(jax.random.split(key, 256))

    def nrm(shape, scale=0.02):
        return scale * jax.random.normal(next(keys), shape, jnp.float32)

    def rg_weight(h_in, h_out, scale=0.05):
        # RG_FC, task==0: effective weight = W + unc_filt_LM @ unc_filt_RM
        w = nrm((h_out, h_in), scale)
        lm = nrm((h_out, K), scale)
        rm = nrm((K, h_in), scale)
        return (w + lm @ rm).T                     # transposed for y = x @ W_eff^T

    embed = dict(
        # Conv2d weight (HIDDEN, C, ph, pw) flattened & transposed -> (D, HIDDEN)
        w=nrm((HIDDEN, C_IN, PATCH, PATCH), 0.05).reshape(HIDDEN, PATCH_DIM).T,
        b=nrm((1, HIDDEN)),
        cls=nrm((1, HIDDEN)),
        pos=nrm((SEQ, HIDDEN)),
    )

    layers = []
    for _ in range(LAYERS):
        lp = dict(
            ln1_w=1.0 + nrm((1, HIDDEN)), ln1_b=nrm((1, HIDDEN)),
            wq=rg_weight(HIDDEN, HIDDEN), bq=nrm((1, HIDDEN)),
            wk=rg_weight(HIDDEN, HIDDEN), bk=nrm((1, HIDDEN)),
            wv=rg_weight(HIDDEN, HIDDEN), bv=nrm((1, HIDDEN)),
            wo=rg_weight(HIDDEN, HIDDEN), bo=nrm((1, HIDDEN)),
            sq=1.0 + nrm((1, HIDDEN)), sk=1.0 + nrm((1, HIDDEN)),
            sv=1.0 + nrm((1, HIDDEN)), so=1.0 + nrm((1, HIDDEN)),
            ln2_w=1.0 + nrm((1, HIDDEN)), ln2_b=nrm((1, HIDDEN)),
            w1=rg_weight(HIDDEN, MLP), b1=nrm((1, MLP)), s1=1.0 + nrm((1, MLP)),
            w2=rg_weight(MLP, HIDDEN), b2=nrm((1, HIDDEN)), s2=1.0 + nrm((1, HIDDEN)),
        )
        layers.append(lp)

    return dict(embed=embed, layers=layers,
                norm_w=1.0 + nrm((1, HIDDEN)), norm_b=nrm((1, HIDDEN)))


# ----------------------------- pure-JAX reference ----------------------------
def _ref_ln(v, w, b):
    mu = v.mean(-1, keepdims=True)
    var = ((v - mu) ** 2).mean(-1, keepdims=True)
    return (v - mu) * jax.lax.rsqrt(var + LN_EPS) * w + b


def _ref_block(x, p):
    bsz, s, h = x.shape
    hn = _ref_ln(x, p["ln1_w"], p["ln1_b"])
    q = (hn @ p["wq"] + p["bq"]) * p["sq"]
    k = (hn @ p["wk"] + p["bk"]) * p["sk"]
    v = (hn @ p["wv"] + p["bv"]) * p["sv"]
    q = q.reshape(bsz, s, HEADS, HEAD_DIM).transpose(0, 2, 1, 3)
    k = k.reshape(bsz, s, HEADS, HEAD_DIM).transpose(0, 2, 1, 3)
    v = v.reshape(bsz, s, HEADS, HEAD_DIM).transpose(0, 2, 1, 3)
    sc = q @ jnp.swapaxes(k, -1, -2) / jnp.sqrt(jnp.float32(HEAD_DIM))
    pr = jax.nn.softmax(sc, axis=-1)
    ctx = (pr @ v).transpose(0, 2, 1, 3).reshape(bsz, s, h)
    x = x + (ctx @ p["wo"] + p["bo"]) * p["so"]
    h2 = _ref_ln(x, p["ln2_w"], p["ln2_b"])
    m = (h2 @ p["w1"] + p["b1"]) * p["s1"]
    m = 0.5 * m * (1.0 + jax.lax.erf(m / jnp.sqrt(jnp.float32(2.0))))     # exact gelu
    m = (m @ p["w2"] + p["b2"]) * p["s2"]
    return x + m


def reference_forward(x_img, params):
    patches = extract_patches(x_img, PATCH, PATCH)
    emb = patches @ params["embed"]["w"] + params["embed"]["b"]
    cls = jnp.broadcast_to(params["embed"]["cls"][None], (x_img.shape[0], 1, HIDDEN))
    h = jnp.concatenate([cls, emb], axis=1) + params["embed"]["pos"][None]
    for lp in params["layers"]:
        h = _ref_block(h, lp)
    return _ref_ln(h, params["norm_w"], params["norm_b"])


# --------------------------------- main --------------------------------------
if __name__ == "__main__":
    key = jax.random.PRNGKey(0)
    k_param, k_x = jax.random.split(key)
    params = init_params(k_param)
    x = jax.random.normal(k_x, (B, C_IN, IMG, IMG), jnp.float32)

    encoded, attn_weights = transformer_forward(x, params, task=0)
    encoded = jax.block_until_ready(encoded)

    ref = jax.block_until_ready(reference_forward(x, params))
    # tolerance covers folded-scale reassociation, approx reciprocal, tanh-GELU.
    np.testing.assert_allclose(np.asarray(encoded), np.asarray(ref),
                               rtol=2e-3, atol=2e-3)
    assert encoded.shape == (B, SEQ, HIDDEN)
    assert attn_weights == []                      # vis=False

    print("KERNEL_OK")
</pallas_src>

<mosaic_0001>
module attributes {stable_mosaic.version = 11 : i64} {
  func.func @vit_fused_kernel(%arg0: memref<34x384xf32, #tpu.memory_space<vmem>>, %arg1: memref<3x160x128xf32, #tpu.memory_space<vmem>>, %arg2: memref<3x8x128xf32, #tpu.memory_space<vmem>>, %arg3: memref<34x32xf32, #tpu.memory_space<vmem>>) attributes {dimension_semantics = [], scalar_prefetch = 0 : i64, scratch_operands = 0 : i64, tpu.core_type = #tpu.core_type<tc>} {
    %c0 = arith.constant 0 : index
    %c0_0 = arith.constant 0 : index
    %0 = vector.load %arg0[%c0, %c0_0] : memref<34x384xf32, #tpu.memory_space<vmem>>, vector<34x56xf32>
    %c0_1 = arith.constant 0 : index
    %c128 = arith.constant 128 : index
    %1 = vector.load %arg0[%c0_1, %c128] : memref<34x384xf32, #tpu.memory_space<vmem>>, vector<34x34xf32>
    %c0_2 = arith.constant 0 : index
    %c256 = arith.constant 256 : index
    %2 = vector.load %arg0[%c0_2, %c256] : memref<34x384xf32, #tpu.memory_space<vmem>>, vector<34x32xf32>
    %c2 = arith.constant 2 : index
    %c0_3 = arith.constant 0 : index
    %c0_4 = arith.constant 0 : index
    %3 = vector.load %arg1[%c2, %c0_3, %c0_4] : memref<3x160x128xf32, #tpu.memory_space<vmem>>, vector<1x56x32xf32>
    %4 = vector.shape_cast %3 : vector<1x56x32xf32> to vector<56x32xf32>
    %cst = arith.constant dense<0.000000e+00> : vector<34x32xf32>
    %5 = tpu.matmul %0, %4, %cst {dimension_numbers = #tpu.dot_dimension_numbers<[1], [0], [0], [1], [0, 0, 1, 1], [], []>} : vector<34x56xf32>, vector<56x32xf32>, vector<34x32xf32> -> vector<34x32xf32>
    %6 = arith.addf %5, %2 : vector<34x32xf32>
    %c0_5 = arith.constant 0 : index
    %c0_6 = arith.constant 0 : index
    %c0_7 = arith.constant 0 : index
    %7 = vector.load %arg1[%c0_5, %c0_6, %c0_7] : memref<3x160x128xf32, #tpu.memory_space<vmem>>, vector<1x32x96xf32>
    %8 = vector.shape_cast %7 : vector<1x32x96xf32> to vector<32x96xf32>
    %c0_8 = arith.constant 0 : index
    %c32 = arith.constant 32 : index
    %c0_9 = arith.constant 0 : index
    %9 = vector.load %arg1[%c0_8, %c32, %c0_9] : memref<3x160x128xf32, #tpu.memory_space<vmem>>, vector<1x32x32xf32>
    %10 = vector.shape_cast %9 : vector<1x32x32xf32> to vector<32x32xf32>
    %c0_10 = arith.constant 0 : index
    %c64 = arith.constant 64 : index
    %c0_11 = arith.constant 0 : index
    %11 = vector.load %arg1[%c0_10, %c64, %c0_11] : memref<3x160x128xf32, #tpu.memory_space<vmem>>, vector<1x32x64xf32>
    %12 = vector.shape_cast %11 : vector<1x32x64xf32> to vector<32x64xf32>
    %c0_12 = arith.constant 0 : index
    %c96 = arith.constant 96 : index
    %c0_13 = arith.constant 0 : index
    %13 = vector.load %arg1[%c0_12, %c96, %c0_13] : memref<3x160x128xf32, #tpu.memory_space<vmem>>, vector<1x64x32xf32>
    %14 = vector.shape_cast %13 : vector<1x64x32xf32> to vector<64x32xf32>
    %c0_14 = arith.constant 0 : index
    %c0_15 = arith.constant 0 : index
    %c0_16 = arith.constant 0 : index
    %15 = vector.load %arg2[%c0_14, %c0_15, %c0_16] : memref<3x8x128xf32, #tpu.memory_space<vmem>>, vector<1x1x96xf32>
    %16 = vector.shape_cast %15 : vector<1x1x96xf32> to vector<1x96xf32>
    %c0_17 = arith.constant 0 : index
    %c1 = arith.constant 1 : index
    %c0_18 = arith.constant 0 : index
    %17 = vector.load %arg2[%c0_17, %c1, %c0_18] : memref<3x8x128xf32, #tpu.memory_space<vmem>>, vector<1x1x32xf32>
    %18 = vector.shape_cast %17 : vector<1x1x32xf32> to vector<1x32xf32>
    %c0_19 = arith.constant 0 : index
    %c2_20 = arith.constant 2 : index
    %c0_21 = arith.constant 0 : index
    %19 = vector.load %arg2[%c0_19, %c2_20, %c0_21] : memref<3x8x128xf32, #tpu.memory_space<vmem>>, vector<1x1x64xf32>
    %20 = vector.shape_cast %19 : vector<1x1x64xf32> to vector<1x64xf32>
    %c0_22 = arith.constant 0 : index
    %c3 = arith.constant 3 : index
    %c0_23 = arith.constant 0 : index
    %21 = vector.load %arg2[%c0_22, %c3, %c0_23] : memref<3x8x128xf32, #tpu.memory_space<vmem>>, vector<1x1x32xf32>
    %22 = vector.shape_cast %21 : vector<1x1x32xf32> to vector<1x32xf32>
    %c0_24 = arith.constant 0 : index
    %c4 = arith.constant 4 : index
    %c0_25 = arith.constant 0 : index
    %23 = vector.load %arg2[%c0_24, %c4, %c0_25] : memref<3x8x128xf32, #tpu.memory_space<vmem>>, vector<1x1x32xf32>
    %24 = vector.shape_cast %23 : vector<1x1x32xf32> to vector<1x32xf32>
    %c0_26 = arith.constant 0 : index
    %c5 = arith.constant 5 : index
    %c0_27 = arith.constant 0 : index
    %25 = vector.load %arg2[%c0_26, %c5, %c0_27] : memref<3x8x128xf32, #tpu.memory_space<vmem>>, vector<1x1x32xf32>
    %26 = vector.shape_cast %25 : vector<1x1x32xf32> to vector<1x32xf32>
    %c0_28 = arith.constant 0 : index
    %c6 = arith.constant 6 : index
    %c0_29 = arith.constant 0 : index
    %27 = vector.load %arg2[%c0_28, %c6, %c0_29] : memref<3x8x128xf32, #tpu.memory_space<vmem>>, vector<1x1x32xf32>
    %28 = vector.shape_cast %27 : vector<1x1x32xf32> to vector<1x32xf32>
    %c0_30 = arith.constant 0 : index
    %c7 = arith.constant 7 : index
    %c0_31 = arith.constant 0 : index
    %29 = vector.load %arg2[%c0_30, %c7, %c0_31] : memref<3x8x128xf32, #tpu.memory_space<vmem>>, vector<1x1x32xf32>
    %30 = vector.shape_cast %29 : vector<1x1x32xf32> to vector<1x32xf32>
    %cst_32 = arith.constant dense<0.000000e+00> : vector<34xf32>
    %31 = vector.multi_reduction <add>, %6, %cst_32 [1] : vector<34x32xf32> to vector<34xf32>
    %32 = vector.shape_cast %31 : vector<34xf32> to vector<34x1xf32>
    %cst_33 = arith.constant 3.200000e+01 : f32
    %33 = vector.broadcast %cst_33 : f32 to vector<34x1xf32>
    %34 = arith.divf %32, %33 : vector<34x1xf32>
    %35 = arith.mulf %6, %6 : vector<34x32xf32>
    %cst_34 = arith.constant dense<0.000000e+00> : vector<34xf32>
    %36 = vector.multi_reduction <add>, %35, %cst_34 [1] : vector<34x32xf32> to vector<34xf32>
    %37 = vector.shape_cast %36 : vector<34xf32> to vector<34x1xf32>
    %cst_35 = arith.constant 3.200000e+01 : f32
    %38 = vector.broadcast %cst_35 : f32 to vector<34x1xf32>
    %39 = arith.divf %37, %38 : vector<34x1xf32>
    %40 = arith.mulf %34, %34 : vector<34x1xf32>
    %41 = arith.subf %39, %40 : vector<34x1xf32>
    %42 = vector.broadcast %34 : vector<34x1xf32> to vector<34x32xf32>
    %43 = arith.subf %6, %42 : vector<34x32xf32>
    %cst_36 = arith.constant 9.99999997E-7 : f32
    %44 = vector.broadcast %cst_36 : f32 to vector<34x1xf32>
    %45 = arith.addf %41, %44 : vector<34x1xf32>
    %46 = math.rsqrt %45 : vector<34x1xf32>
    %47 = vector.broadcast %46 : vector<34x1xf32> to vector<34x32xf32>
    %48 = arith.mulf %43, %47 : vector<34x32xf32>
    %49 = vector.broadcast %24 : vector<1x32xf32> to vector<34x32xf32>
    %50 = arith.mulf %48, %49 : vector<34x32xf32>
    %51 = vector.broadcast %26 : vector<1x32xf32> to vector<34x32xf32>
    %52 = arith.addf %50, %51 : vector<34x32xf32>
    %cst_37 = arith.constant dense<0.000000e+00> : vector<34x96xf32>
    %53 = tpu.matmul %52, %8, %cst_37 {dimension_numbers = #tpu.dot_dimension_numbers<[1], [0], [0], [1], [0, 0, 1, 1], [], []>} : vector<34x32xf32>, vector<32x96xf32>, vector<34x96xf32> -> vector<34x96xf32>
    %54 = vector.broadcast %16 : vector<1x96xf32> to vector<34x96xf32>
    %55 = arith.addf %53, %54 : vector<34x96xf32>
    %56 = vector.extract_strided_slice %55 {offsets = [0, 0], sizes = [34, 8], strides = [1, 1]} : vector<34x96xf32> to vector<34x8xf32>
    %57 = vector.extract_strided_slice %55 {offsets = [0, 32], sizes = [34, 8], strides = [1, 1]} : vector<34x96xf32> to vector<34x8xf32>
    %58 = vector.extract_strided_slice %55 {offsets = [0, 64], sizes = [34, 8], strides = [1, 1]} : vector<34x96xf32> to vector<34x8xf32>
    %cst_38 = arith.constant dense<0.000000e+00> : vector<34x34xf32>
    %59 = tpu.matmul %56, %57, %cst_38 {dimension_numbers = #tpu.dot_dimension_numbers<[1], [1], [0], [0], [0, 0, 1, 0], [], []>} : vector<34x8xf32>, vector<34x8xf32>, vector<34x34xf32> -> vector<34x34xf32>
    %60 = arith.addf %59, %1 : vector<34x34xf32>
    %cst_39 = arith.constant dense<0xFF800000> : vector<34xf32>
    %61 = vector.multi_reduction <maximumf>, %60, %cst_39 [1] : vector<34x34xf32> to vector<34xf32>
    %62 = vector.shape_cast %61 : vector<34xf32> to vector<34x1xf32>
    %63 = vector.broadcast %62 : vector<34x1xf32> to vector<34x34xf32>
    %64 = arith.subf %60, %63 : vector<34x34xf32>
    %65 = math.exp %64 : vector<34x34xf32>
    %cst_40 = arith.constant dense<0.000000e+00> : vector<34xf32>
    %66 = vector.multi_reduction <add>, %65, %cst_40 [1] : vector<34x34xf32> to vector<34xf32>
    %67 = vector.shape_cast %66 : vector<34xf32> to vector<34x1xf32>
    %68 = tpu.reciprocal %67 {approx = true} : vector<34x1xf32> -> vector<34x1xf32>
    %69 = vector.broadcast %68 : vector<34x1xf32> to vector<34x34xf32>
    %70 = arith.mulf %65, %69 : vector<34x34xf32>
    %cst_41 = arith.constant dense<0.000000e+00> : vector<34x8xf32>
    %71 = tpu.matmul %70, %58, %cst_41 {dimension_numbers = #tpu.dot_dimension_numbers<[1], [0], [0], [1], [0, 0, 1, 1], [], []>} : vector<34x34xf32>, vector<34x8xf32>, vector<34x8xf32> -> vector<34x8xf32>
    %72 = vector.extract_strided_slice %55 {offsets = [0, 8], sizes = [34, 8], strides = [1, 1]} : vector<34x96xf32> to vector<34x8xf32>
    %73 = vector.extract_strided_slice %55 {offsets = [0, 40], sizes = [34, 8], strides = [1, 1]} : vector<34x96xf32> to vector<34x8xf32>
    %74 = vector.extract_strided_slice %55 {offsets = [0, 72], sizes = [34, 8], strides = [1, 1]} : vector<34x96xf32> to vector<34x8xf32>
    %cst_42 = arith.constant dense<0.000000e+00> : vector<34x34xf32>
    %75 = tpu.matmul %72, %73, %cst_42 {dimension_numbers = #tpu.dot_dimension_numbers<[1], [1], [0], [0], [0, 0, 1, 0], [], []>} : vector<34x8xf32>, vector<34x8xf32>, vector<34x34xf32> -> vector<34x34xf32>
    %76 = arith.addf %75, %1 : vector<34x34xf32>
    %cst_43 = arith.constant dense<0xFF800000> : vector<34xf32>
    %77 = vector.multi_reduction <maximumf>, %76, %cst_43 [1] : vector<34x34xf32> to vector<34xf32>
    %78 = vector.shape_cast %77 : vector<34xf32> to vector<34x1xf32>
    %79 = vector.broadcast %78 : vector<34x1xf32> to vector<34x34xf32>
    %80 = arith.subf %76, %79 : vector<34x34xf32>
    %81 = math.exp %80 : vector<34x34xf32>
    %cst_44 = arith.constant dense<0.000000e+00> : vector<34xf32>
    %82 = vector.multi_reduction <add>, %81, %cst_44 [1] : vector<34x34xf32> to vector<34xf32>
    %83 = vector.shape_cast %82 : vector<34xf32> to vector<34x1xf32>
    %84 = tpu.reciprocal %83 {approx = true} : vector<34x1xf32> -> vector<34x1xf32>
    %85 = vector.broadcast %84 : vector<34x1xf32> to vector<34x34xf32>
    %86 = arith.mulf %81, %85 : vector<34x34xf32>
    %cst_45 = arith.constant dense<0.000000e+00> : vector<34x8xf32>
    %87 = tpu.matmul %86, %74, %cst_45 {dimension_numbers = #tpu.dot_dimension_numbers<[1], [0], [0], [1], [0, 0, 1, 1], [], []>} : vector<34x34xf32>, vector<34x8xf32>, vector<34x8xf32> -> vector<34x8xf32>
    %88 = vector.extract_strided_slice %55 {offsets = [0, 16], sizes = [34, 8], strides = [1, 1]} : vector<34x96xf32> to vector<34x8xf32>
    %89 = vector.extract_strided_slice %55 {offsets = [0, 48], sizes = [34, 8], strides = [1, 1]} : vector<34x96xf32> to vector<34x8xf32>
    %90 = vector.extract_strided_slice %55 {offsets = [0, 80], sizes = [34, 8], strides = [1, 1]} : vector<34x96xf32> to vector<34x8xf32>
    %cst_46 = arith.constant dense<0.000000e+00> : vector<34x34xf32>
    %91 = tpu.matmul %88, %89, %cst_46 {dimension_numbers = #tpu.dot_dimension_numbers<[1], [1], [0], [0], [0, 0, 1, 0], [], []>} : vector<34x8xf32>, vector<34x8xf32>, vector<34x34xf32> -> vector<34x34xf32>
    %92 = arith.addf %91, %1 : vector<34x34xf32>
    %cst_47 = arith.constant dense<0xFF800000> : vector<34xf32>
    %93 = vector.multi_reduction <maximumf>, %92, %cst_47 [1] : vector<34x34xf32> to vector<34xf32>
    %94 = vector.shape_cast %93 : vector<34xf32> to vector<34x1xf32>
    %95 = vector.broadcast %94 : vector<34x1xf32> to vector<34x34xf32>
    %96 = arith.subf %92, %95 : vector<34x34xf32>
    %97 = math.exp %96 : vector<34x34xf32>
    %cst_48 = arith.constant dense<0.000000e+00> : vector<34xf32>
    %98 = vector.multi_reduction <add>, %97, %cst_48 [1] : vector<34x34xf32> to vector<34xf32>
    %99 = vector.shape_cast %98 : vector<34xf32> to vector<34x1xf32>
    %100 = tpu.reciprocal %99 {approx = true} : vector<34x1xf32> -> vector<34x1xf32>
    %101 = vector.broadcast %100 : vector<34x1xf32> to vector<34x34xf32>
    %102 = arith.mulf %97, %101 : vector<34x34xf32>
    %cst_49 = arith.constant dense<0.000000e+00> : vector<34x8xf32>
    %103 = tpu.matmul %102, %90, %cst_49 {dimension_numbers = #tpu.dot_dimension_numbers<[1], [0], [0], [1], [0, 0, 1, 1], [], []>} : vector<34x34xf32>, vector<34x8xf32>, vector<34x8xf32> -> vector<34x8xf32>
    %104 = vector.extract_strided_slice %55 {offsets = [0, 24], sizes = [34, 8], strides = [1, 1]} : vector<34x96xf32> to vector<34x8xf32>
    %105 = vector.extract_strided_slice %55 {offsets = [0, 56], sizes = [34, 8], strides = [1, 1]} : vector<34x96xf32> to vector<34x8xf32>
    %106 = vector.extract_strided_slice %55 {offsets = [0, 88], sizes = [34, 8], strides = [1, 1]} : vector<34x96xf32> to vector<34x8xf32>
    %cst_50 = arith.constant dense<0.000000e+00> : vector<34x34xf32>
    %107 = tpu.matmul %104, %105, %cst_50 {dimension_numbers = #tpu.dot_dimension_numbers<[1], [1], [0], [0], [0, 0, 1, 0], [], []>} : vector<34x8xf32>, vector<34x8xf32>, vector<34x34xf32> -> vector<34x34xf32>
    %108 = arith.addf %107, %1 : vector<34x34xf32>
    %cst_51 = arith.constant dense<0xFF800000> : vector<34xf32>
    %109 = vector.multi_reduction <maximumf>, %108, %cst_51 [1] : vector<34x34xf32> to vector<34xf32>
    %110 = vector.shape_cast %109 : vector<34xf32> to vector<34x1xf32>
    %111 = vector.broadcast %110 : vector<34x1xf32> to vector<34x34xf32>
    %112 = arith.subf %108, %111 : vector<34x34xf32>
    %113 = math.exp %112 : vector<34x34xf32>
    %cst_52 = arith.constant dense<0.000000e+00> : vector<34xf32>
    %114 = vector.multi_reduction <add>, %113, %cst_52 [1] : vector<34x34xf32> to vector<34xf32>
    %115 = vector.shape_cast %114 : vector<34xf32> to vector<34x1xf32>
    %116 = tpu.reciprocal %115 {approx = true} : vector<34x1xf32> -> vector<34x1xf32>
    %117 = vector.broadcast %116 : vector<34x1xf32> to vector<34x34xf32>
    %118 = arith.mulf %113, %117 : vector<34x34xf32>
    %cst_53 = arith.constant dense<0.000000e+00> : vector<34x8xf32>
    %119 = tpu.matmul %118, %106, %cst_53 {dimension_numbers = #tpu.dot_dimension_numbers<[1], [0], [0], [1], [0, 0, 1, 1], [], []>} : vector<34x34xf32>, vector<34x8xf32>, vector<34x8xf32> -> vector<34x8xf32>
    %120 = tpu.concatenate %71, %87, %103, %119 in 1 : vector<34x8xf32>, vector<34x8xf32>, vector<34x8xf32>, vector<34x8xf32> -> vector<34x32xf32>
    %cst_54 = arith.constant dense<0.000000e+00> : vector<34x32xf32>
    %121 = tpu.matmul %120, %10, %cst_54 {dimension_numbers = #tpu.dot_dimension_numbers<[1], [0], [0], [1], [0, 0, 1, 1], [], []>} : vector<34x32xf32>, vector<32x32xf32>, vector<34x32xf32> -> vector<34x32xf32>
    %122 = arith.addf %6, %121 : vector<34x32xf32>
    %123 = vector.broadcast %18 : vector<1x32xf32> to vector<34x32xf32>
    %124 = arith.addf %122, %123 : vector<34x32xf32>
    %cst_55 = arith.constant dense<0.000000e+00> : vector<34xf32>
    %125 = vector.multi_reduction <add>, %124, %cst_55 [1] : vector<34x32xf32> to vector<34xf32>
    %126 = vector.shape_cast %125 : vector<34xf32> to vector<34x1xf32>
    %cst_56 = arith.constant 3.200000e+01 : f32
    %127 = vector.broadcast %cst_56 : f32 to vector<34x1xf32>
    %128 = arith.divf %126, %127 : vector<34x1xf32>
    %129 = arith.mulf %124, %124 : vector<34x32xf32>
    %cst_57 = arith.constant dense<0.000000e+00> : vector<34xf32>
    %130 = vector.multi_reduction <add>, %129, %cst_57 [1] : vector<34x32xf32> to vector<34xf32>
    %131 = vector.shape_cast %130 : vector<34xf32> to vector<34x1xf32>
    %cst_58 = arith.constant 3.200000e+01 : f32
    %132 = vector.broadcast %cst_58 : f32 to vector<34x1xf32>
    %133 = arith.divf %131, %132 : vector<34x1xf32>
    %134 = arith.mulf %128, %128 : vector<34x1xf32>
    %135 = arith.subf %133, %134 : vector<34x1xf32>
    %136 = vector.broadcast %128 : vector<34x1xf32> to vector<34x32xf32>
    %137 = arith.subf %124, %136 : vector<34x32xf32>
    %cst_59 = arith.constant 9.99999997E-7 : f32
    %138 = vector.broadcast %cst_59 : f32 to vector<34x1xf32>
    %139 = arith.addf %135, %138 : vector<34x1xf32>
    %140 = math.rsqrt %139 : vector<34x1xf32>
    %141 = vector.broadcast %140 : vector<34x1xf32> to vector<34x32xf32>
    %142 = arith.mulf %137, %141 : vector<34x32xf32>
    %143 = vector.broadcast %28 : vector<1x32xf32> to vector<34x32xf32>
    %144 = arith.mulf %142, %143 : vector<34x32xf32>
    %145 = vector.broadcast %30 : vector<1x32xf32> to vector<34x32xf32>
    %146 = arith.addf %144, %145 : vector<34x32xf32>
    %cst_60 = arith.constant dense<0.000000e+00> : vector<34x64xf32>
    %147 = tpu.matmul %146, %12, %cst_60 {dimension_numbers = #tpu.dot_dimension_numbers<[1], [0], [0], [1], [0, 0, 1, 1], [], []>} : vector<34x32xf32>, vector<32x64xf32>, vector<34x64xf32> -> vector<34x64xf32>
    %148 = vector.broadcast %20 : vector<1x64xf32> to vector<34x64xf32>
    %149 = arith.addf %147, %148 : vector<34x64xf32>
    %cst_61 = arith.constant 5.000000e-01 : f32
    %150 = vector.broadcast %cst_61 : f32 to vector<34x64xf32>
    %151 = arith.mulf %150, %149 : vector<34x64xf32>
    %152 = arith.mulf %149, %149 : vector<34x64xf32>
    %153 = arith.mulf %152, %149 : vector<34x64xf32>
    %cst_62 = arith.constant 4.471500e-02 : f32
    %154 = vector.broadcast %cst_62 : f32 to vector<34x64xf32>
    %155 = arith.mulf %154, %153 : vector<34x64xf32>
    %156 = arith.addf %149, %155 : vector<34x64xf32>
    %cst_63 = arith.constant 0.797884583 : f32
    %157 = vector.broadcast %cst_63 : f32 to vector<34x64xf32>
    %158 = arith.mulf %157, %156 : vector<34x64xf32>
    %159 = math.tanh %158 : vector<34x64xf32>
    %cst_64 = arith.constant 1.000000e+00 : f32
    %160 = vector.broadcast %cst_64 : f32 to vector<34x64xf32>
    %161 = arith.addf %160, %159 : vector<34x64xf32>
    %162 = arith.mulf %151, %161 : vector<34x64xf32>
    %cst_65 = arith.constant dense<0.000000e+00> : vector<34x32xf32>
    %163 = tpu.matmul %162, %14, %cst_65 {dimension_numbers = #tpu.dot_dimension_numbers<[1], [0], [0], [1], [0, 0, 1, 1], [], []>} : vector<34x64xf32>, vector<64x32xf32>, vector<34x32xf32> -> vector<34x32xf32>
    %164 = arith.addf %124, %163 : vector<34x32xf32>
    %165 = vector.broadcast %22 : vector<1x32xf32> to vector<34x32xf32>
    %166 = arith.addf %164, %165 : vector<34x32xf32>
    %c1_66 = arith.constant 1 : index
    %c0_67 = arith.constant 0 : index
    %c0_68 = arith.constant 0 : index
    %167 = vector.load %arg1[%c1_66, %c0_67, %c0_68] : memref<3x160x128xf32, #tpu.memory_space<vmem>>, vector<1x32x96xf32>
    %168 = vector.shape_cast %167 : vector<1x32x96xf32> to vector<32x96xf32>
    %c1_69 = arith.constant 1 : index
    %c32_70 = arith.constant 32 : index
    %c0_71 = arith.constant 0 : index
    %169 = vector.load %arg1[%c1_69, %c32_70, %c0_71] : memref<3x160x128xf32, #tpu.memory_space<vmem>>, vector<1x32x32xf32>
    %170 = vector.shape_cast %169 : vector<1x32x32xf32> to vector<32x32xf32>
    %c1_72 = arith.constant 1 : index
    %c64_73 = arith.constant 64 : index
    %c0_74 = arith.constant 0 : index
    %171 = vector.load %arg1[%c1_72, %c64_73, %c0_74] : memref<3x160x128xf32, #tpu.memory_space<vmem>>, vector<1x32x64xf32>
    %172 = vector.shape_cast %171 : vector<1x32x64xf32> to vector<32x64xf32>
    %c1_75 = arith.constant 1 : index
    %c96_76 = arith.constant 96 : index
    %c0_77 = arith.constant 0 : index
    %173 = vector.load %arg1[%c1_75, %c96_76, %c0_77] : memref<3x160x128xf32, #tpu.memory_space<vmem>>, vector<1x64x32xf32>
    %174 = vector.shape_cast %173 : vector<1x64x32xf32> to vector<64x32xf32>
    %c1_78 = arith.constant 1 : index
    %c0_79 = arith.constant 0 : index
    %c0_80 = arith.constant 0 : index
    %175 = vector.load %arg2[%c1_78, %c0_79, %c0_80] : memref<3x8x128xf32, #tpu.memory_space<vmem>>, vector<1x1x96xf32>
    %176 = vector.shape_cast %175 : vector<1x1x96xf32> to vector<1x96xf32>
    %c1_81 = arith.constant 1 : index
    %c1_82 = arith.constant 1 : index
    %c0_83 = arith.constant 0 : index
    %177 = vector.load %arg2[%c1_81, %c1_82, %c0_83] : memref<3x8x128xf32, #tpu.memory_space<vmem>>, vector<1x1x32xf32>
    %178 = vector.shape_cast %177 : vector<1x1x32xf32> to vector<1x32xf32>
    %c1_84 = arith.constant 1 : index
    %c2_85 = arith.constant 2 : index
    %c0_86 = arith.constant 0 : index
    %179 = vector.load %arg2[%c1_84, %c2_85, %c0_86] : memref<3x8x128xf32, #tpu.memory_space<vmem>>, vector<1x1x64xf32>
    %180 = vector.shape_cast %179 : vector<1x1x64xf32> to vector<1x64xf32>
    %c1_87 = arith.constant 1 : index
    %c3_88 = arith.constant 3 : index
    %c0_89 = arith.constant 0 : index
    %181 = vector.load %arg2[%c1_87, %c3_88, %c0_89] : memref<3x8x128xf32, #tpu.memory_space<vmem>>, vector<1x1x32xf32>
    %182 = vector.shape_cast %181 : vector<1x1x32xf32> to vector<1x32xf32>
    %c1_90 = arith.constant 1 : index
    %c4_91 = arith.constant 4 : index
    %c0_92 = arith.constant 0 : index
    %183 = vector.load %arg2[%c1_90, %c4_91, %c0_92] : memref<3x8x128xf32, #tpu.memory_space<vmem>>, vector<1x1x32xf32>
    %184 = vector.shape_cast %183 : vector<1x1x32xf32> to vector<1x32xf32>
    %c1_93 = arith.constant 1 : index
    %c5_94 = arith.constant 5 : index
    %c0_95 = arith.constant 0 : index
    %185 = vector.load %arg2[%c1_93, %c5_94, %c0_95] : memref<3x8x128xf32, #tpu.memory_space<vmem>>, vector<1x1x32xf32>
    %186 = vector.shape_cast %185 : vector<1x1x32xf32> to vector<1x32xf32>
    %c1_96 = arith.constant 1 : index
    %c6_97 = arith.constant 6 : index
    %c0_98 = arith.constant 0 : index
    %187 = vector.load %arg2[%c1_96, %c6_97, %c0_98] : memref<3x8x128xf32, #tpu.memory_space<vmem>>, vector<1x1x32xf32>
    %188 = vector.shape_cast %187 : vector<1x1x32xf32> to vector<1x32xf32>
    %c1_99 = arith.constant 1 : index
    %c7_100 = arith.constant 7 : index
    %c0_101 = arith.constant 0 : index
    %189 = vector.load %arg2[%c1_99, %c7_100, %c0_101] : memref<3x8x128xf32, #tpu.memory_space<vmem>>, vector<1x1x32xf32>
    %190 = vector.shape_cast %189 : vector<1x1x32xf32> to vector<1x32xf32>
    %cst_102 = arith.constant dense<0.000000e+00> : vector<34xf32>
    %191 = vector.multi_reduction <add>, %166, %cst_102 [1] : vector<34x32xf32> to vector<34xf32>
    %192 = vector.shape_cast %191 : vector<34xf32> to vector<34x1xf32>
    %cst_103 = arith.constant 3.200000e+01 : f32
    %193 = vector.broadcast %cst_103 : f32 to vector<34x1xf32>
    %194 = arith.divf %192, %193 : vector<34x1xf32>
    %195 = arith.mulf %166, %166 : vector<34x32xf32>
    %cst_104 = arith.constant dense<0.000000e+00> : vector<34xf32>
    %196 = vector.multi_reduction <add>, %195, %cst_104 [1] : vector<34x32xf32> to vector<34xf32>
    %197 = vector.shape_cast %196 : vector<34xf32> to vector<34x1xf32>
    %cst_105 = arith.constant 3.200000e+01 : f32
    %198 = vector.broadcast %cst_105 : f32 to vector<34x1xf32>
    %199 = arith.divf %197, %198 : vector<34x1xf32>
    %200 = arith.mulf %194, %194 : vector<34x1xf32>
    %201 = arith.subf %199, %200 : vector<34x1xf32>
    %202 = vector.broadcast %194 : vector<34x1xf32> to vector<34x32xf32>
    %203 = arith.subf %166, %202 : vector<34x32xf32>
    %cst_106 = arith.constant 9.99999997E-7 : f32
    %204 = vector.broadcast %cst_106 : f32 to vector<34x1xf32>
    %205 = arith.addf %201, %204 : vector<34x1xf32>
    %206 = math.rsqrt %205 : vector<34x1xf32>
    %207 = vector.broadcast %206 : vector<34x1xf32> to vector<34x32xf32>
    %208 = arith.mulf %203, %207 : vector<34x32xf32>
    %209 = vector.broadcast %184 : vector<1x32xf32> to vector<34x32xf32>
    %210 = arith.mulf %208, %209 : vector<34x32xf32>
    %211 = vector.broadcast %186 : vector<1x32xf32> to vector<34x32xf32>
    %212 = arith.addf %210, %211 : vector<34x32xf32>
    %cst_107 = arith.constant dense<0.000000e+00> : vector<34x96xf32>
    %213 = tpu.matmul %212, %168, %cst_107 {dimension_numbers = #tpu.dot_dimension_numbers<[1], [0], [0], [1], [0, 0, 1, 1], [], []>} : vector<34x32xf32>, vector<32x96xf32>, vector<34x96xf32> -> vector<34x96xf32>
    %214 = vector.broadcast %176 : vector<1x96xf32> to vector<34x96xf32>
    %215 = arith.addf %213, %214 : vector<34x96xf32>
    %216 = vector.extract_strided_slice %215 {offsets = [0, 0], sizes = [34, 8], strides = [1, 1]} : vector<34x96xf32> to vector<34x8xf32>
    %217 = vector.extract_strided_slice %215 {offsets = [0, 32], sizes = [34, 8], strides = [1, 1]} : vector<34x96xf32> to vector<34x8xf32>
    %218 = vector.extract_strided_slice %215 {offsets = [0, 64], sizes = [34, 8], strides = [1, 1]} : vector<34x96xf32> to vector<34x8xf32>
    %cst_108 = arith.constant dense<0.000000e+00> : vector<34x34xf32>
    %219 = tpu.matmul %216, %217, %cst_108 {dimension_numbers = #tpu.dot_dimension_numbers<[1], [1], [0], [0], [0, 0, 1, 0], [], []>} : vector<34x8xf32>, vector<34x8xf32>, vector<34x34xf32> -> vector<34x34xf32>
    %220 = arith.addf %219, %1 : vector<34x34xf32>
    %cst_109 = arith.constant dense<0xFF800000> : vector<34xf32>
    %221 = vector.multi_reduction <maximumf>, %220, %cst_109 [1] : vector<34x34xf32> to vector<34xf32>
    %222 = vector.shape_cast %221 : vector<34xf32> to vector<34x1xf32>
    %223 = vector.broadcast %222 : vector<34x1xf32> to vector<34x34xf32>
    %224 = arith.subf %220, %223 : vector<34x34xf32>
    %225 = math.exp %224 : vector<34x34xf32>
    %cst_110 = arith.constant dense<0.000000e+00> : vector<34xf32>
    %226 = vector.multi_reduction <add>, %225, %cst_110 [1] : vector<34x34xf32> to vector<34xf32>
    %227 = vector.shape_cast %226 : vector<34xf32> to vector<34x1xf32>
    %228 = tpu.reciprocal %227 {approx = true} : vector<34x1xf32> -> vector<34x1xf32>
    %229 = vector.broadcast %228 : vector<34x1xf32> to vector<34x34xf32>
    %230 = arith.mulf %225, %229 : vector<34x34xf32>
    %cst_111 = arith.constant dense<0.000000e+00> : vector<34x8xf32>
    %231 = tpu.matmul %230, %218, %cst_111 {dimension_numbers = #tpu.dot_dimension_numbers<[1], [0], [0], [1], [0, 0, 1, 1], [], []>} : vector<34x34xf32>, vector<34x8xf32>, vector<34x8xf32> -> vector<34x8xf32>
    %232 = vector.extract_strided_slice %215 {offsets = [0, 8], sizes = [34, 8], strides = [1, 1]} : vector<34x96xf32> to vector<34x8xf32>
    %233 = vector.extract_strided_slice %215 {offsets = [0, 40], sizes = [34, 8], strides = [1, 1]} : vector<34x96xf32> to vector<34x8xf32>
    %234 = vector.extract_strided_slice %215 {offsets = [0, 72], sizes = [34, 8], strides = [1, 1]} : vector<34x96xf32> to vector<34x8xf32>
    %cst_112 = arith.constant dense<0.000000e+00> : vector<34x34xf32>
    %235 = tpu.matmul %232, %233, %cst_112 {dimension_numbers = #tpu.dot_dimension_numbers<[1], [1], [0], [0], [0, 0, 1, 0], [], []>} : vector<34x8xf32>, vector<34x8xf32>, vector<34x34xf32> -> vector<34x34xf32>
    %236 = arith.addf %235, %1 : vector<34x34xf32>
    %cst_113 = arith.constant dense<0xFF800000> : vector<34xf32>
    %237 = vector.multi_reduction <maximumf>, %236, %cst_113 [1] : vector<34x34xf32> to vector<34xf32>
    %238 = vector.shape_cast %237 : vector<34xf32> to vector<34x1xf32>
    %239 = vector.broadcast %238 : vector<34x1xf32> to vector<34x34xf32>
    %240 = arith.subf %236, %239 : vector<34x34xf32>
    %241 = math.exp %240 : vector<34x34xf32>
    %cst_114 = arith.constant dense<0.000000e+00> : vector<34xf32>
    %242 = vector.multi_reduction <add>, %241, %cst_114 [1] : vector<34x34xf32> to vector<34xf32>
    %243 = vector.shape_cast %242 : vector<34xf32> to vector<34x1xf32>
    %244 = tpu.reciprocal %243 {approx = true} : vector<34x1xf32> -> vector<34x1xf32>
    %245 = vector.broadcast %244 : vector<34x1xf32> to vector<34x34xf32>
    %246 = arith.mulf %241, %245 : vector<34x34xf32>
    %cst_115 = arith.constant dense<0.000000e+00> : vector<34x8xf32>
    %247 = tpu.matmul %246, %234, %cst_115 {dimension_numbers = #tpu.dot_dimension_numbers<[1], [0], [0], [1], [0, 0, 1, 1], [], []>} : vector<34x34xf32>, vector<34x8xf32>, vector<34x8xf32> -> vector<34x8xf32>
    %248 = vector.extract_strided_slice %215 {offsets = [0, 16], sizes = [34, 8], strides = [1, 1]} : vector<34x96xf32> to vector<34x8xf32>
    %249 = vector.extract_strided_slice %215 {offsets = [0, 48], sizes = [34, 8], strides = [1, 1]} : vector<34x96xf32> to vector<34x8xf32>
    %250 = vector.extract_strided_slice %215 {offsets = [0, 80], sizes = [34, 8], strides = [1, 1]} : vector<34x96xf32> to vector<34x8xf32>
    %cst_116 = arith.constant dense<0.000000e+00> : vector<34x34xf32>
    %251 = tpu.matmul %248, %249, %cst_116 {dimension_numbers = #tpu.dot_dimension_numbers<[1], [1], [0], [0], [0, 0, 1, 0], [], []>} : vector<34x8xf32>, vector<34x8xf32>, vector<34x34xf32> -> vector<34x34xf32>
    %252 = arith.addf %251, %1 : vector<34x34xf32>
    %cst_117 = arith.constant dense<0xFF800000> : vector<34xf32>
    %253 = vector.multi_reduction <maximumf>, %252, %cst_117 [1] : vector<34x34xf32> to vector<34xf32>
    %254 = vector.shape_cast %253 : vector<34xf32> to vector<34x1xf32>
    %255 = vector.broadcast %254 : vector<34x1xf32> to vector<34x34xf32>
    %256 = arith.subf %252, %255 : vector<34x34xf32>
    %257 = math.exp %256 : vector<34x34xf32>
    %cst_118 = arith.constant dense<0.000000e+00> : vector<34xf32>
    %258 = vector.multi_reduction <add>, %257, %cst_118 [1] : vector<34x34xf32> to vector<34xf32>
    %259 = vector.shape_cast %258 : vector<34xf32> to vector<34x1xf32>
    %260 = tpu.reciprocal %259 {approx = true} : vector<34x1xf32> -> vector<34x1xf32>
    %261 = vector.broadcast %260 : vector<34x1xf32> to vector<34x34xf32>
    %262 = arith.mulf %257, %261 : vector<34x34xf32>
    %cst_119 = arith.constant dense<0.000000e+00> : vector<34x8xf32>
    %263 = tpu.matmul %262, %250, %cst_119 {dimension_numbers = #tpu.dot_dimension_numbers<[1], [0], [0], [1], [0, 0, 1, 1], [], []>} : vector<34x34xf32>, vector<34x8xf32>, vector<34x8xf32> -> vector<34x8xf32>
    %264 = vector.extract_strided_slice %215 {offsets = [0, 24], sizes = [34, 8], strides = [1, 1]} : vector<34x96xf32> to vector<34x8xf32>
    %265 = vector.extract_strided_slice %215 {offsets = [0, 56], sizes = [34, 8], strides = [1, 1]} : vector<34x96xf32> to vector<34x8xf32>
    %266 = vector.extract_strided_slice %215 {offsets = [0, 88], sizes = [34, 8], strides = [1, 1]} : vector<34x96xf32> to vector<34x8xf32>
    %cst_120 = arith.constant dense<0.000000e+00> : vector<34x34xf32>
    %267 = tpu.matmul %264, %265, %cst_120 {dimension_numbers = #tpu.dot_dimension_numbers<[1], [1], [0], [0], [0, 0, 1, 0], [], []>} : vector<34x8xf32>, vector<34x8xf32>, vector<34x34xf32> -> vector<34x34xf32>
    %268 = arith.addf %267, %1 : vector<34x34xf32>
    %cst_121 = arith.constant dense<0xFF800000> : vector<34xf32>
    %269 = vector.multi_reduction <maximumf>, %268, %cst_121 [1] : vector<34x34xf32> to vector<34xf32>
    %270 = vector.shape_cast %269 : vector<34xf32> to vector<34x1xf32>
    %271 = vector.broadcast %270 : vector<34x1xf32> to vector<34x34xf32>
    %272 = arith.subf %268, %271 : vector<34x34xf32>
    %273 = math.exp %272 : vector<34x34xf32>
    %cst_122 = arith.constant dense<0.000000e+00> : vector<34xf32>
    %274 = vector.multi_reduction <add>, %273, %cst_122 [1] : vector<34x34xf32> to vector<34xf32>
    %275 = vector.shape_cast %274 : vector<34xf32> to vector<34x1xf32>
    %276 = tpu.reciprocal %275 {approx = true} : vector<34x1xf32> -> vector<34x1xf32>
    %277 = vector.broadcast %276 : vector<34x1xf32> to vector<34x34xf32>
    %278 = arith.mulf %273, %277 : vector<34x34xf32>
    %cst_123 = arith.constant dense<0.000000e+00> : vector<34x8xf32>
    %279 = tpu.matmul %278, %266, %cst_123 {dimension_numbers = #tpu.dot_dimension_numbers<[1], [0], [0], [1], [0, 0, 1, 1], [], []>} : vector<34x34xf32>, vector<34x8xf32>, vector<34x8xf32> -> vector<34x8xf32>
    %280 = tpu.concatenate %231, %247, %263, %279 in 1 : vector<34x8xf32>, vector<34x8xf32>, vector<34x8xf32>, vector<34x8xf32> -> vector<34x32xf32>
    %cst_124 = arith.constant dense<0.000000e+00> : vector<34x32xf32>
    %281 = tpu.matmul %280, %170, %cst_124 {dimension_numbers = #tpu.dot_dimension_numbers<[1], [0], [0], [1], [0, 0, 1, 1], [], []>} : vector<34x32xf32>, vector<32x32xf32>, vector<34x32xf32> -> vector<34x32xf32>
    %282 = arith.addf %166, %281 : vector<34x32xf32>
    %283 = vector.broadcast %178 : vector<1x32xf32> to vector<34x32xf32>
    %284 = arith.addf %282, %283 : vector<34x32xf32>
    %cst_125 = arith.constant dense<0.000000e+00> : vector<34xf32>
    %285 = vector.multi_reduction <add>, %284, %cst_125 [1] : vector<34x32xf32> to vector<34xf32>
    %286 = vector.shape_cast %285 : vector<34xf32> to vector<34x1xf32>
    %cst_126 = arith.constant 3.200000e+01 : f32
    %287 = vector.broadcast %cst_126 : f32 to vector<34x1xf32>
    %288 = arith.divf %286, %287 : vector<34x1xf32>
    %289 = arith.mulf %284, %284 : vector<34x32xf32>
    %cst_127 = arith.constant dense<0.000000e+00> : vector<34xf32>
    %290 = vector.multi_reduction <add>, %289, %cst_127 [1] : vector<34x32xf32> to vector<34xf32>
    %291 = vector.shape_cast %290 : vector<34xf32> to vector<34x1xf32>
    %cst_128 = arith.constant 3.200000e+01 : f32
    %292 = vector.broadcast %cst_128 : f32 to vector<34x1xf32>
    %293 = arith.divf %291, %292 : vector<34x1xf32>
    %294 = arith.mulf %288, %288 : vector<34x1xf32>
    %295 = arith.subf %293, %294 : vector<34x1xf32>
    %296 = vector.broadcast %288 : vector<34x1xf32> to vector<34x32xf32>
    %297 = arith.subf %284, %296 : vector<34x32xf32>
    %cst_129 = arith.constant 9.99999997E-7 : f32
    %298 = vector.broadcast %cst_129 : f32 to vector<34x1xf32>
    %299 = arith.addf %295, %298 : vector<34x1xf32>
    %300 = math.rsqrt %299 : vector<34x1xf32>
    %301 = vector.broadcast %300 : vector<34x1xf32> to vector<34x32xf32>
    %302 = arith.mulf %297, %301 : vector<34x32xf32>
    %303 = vector.broadcast %188 : vector<1x32xf32> to vector<34x32xf32>
    %304 = arith.mulf %302, %303 : vector<34x32xf32>
    %305 = vector.broadcast %190 : vector<1x32xf32> to vector<34x32xf32>
    %306 = arith.addf %304, %305 : vector<34x32xf32>
    %cst_130 = arith.constant dense<0.000000e+00> : vector<34x64xf32>
    %307 = tpu.matmul %306, %172, %cst_130 {dimension_numbers = #tpu.dot_dimension_numbers<[1], [0], [0], [1], [0, 0, 1, 1], [], []>} : vector<34x32xf32>, vector<32x64xf32>, vector<34x64xf32> -> vector<34x64xf32>
    %308 = vector.broadcast %180 : vector<1x64xf32> to vector<34x64xf32>
    %309 = arith.addf %307, %308 : vector<34x64xf32>
    %cst_131 = arith.constant 5.000000e-01 : f32
    %310 = vector.broadcast %cst_131 : f32 to vector<34x64xf32>
    %311 = arith.mulf %310, %309 : vector<34x64xf32>
    %312 = arith.mulf %309, %309 : vector<34x64xf32>
    %313 = arith.mulf %312, %309 : vector<34x64xf32>
    %cst_132 = arith.constant 4.471500e-02 : f32
    %314 = vector.broadcast %cst_132 : f32 to vector<34x64xf32>
    %315 = arith.mulf %314, %313 : vector<34x64xf32>
    %316 = arith.addf %309, %315 : vector<34x64xf32>
    %cst_133 = arith.constant 0.797884583 : f32
    %317 = vector.broadcast %cst_133 : f32 to vector<34x64xf32>
    %318 = arith.mulf %317, %316 : vector<34x64xf32>
    %319 = math.tanh %318 : vector<34x64xf32>
    %cst_134 = arith.constant 1.000000e+00 : f32
    %320 = vector.broadcast %cst_134 : f32 to vector<34x64xf32>
    %321 = arith.addf %320, %319 : vector<34x64xf32>
    %322 = arith.mulf %311, %321 : vector<34x64xf32>
    %cst_135 = arith.constant dense<0.000000e+00> : vector<34x32xf32>
    %323 = tpu.matmul %322, %174, %cst_135 {dimension_numbers = #tpu.dot_dimension_numbers<[1], [0], [0], [1], [0, 0, 1, 1], [], []>} : vector<34x64xf32>, vector<64x32xf32>, vector<34x32xf32> -> vector<34x32xf32>
    %324 = arith.addf %284, %323 : vector<34x32xf32>
    %325 = vector.broadcast %182 : vector<1x32xf32> to vector<34x32xf32>
    %326 = arith.addf %324, %325 : vector<34x32xf32>
    %c2_136 = arith.constant 2 : index
    %c0_137 = arith.constant 0 : index
    %c0_138 = arith.constant 0 : index
    %327 = vector.load %arg2[%c2_136, %c0_137, %c0_138] : memref<3x8x128xf32, #tpu.memory_space<vmem>>, vector<1x1x32xf32>
    %328 = vector.shape_cast %327 : vector<1x1x32xf32> to vector<1x32xf32>
    %c2_139 = arith.constant 2 : index
    %c1_140 = arith.constant 1 : index
    %c0_141 = arith.constant 0 : index
    %329 = vector.load %arg2[%c2_139, %c1_140, %c0_141] : memref<3x8x128xf32, #tpu.memory_space<vmem>>, vector<1x1x32xf32>
    %330 = vector.shape_cast %329 : vector<1x1x32xf32> to vector<1x32xf32>
    %cst_142 = arith.constant dense<0.000000e+00> : vector<34xf32>
    %331 = vector.multi_reduction <add>, %326, %cst_142 [1] : vector<34x32xf32> to vector<34xf32>
    %332 = vector.shape_cast %331 : vector<34xf32> to vector<34x1xf32>
    %cst_143 = arith.constant 3.200000e+01 : f32
    %333 = vector.broadcast %cst_143 : f32 to vector<34x1xf32>
    %334 = arith.divf %332, %333 : vector<34x1xf32>
    %335 = arith.mulf %326, %326 : vector<34x32xf32>
    %cst_144 = arith.constant dense<0.000000e+00> : vector<34xf32>
    %336 = vector.multi_reduction <add>, %335, %cst_144 [1] : vector<34x32xf32> to vector<34xf32>
    %337 = vector.shape_cast %336 : vector<34xf32> to vector<34x1xf32>
    %cst_145 = arith.constant 3.200000e+01 : f32
    %338 = vector.broadcast %cst_145 : f32 to vector<34x1xf32>
    %339 = arith.divf %337, %338 : vector<34x1xf32>
    %340 = arith.mulf %334, %334 : vector<34x1xf32>
    %341 = arith.subf %339, %340 : vector<34x1xf32>
    %342 = vector.broadcast %334 : vector<34x1xf32> to vector<34x32xf32>
    %343 = arith.subf %326, %342 : vector<34x32xf32>
    %cst_146 = arith.constant 9.99999997E-7 : f32
    %344 = vector.broadcast %cst_146 : f32 to vector<34x1xf32>
    %345 = arith.addf %341, %344 : vector<34x1xf32>
    %346 = math.rsqrt %345 : vector<34x1xf32>
    %347 = vector.broadcast %346 : vector<34x1xf32> to vector<34x32xf32>
    %348 = arith.mulf %343, %347 : vector<34x32xf32>
    %349 = vector.broadcast %328 : vector<1x32xf32> to vector<34x32xf32>
    %350 = arith.mulf %348, %349 : vector<34x32xf32>
    %351 = vector.broadcast %330 : vector<1x32xf32> to vector<34x32xf32>
    %352 = arith.addf %350, %351 : vector<34x32xf32>
    %c0_147 = arith.constant 0 : index
    %c0_148 = arith.constant 0 : index
    %353 = vector.load %arg3[%c0_147, %c0_148] : memref<34x32xf32, #tpu.memory_space<vmem>>, vector<34x32xf32>
    tpu.vector_store %arg3[%c0_147, %c0_148], %352 {strides = array<i32>} : memref<34x32xf32, #tpu.memory_space<vmem>>, vector<34x32xf32>,
    return
  }
}

</mosaic_0001>

<llo_original>
// kernel: tpu_custom_call.1
$region0: #{tpu_custom_call.1}
  #allocation0 [shape = 'u32[]', space=smem, size = 0x4, offset = 0x4, fixed_abs, tag = 'smem constant byte address 0x4 - core index']
  #allocation1 [shape = 'u32[144,128]{1,0:T(1,128)}', space=vmem, size = 0x12000, scoped, tag = 'internal scratch']
  %s0 = inlined_call_operand.hbm [shape: f32[34,384], index: 0, kind: input, shape index: {}]
  %s1 = inlined_call_operand.hbm [shape: f32[3,160,128], index: 1, kind: input, shape index: {}]
  %s2 = inlined_call_operand.hbm [shape: f32[3,8,128], index: 2, kind: input, shape index: {}]
  %s3 = inlined_call_operand.vmem [shape: f32[34,32], index: 3, kind: output, shape index: {}]
  %s4 = sld [smem:[#allocation0]]
  $region34: #{tpu_custom_call.1} parent=0
    _
  %s6 = ssub.s32 1, %s4
  %s7 = scalar_select 0, %s6, %s4
  $region1: #{tpu_custom_call.1} parent=0
    #allocation2 [shape = 'u8[61440]{0}', space=vmem, size = 0xf000, scoped, tag = 'input window, operand 0, single buffered']
    #allocation3 [shape = 's32[1]{0}', space=sflag, size = 0x4, scoped, tag = 'scoped memory for tpu_custom_call.1']
    #allocation4 [shape = 'u8[245760]{0}', space=vmem, size = 0x3c000, scoped, tag = 'input window, operand 1, single buffered']
    #allocation5 [shape = 's32[1]{0}', space=sflag, size = 0x4, scoped, tag = 'scoped memory for tpu_custom_call.1']
    #allocation6 [shape = 'u8[12288]{0}', space=vmem, size = 0x3000, scoped, tag = 'input window, operand 2, single buffered']
    %8 = vsyncpa [#allocation3], 0
    %9 = vsyncpa [#allocation5], 0
    // Predicated region
    $region2: #{tpu_custom_call.1} parent=1 // pred_check
      _
    $region3: #{tpu_custom_call.1} parent=1 // pred_check_branch
      %11 = sbr.rel (0) target = $region5
    $region4: #{tpu_custom_call.1} parent=1 // pred_region
      %s13 = ssub.s32 1920, 1920
      %14 = vsyncadd [#allocation3], %s13
      %s15 = sshll.u32 [#allocation2], 4
      %s16 = int_to_ptr.vmem [resolvable:$true] %s15
      %21 = dma.hbm_to_vmem [thread:$0]  %s0, 1920, %s16, [#allocation3], 384, 384, 24
    $region5: #{tpu_custom_call.1} parent=1 // pred_fallthru
      _
    // Predicated region
    $region6: #{tpu_custom_call.1} parent=1 // pred_check
      _
    $region7: #{tpu_custom_call.1} parent=1 // pred_check_branch
      %23 = sbr.rel (0) target = $region9
    $region8: #{tpu_custom_call.1} parent=1 // pred_region
      %s25 = ssub.s32 7680, 7680
      %26 = vsyncadd [#allocation5], %s25
      %s27 = sshll.u32 [#allocation4], 4
      %s28 = int_to_ptr.vmem [resolvable:$true] %s27
      %33 = dma.hbm_to_vmem [thread:$0]  %s1, 7680, %s28, [#allocation5], 128, 128, 8
    $region9: #{tpu_custom_call.1} parent=1 // pred_fallthru
      _
    // Predicated region
    $region10: #{tpu_custom_call.1} parent=1 // pred_check
      _
    $region11: #{tpu_custom_call.1} parent=1 // pred_check_branch
      %35 = sbr.rel (0) target = $region13
    $region12: #{tpu_custom_call.1} parent=1 // pred_region
      %s37 = ssub.s32 384, 384
      %38 = vsyncadd [#allocation5], %s37
      %s39 = sshll.u32 [#allocation6], 4
      %s40 = int_to_ptr.vmem [resolvable:$true] %s39
      %45 = dma.hbm_to_vmem [thread:$0]  %s2, 384, %s40, [#allocation5], 128, 128, 8
    $region13: #{tpu_custom_call.1} parent=1 // pred_fallthru
      _
    // Predicated region
    $region14: #{tpu_custom_call.1} parent=1 // pred_check
      _
    $region15: #{tpu_custom_call.1} parent=1 // pred_check_branch
      %47 = sbr.rel (0) target = $region17
    $region16: #{tpu_custom_call.1} parent=1 // pred_region
      %48 = dma.done [#allocation3], 1920
    $region17: #{tpu_custom_call.1} parent=1 // pred_fallthru
      _
    // Predicated region
    $region18: #{tpu_custom_call.1} parent=1 // pred_check
      _
    $region19: #{tpu_custom_call.1} parent=1 // pred_check_branch
      %50 = sbr.rel (0) target = $region21
    $region20: #{tpu_custom_call.1} parent=1 // pred_region
      %51 = dma.done [#allocation5], 7680
    $region21: #{tpu_custom_call.1} parent=1 // pred_fallthru
      _
    // Predicated region
    $region22: #{tpu_custom_call.1} parent=1 // pred_check
      _
    $region23: #{tpu_custom_call.1} parent=1 // pred_check_branch
      %53 = sbr.rel (0) target = $region25
    $region24: #{tpu_custom_call.1} parent=1 // pred_region
      %54 = dma.done [#allocation5], 384
    $region25: #{tpu_custom_call.1} parent=1 // pred_fallthru
      _
    %v55 = vld [vmem:[#allocation2] sm:$0xff]
    %v56 = vld [vmem:[#allocation2 + $0x18] sm:$0xff]
    %v57 = vld [vmem:[#allocation2 + $0x30] sm:$0xff]
    %v58 = vld [vmem:[#allocation2 + $0x48] sm:$0xff]
    %v59 = vld [vmem:[#allocation2 + $0x60] sm:$0x3]
    %v60 = vld [vmem:[#allocation2 + $0x8] sm:$0xff]
    %v61 = vld [vmem:[#allocation2 + $0x20] sm:$0xff]
    %v62 = vld [vmem:[#allocation2 + $0x38] sm:$0xff]
    %v63 = vld [vmem:[#allocation2 + $0x50] sm:$0xff]
    %v64 = vld [vmem:[#allocation2 + $0x68] sm:$0x3]
    %v65 = vld [vmem:[#allocation2 + $0x10] sm:$0xff]
    %v66 = vld [vmem:[#allocation2 + $0x28] sm:$0xff]
    %v67 = vld [vmem:[#allocation2 + $0x40] sm:$0xff]
    %v68 = vld [vmem:[#allocation2 + $0x58] sm:$0xff]
    %v69 = vld [vmem:[#allocation2 + $0x70] sm:$0x3]
    %s70 = scalar_lea.vmem [#allocation4], 320
    %v71 = vld [vmem:[%s70] sm:$0xff]
    %v72 = vld [vmem:[%s70 + $0x8] sm:$0xff]
    %v73 = vld [vmem:[%s70 + $0x10] sm:$0xff]
    %v74 = vld [vmem:[%s70 + $0x18] sm:$0xff]
    %v75 = vld [vmem:[%s70 + $0x20] sm:$0xff]
    %v76 = vld [vmem:[%s70 + $0x28] sm:$0xff]
    %v77 = vld [vmem:[%s70 + $0x30] sm:$0xff]
    %vm78 = vcmask 457728
    %v80 = vsel %vm78, %v55, 0
    %v83 = vsel %vm78, %v56, 0
    %v86 = vsel %vm78, %v57, 0
    %v89 = vsel %vm78, %v58, 0
    %v92 = vsel %vm78, %v59, 0
    %94 = vmatprep.subr.mxu0 0.0
    %95 = vmatpush1.msra.mxu0 %v71
    %96 = vmatprep.subr.mxu0 0.0
    %97 = vmatpush1.msra.mxu0 %v72
    %98 = vmatprep.subr.mxu0 0.0
    %99 = vmatpush1.msra.mxu0 %v73
    %100 = vmatprep.subr.mxu0 0.0
    %101 = vmatpush1.msra.mxu0 %v74
    %102 = vmatprep.subr.mxu0 0.0
    %103 = vmatpush1.msra.mxu0 %v75
    %104 = vmatprep.subr.mxu0 0.0
    %105 = vmatpush1.msra.mxu0 %v76
    %106 = vmatprep.subr.mxu0 0.0
    %107 = vmatpush1.msra.mxu0 %v77
    %108 = vmatprep.subr.mxu0 0.0
    %109 = vmatpush1.msra.mxu0 0.0
    %110 = vmatprep.subr.mxu0 0.0
    %111 = vmatpush1.msra.mxu0 0.0
    %112 = vmatprep.subr.mxu0 0.0
    %113 = vmatpush1.msra.mxu0 0.0
    %114 = vmatprep.subr.mxu0 0.0
    %115 = vmatpush1.msra.mxu0 0.0
    %116 = vmatprep.subr.mxu0 0.0
    %117 = vmatpush1.msra.mxu0 0.0
    %118 = vmatprep.subr.mxu0 0.0
    %119 = vmatpush1.msra.mxu0 0.0
    %120 = vmatprep.subr.mxu0 0.0
    %121 = vmatpush1.msra.mxu0 0.0
    %122 = vmatprep.subr.mxu0 0.0
    %123 = vmatpush1.msra.mxu0 0.0
    %124 = vmatprep.subr.mxu0 0.0
    %125 = vmatpush1.msra.mxu0 0.0
    %126 = vmatprep.subr.mxu0 0.0
    %127 = vmatpush1.msra.mxu0 0.0
    %128 = vmatprep.subr.mxu0 0.0
    %129 = vmatpush1.msra.mxu0 0.0
    %130 = vmatprep.subr.mxu0 0.0
    %131 = vmatpush1.msra.mxu0 0.0
    %132 = vmatprep.subr.mxu0 0.0
    %133 = vmatpush1.msra.mxu0 0.0
    %134 = vmatprep.subr.mxu0 0.0
    %135 = vmatpush1.msra.mxu0 0.0
    %136 = vmatprep.subr.mxu0 0.0
    %137 = vmatpush1.msra.mxu0 0.0
    %138 = vmatprep.subr.mxu0 0.0
    %139 = vmatpush1.msra.mxu0 0.0
    %140 = vmatprep.subr.mxu0 0.0
    %141 = vmatpush1.msra.mxu0 0.0
    %142 = vmatprep.subr.mxu0 0.0
    %143 = vmatpush1.msra.mxu0 0.0
    %144 = vmatprep.subr.mxu0 0.0
    %145 = vmatpush1.msra.mxu0 0.0
    %146 = vmatprep.subr.mxu0 0.0
    %147 = vmatpush1.msra.mxu0 0.0
    %148 = vmatprep.subr.mxu0 0.0
    %149 = vmatpush1.msra.mxu0 0.0
    %150 = vmatprep.subr.mxu0 0.0
    %151 = vmatpush1.msra.mxu0 0.0
    %152 = vmatprep.subr.mxu0 0.0
    %153 = vmatpush1.msra.mxu0 0.0
    %154 = vmatprep.subr.mxu0 0.0
    %155 = vmatpush1.msra.mxu0 0.0
    %156 = vmatprep.subr.mxu0 0.0
    %157 = vmatpush1.msra.mxu0 0.0
    %158 = vmatprep.mubr.f32.mxu0 0.0
    %159 = vmatmul.mubr.f32.gmra.mrb[0].mxu0 %v80
    %v160 = vpop.f32.mrb[0].mxu0
    %v161 = vadd.f32 %v65, %v160
    %v162 = vpop.f32.mrb[0].mxu0
    %163 = vmatprep.mubr.f32.mxu0 0.0
    %164 = vmatmul.mubr.f32.gmra.mrb[0].mxu0 %v83
    %v165 = vpop.f32.mrb[0].mxu0
    %v166 = vadd.f32 %v66, %v165
    %v167 = vpop.f32.mrb[0].mxu0
    %168 = vmatprep.mubr.f32.mxu0 0.0
    %169 = vmatmul.mubr.f32.gmra.mrb[0].mxu0 %v86
    %v170 = vpop.f32.mrb[0].mxu0
    %v171 = vadd.f32 %v67, %v170
    %v172 = vpop.f32.mrb[0].mxu0
    %173 = vmatprep.mubr.f32.mxu0 0.0
    %174 = vmatmul.mubr.f32.gmra.mrb[0].mxu0 %v89
    %v175 = vpop.f32.mrb[0].mxu0
    %v176 = vadd.f32 %v68, %v175
    %v177 = vpop.f32.mrb[0].mxu0
    %178 = vmatprep.mubr.f32.mxu0 0.0
    %179 = vmatmul.mubr.f32.gmra.mrb[0].mxu0 %v92
    %v180 = vpop.f32.mrb[0].mxu0
    %v181 = vadd.f32 %v69, %v180
    %v182 = vpop.f32.mrb[0].mxu0
    %183 = vdwg.mxu0
    %v184 = vld [vmem:[#allocation4] sm:$0xff]
    %v185 = vld [vmem:[#allocation4 + $0x8] sm:$0xff]
    %v186 = vld [vmem:[#allocation4 + $0x10] sm:$0xff]
    %v187 = vld [vmem:[#allocation4 + $0x18] sm:$0xff]
    %v188 = vld [vmem:[#allocation4 + $0x20] sm:$0xff]
    %v189 = vld [vmem:[#allocation4 + $0x28] sm:$0xff]
    %v190 = vld [vmem:[#allocation4 + $0x30] sm:$0xff]
    %v191 = vld [vmem:[#allocation4 + $0x38] sm:$0xff]
    %v192 = vld [vmem:[#allocation4 + $0x40] sm:$0xff]
    %v193 = vld [vmem:[#allocation4 + $0x48] sm:$0xff]
    %v194 = vld [vmem:[#allocation4 + $0x50] sm:$0xff]
    %v195 = vld [vmem:[#allocation4 + $0x58] sm:$0xff]
    %v196 = vld [vmem:[#allocation4 + $0x60] sm:$0xff]
    %v197 = vld [vmem:[#allocation4 + $0x68] sm:$0xff]
    %v198 = vld [vmem:[#allocation4 + $0x70] sm:$0xff]
    %v199 = vld [vmem:[#allocation4 + $0x78] sm:$0xff]
    %v200 = vld [vmem:[#allocation4 + $0x80] sm:$0xff]
    %v201 = vld [vmem:[#allocation4 + $0x88] sm:$0xff]
    %v202 = vld [vmem:[#allocation4 + $0x90] sm:$0xff]
    %v203 = vld [vmem:[#allocation4 + $0x98] sm:$0xff]
    %v204 = vld [vmem:[#allocation6] sm:$0x1]
    %v205 = vld [vmem:[#allocation6 + $0x1] sm:$0x1]
    %v206 = vld [vmem:[#allocation6 + $0x2] sm:$0x1]
    %v207 = vld [vmem:[#allocation6 + $0x3] sm:$0x1]
    %v208 = vld [vmem:[#allocation6 + $0x4] sm:$0x1]
    %v209 = vld [vmem:[#allocation6 + $0x5] sm:$0x1]
    %v210 = vld [vmem:[#allocation6 + $0x6] sm:$0x1]
    %v211 = vld [vmem:[#allocation6 + $0x7] sm:$0x1]
    %vm212 = vcmask 261120
    %v213 = vsel %vm212, %v161, 0.0
    %214 = vadd.xlane.f32.xlu0 %v213
    %v215 = vpop.xlane.xlu0 %214
    %v216 = vsel %vm212, %v166, 0.0
    %217 = vadd.xlane.f32.xlu0 %v216
    %v218 = vpop.xlane.xlu0 %217
    %v219 = vsel %vm212, %v171, 0.0
    %220 = vadd.xlane.f32.xlu0 %v219
    %v221 = vpop.xlane.xlu0 %220
    %v222 = vsel %vm212, %v176, 0.0
    %223 = vadd.xlane.f32.xlu0 %v222
    %v224 = vpop.xlane.xlu0 %223
    %vm225 = vcmask 254976
    %v226 = vsel %vm225, %v181, 0.0
    %227 = vadd.xlane.f32.xlu0 %v226
    %v228 = vpop.xlane.xlu0 %227
    %v229 = vrcp.pop 32.0
    %v230 = vmul.f32 %v215, %v229
    %v231 = vmul.f32 %v218, %v229
    %v232 = vmul.f32 %v221, %v229
    %v233 = vmul.f32 %v224, %v229
    %v234 = vmul.f32 %v228, %v229
    %v235 = vmul.f32 %v161, %v161
    %v236 = vmul.f32 %v166, %v166
    %v237 = vmul.f32 %v171, %v171
    %v238 = vmul.f32 %v176, %v176
    %v239 = vmul.f32 %v181, %v181
    %v240 = vsel %vm212, %v235, 0.0
    %241 = vadd.xlane.f32.xlu0 %v240
    %v242 = vpop.xlane.xlu0 %241
    %v243 = vsel %vm212, %v236, 0.0
    %244 = vadd.xlane.f32.xlu0 %v243
    %v245 = vpop.xlane.xlu0 %244
    %v246 = vsel %vm212, %v237, 0.0
    %247 = vadd.xlane.f32.xlu0 %v246
    %v248 = vpop.xlane.xlu0 %247
    %v249 = vsel %vm212, %v238, 0.0
    %250 = vadd.xlane.f32.xlu0 %v249
    %v251 = vpop.xlane.xlu0 %250
    %v252 = vsel %vm225, %v239, 0.0
    %253 = vadd.xlane.f32.xlu0 %v252
    %v254 = vpop.xlane.xlu0 %253
    %v255 = vmul.f32 %v242, %v229
    %v256 = vmul.f32 %v245, %v229
    %v257 = vmul.f32 %v248, %v229
    %v258 = vmul.f32 %v251, %v229
    %v259 = vmul.f32 %v254, %v229
    %v260 = vmul.f32 %v230, %v230
    %v261 = vmul.f32 %v231, %v231
    %v262 = vmul.f32 %v232, %v232
    %v263 = vmul.f32 %v233, %v233
    %v264 = vmul.f32 %v234, %v234
    %v265 = vsub.f32 %v255, %v260
    %v266 = vsub.f32 %v256, %v261
    %v267 = vsub.f32 %v257, %v262
    %v268 = vsub.f32 %v258, %v263
    %v269 = vsub.f32 %v259, %v264
    %v270 = vsub.f32 %v161, %v230
    %v271 = vsub.f32 %v166, %v231
    %v272 = vsub.f32 %v171, %v232
    %v273 = vsub.f32 %v176, %v233
    %v274 = vsub.f32 %v181, %v234
    %v275 = vadd.f32 %v265, 1e-06
    %v276 = vadd.f32 %v266, 1e-06
    %v277 = vadd.f32 %v267, 1e-06
    %v278 = vadd.f32 %v268, 1e-06
    %v279 = vadd.f32 %v269, 1e-06
    %v280 = vrsqrt.pop %v275
    %v281 = vrsqrt.pop %v276
    %v282 = vrsqrt.pop %v277
    %v283 = vrsqrt.pop %v278
    %v284 = vrsqrt.pop %v279
    %v285 = vmul.f32 %v270, %v280
    %v286 = vmul.f32 %v271, %v281
    %v287 = vmul.f32 %v272, %v282
    %v288 = vmul.f32 %v273, %v283
    %v289 = vmul.f32 %v274, %v284
    %v290 = vlaneseq
    %v291 = vshrl.u32 %v290, 7
    %v292 = vsub.s32 0, %v291
    %v293 = vrot.slane %v208, %v292
    %v294 = vmul.f32 %v285, %v293
    %v295 = vmul.f32 %v286, %v293
    %v296 = vmul.f32 %v287, %v293
    %v297 = vmul.f32 %v288, %v293
    %v298 = vmul.f32 %v289, %v293
    %v299 = vlaneseq
    %v300 = vshrl.u32 %v299, 7
    %v301 = vsub.s32 0, %v300
    %v302 = vrot.slane %v209, %v301
    %v303 = vadd.f32 %v294, %v302
    %v304 = vadd.f32 %v295, %v302
    %v305 = vadd.f32 %v296, %v302
    %v306 = vadd.f32 %v297, %v302
    %v307 = vadd.f32 %v298, %v302
    %v308 = vlaneseq
    %v309 = vshrl.u32 %v308, 7
    %v310 = vsub.s32 0, %v309
    %v311 = vrot.slane %v204, %v310
    %v313 = vsel %vm212, %v303, 0
    %v316 = vsel %vm212, %v304, 0
    %v319 = vsel %vm212, %v305, 0
    %v322 = vsel %vm212, %v306, 0
    %v325 = vsel %vm212, %v307, 0
    %327 = vmatprep.subr.mxu0 0.0
    %328 = vmatpush1.msra.mxu0 %v184
    %329 = vmatprep.subr.mxu0 0.0
    %330 = vmatpush1.msra.mxu0 %v185
    %331 = vmatprep.subr.mxu0 0.0
    %332 = vmatpush1.msra.mxu0 %v186
    %333 = vmatprep.subr.mxu0 0.0
    %334 = vmatpush1.msra.mxu0 %v187
    %335 = vmatprep.subr.mxu0 0.0
    %336 = vmatpush1.msra.mxu0 0.0
    %337 = vmatprep.subr.mxu0 0.0
    %338 = vmatpush1.msra.mxu0 0.0
    %339 = vmatprep.subr.mxu0 0.0
    %340 = vmatpush1.msra.mxu0 0.0
    %341 = vmatprep.subr.mxu0 0.0
    %342 = vmatpush1.msra.mxu0 0.0
    %343 = vmatprep.subr.mxu0 0.0
    %344 = vmatpush1.msra.mxu0 0.0
    %345 = vmatprep.subr.mxu0 0.0
    %346 = vmatpush1.msra.mxu0 0.0
    %347 = vmatprep.subr.mxu0 0.0
    %348 = vmatpush1.msra.mxu0 0.0
    %349 = vmatprep.subr.mxu0 0.0
    %350 = vmatpush1.msra.mxu0 0.0
    %351 = vmatprep.subr.mxu0 0.0
    %352 = vmatpush1.msra.mxu0 0.0
    %353 = vmatprep.subr.mxu0 0.0
    %354 = vmatpush1.msra.mxu0 0.0
    %355 = vmatprep.subr.mxu0 0.0
    %356 = vmatpush1.msra.mxu0 0.0
    %357 = vmatprep.subr.mxu0 0.0
    %358 = vmatpush1.msra.mxu0 0.0
    %359 = vmatprep.subr.mxu0 0.0
    %360 = vmatpush1.msra.mxu0 0.0
    %361 = vmatprep.subr.mxu0 0.0
    %362 = vmatpush1.msra.mxu0 0.0
    %363 = vmatprep.subr.mxu0 0.0
    %364 = vmatpush1.msra.mxu0 0.0
    %365 = vmatprep.subr.mxu0 0.0
    %366 = vmatpush1.msra.mxu0 0.0
    %367 = vmatprep.subr.mxu0 0.0
    %368 = vmatpush1.msra.mxu0 0.0
    %369 = vmatprep.subr.mxu0 0.0
    %370 = vmatpush1.msra.mxu0 0.0
    %371 = vmatprep.subr.mxu0 0.0
    %372 = vmatpush1.msra.mxu0 0.0
    %373 = vmatprep.subr.mxu0 0.0
    %374 = vmatpush1.msra.mxu0 0.0
    %375 = vmatprep.subr.mxu0 0.0
    %376 = vmatpush1.msra.mxu0 0.0
    %377 = vmatprep.subr.mxu0 0.0
    %378 = vmatpush1.msra.mxu0 0.0
    %379 = vmatprep.subr.mxu0 0.0
    %380 = vmatpush1.msra.mxu0 0.0
    %381 = vmatprep.subr.mxu0 0.0
    %382 = vmatpush1.msra.mxu0 0.0
    %383 = vmatprep.subr.mxu0 0.0
    %384 = vmatpush1.msra.mxu0 0.0
    %385 = vmatprep.subr.mxu0 0.0
    %386 = vmatpush1.msra.mxu0 0.0
    %387 = vmatprep.subr.mxu0 0.0
    %388 = vmatpush1.msra.mxu0 0.0
    %389 = vmatprep.subr.mxu0 0.0
    %390 = vmatpush1.msra.mxu0 0.0
    %391 = vmatprep.mubr.f32.mxu0 0.0
    %392 = vmatmul.mubr.f32.gmra.mrb[0].mxu0 %v313
    %v393 = vpop.f32.mrb[0].mxu0
    %v394 = vadd.f32 %v311, %v393
    %v395 = vpop.f32.mrb[0].mxu0
    %396 = vmatprep.mubr.f32.mxu0 0.0
    %397 = vmatmul.mubr.f32.gmra.mrb[0].mxu0 %v316
    %v398 = vpop.f32.mrb[0].mxu0
    %v399 = vadd.f32 %v311, %v398
    %v400 = vpop.f32.mrb[0].mxu0
    %401 = vmatprep.mubr.f32.mxu0 0.0
    %402 = vmatmul.mubr.f32.gmra.mrb[0].mxu0 %v319
    %v403 = vpop.f32.mrb[0].mxu0
    %v404 = vadd.f32 %v311, %v403
    %v405 = vpop.f32.mrb[0].mxu0
    %406 = vmatprep.mubr.f32.mxu0 0.0
    %407 = vmatmul.mubr.f32.gmra.mrb[0].mxu0 %v322
    %v408 = vpop.f32.mrb[0].mxu0
    %v409 = vadd.f32 %v311, %v408
    %v410 = vpop.f32.mrb[0].mxu0
    %411 = vmatprep.mubr.f32.mxu0 0.0
    %412 = vmatmul.mubr.f32.gmra.mrb[0].mxu0 %v325
    %v413 = vpop.f32.mrb[0].mxu0
    %v414 = vadd.f32 %v311, %v413
    %v415 = vpop.f32.mrb[0].mxu0
    %416 = vdwg.mxu0
    %422 = vrot.lane.b32.xlu0 %v394, 96
    %v423 = vpop.permute.xlu0 %422
    %424 = vrot.lane.b32.xlu0 %v399, 96
    %v425 = vpop.permute.xlu0 %424
    %426 = vrot.lane.b32.xlu0 %v404, 96
    %v427 = vpop.permute.xlu0 %426
    %428 = vrot.lane.b32.xlu0 %v409, 96
    %v429 = vpop.permute.xlu0 %428
    %430 = vrot.lane.b32.xlu0 %v414, 96
    %v431 = vpop.permute.xlu0 %430
    %vm432 = vcmask 64512
    %v433 = vsel %vm432, %v394, 0
    %v435 = vsel %vm432, %v399, 0
    %v437 = vsel %vm432, %v404, 0
    %v439 = vsel %vm432, %v409, 0
    %v441 = vsel %vm432, %v414, 0
    %v443 = vsel %vm432, %v423, 0
    %v445 = vsel %vm432, %v425, 0
    %v447 = vsel %vm432, %v427, 0
    %v449 = vsel %vm432, %v429, 0
    %v451 = vsel %vm432, %v431, 0
    %453 = vmatprep.subr.mxu0 0.0
    %454 = vmatpush1.xpose.msra.mxu0 %v443
    %455 = vmatprep.subr.mxu0 0.0
    %456 = vmatpush1.xpose.msra.mxu0 %v445
    %457 = vmatprep.subr.mxu0 0.0
    %458 = vmatpush1.xpose.msra.mxu0 %v447
    %459 = vmatprep.subr.mxu0 0.0
    %460 = vmatpush1.xpose.msra.mxu0 %v449
    %461 = vmatprep.subr.mxu0 0.0
    %462 = vmatpush1.xpose.msra.mxu0 %v451
    %463 = vmatprep.subr.mxu0 0.0
    %464 = vmatpush1.xpose.msra.mxu0 0.0
    %465 = vmatprep.subr.mxu0 0.0
    %466 = vmatpush1.xpose.msra.mxu0 0.0
    %467 = vmatprep.subr.mxu0 0.0
    %468 = vmatpush1.xpose.msra.mxu0 0.0
    %469 = vmatprep.subr.mxu0 0.0
    %470 = vmatpush1.xpose.msra.mxu0 0.0
    %471 = vmatprep.subr.mxu0 0.0
    %472 = vmatpush1.xpose.msra.mxu0 0.0
    %473 = vmatprep.subr.mxu0 0.0
    %474 = vmatpush1.xpose.msra.mxu0 0.0
    %475 = vmatprep.subr.mxu0 0.0
    %476 = vmatpush1.xpose.msra.mxu0 0.0
    %477 = vmatprep.subr.mxu0 0.0
    %478 = vmatpush1.xpose.msra.mxu0 0.0
    %479 = vmatprep.subr.mxu0 0.0
    %480 = vmatpush1.xpose.msra.mxu0 0.0
    %481 = vmatprep.subr.mxu0 0.0
    %482 = vmatpush1.xpose.msra.mxu0 0.0
    %483 = vmatprep.subr.mxu0 0.0
    %484 = vmatpush1.xpose.msra.mxu0 0.0
    %485 = vmatprep.subr.mxu0 0.0
    %486 = vmatpush1.xpose.msra.mxu0 0.0
    %487 = vmatprep.subr.mxu0 0.0
    %488 = vmatpush1.xpose.msra.mxu0 0.0
    %489 = vmatprep.subr.mxu0 0.0
    %490 = vmatpush1.xpose.msra.mxu0 0.0
    %491 = vmatprep.subr.mxu0 0.0
    %492 = vmatpush1.xpose.msra.mxu0 0.0
    %493 = vmatprep.subr.mxu0 0.0
    %494 = vmatpush1.xpose.msra.mxu0 0.0
    %495 = vmatprep.subr.mxu0 0.0
    %496 = vmatpush1.xpose.msra.mxu0 0.0
    %497 = vmatprep.subr.mxu0 0.0
    %498 = vmatpush1.xpose.msra.mxu0 0.0
    %499 = vmatprep.subr.mxu0 0.0
    %500 = vmatpush1.xpose.msra.mxu0 0.0
    %501 = vmatprep.subr.mxu0 0.0
    %502 = vmatpush1.xpose.msra.mxu0 0.0
    %503 = vmatprep.subr.mxu0 0.0
    %504 = vmatpush1.xpose.msra.mxu0 0.0
    %505 = vmatprep.subr.mxu0 0.0
    %506 = vmatpush1.xpose.msra.mxu0 0.0
    %507 = vmatprep.subr.mxu0 0.0
    %508 = vmatpush1.xpose.msra.mxu0 0.0
    %509 = vmatprep.subr.mxu0 0.0
    %510 = vmatpush1.xpose.msra.mxu0 0.0
    %511 = vmatprep.subr.mxu0 0.0
    %512 = vmatpush1.xpose.msra.mxu0 0.0
    %513 = vmatprep.subr.mxu0 0.0
    %514 = vmatpush1.xpose.msra.mxu0 0.0
    %515 = vmatprep.subr.mxu0 0.0
    %516 = vmatpush1.xpose.msra.mxu0 0.0
    %517 = vmatprep.mubr.f32.mxu0 0.0
    %518 = vmatmul.mubr.f32.gmra.mrb[0].mxu0 %v433
    %v519 = vpop.f32.mrb[0].mxu0
    %v520 = vadd.f32 %v60, %v519
    %v521 = vpop.f32.mrb[0].mxu0
    %522 = vmatprep.mubr.f32.mxu0 0.0
    %523 = vmatmul.mubr.f32.gmra.mrb[0].mxu0 %v435
    %v524 = vpop.f32.mrb[0].mxu0
    %v525 = vadd.f32 %v61, %v524
    %v526 = vpop.f32.mrb[0].mxu0
    %527 = vmatprep.mubr.f32.mxu0 0.0
    %528 = vmatmul.mubr.f32.gmra.mrb[0].mxu0 %v437
    %v529 = vpop.f32.mrb[0].mxu0
    %v530 = vadd.f32 %v62, %v529
    %v531 = vpop.f32.mrb[0].mxu0
    %532 = vmatprep.mubr.f32.mxu0 0.0
    %533 = vmatmul.mubr.f32.gmra.mrb[0].mxu0 %v439
    %v534 = vpop.f32.mrb[0].mxu0
    %v535 = vadd.f32 %v63, %v534
    %v536 = vpop.f32.mrb[0].mxu0
    %537 = vmatprep.mubr.f32.mxu0 0.0
    %538 = vmatmul.mubr.f32.gmra.mrb[0].mxu0 %v441
    %v539 = vpop.f32.mrb[0].mxu0
    %v540 = vadd.f32 %v64, %v539
    %v541 = vpop.f32.mrb[0].mxu0
    %542 = vdwg.mxu0
    %vm543 = vcmask 277504
    %v544 = vsel %vm543, %v520, -inf
    %545 = vmax.xlane.f32.xlu0 %v544
    %v546 = vpop.xlane.xlu0 %545
    %v547 = vsel %vm543, %v525, -inf
    %548 = vmax.xlane.f32.xlu0 %v547
    %v549 = vpop.xlane.xlu0 %548
    %v550 = vsel %vm543, %v530, -inf
    %551 = vmax.xlane.f32.xlu0 %v550
    %v552 = vpop.xlane.xlu0 %551
    %v553 = vsel %vm543, %v535, -inf
    %554 = vmax.xlane.f32.xlu0 %v553
    %v555 = vpop.xlane.xlu0 %554
    %vm556 = vcmask 271360
    %v557 = vsel %vm556, %v540, -inf
    %558 = vmax.xlane.f32.xlu0 %v557
    %v559 = vpop.xlane.xlu0 %558
    %v560 = vsub.f32 %v520, %v546
    %v561 = vsub.f32 %v525, %v549
    %v562 = vsub.f32 %v530, %v552
    %v563 = vsub.f32 %v535, %v555
    %v564 = vsub.f32 %v540, %v559
    %v565 = vmul.f32 %v560, 1.442695
    %v566 = vpow.pop %v565
    %v567 = vmul.f32 %v561, 1.442695
    %v568 = vpow.pop %v567
    %v569 = vmul.f32 %v562, 1.442695
    %v570 = vpow.pop %v569
    %v571 = vmul.f32 %v563, 1.442695
    %v572 = vpow.pop %v571
    %v573 = vmul.f32 %v564, 1.442695
    %v574 = vpow.pop %v573
    %v575 = vsel %vm543, %v566, 0.0
    %576 = vadd.xlane.f32.xlu0 %v575
    %v577 = vpop.xlane.xlu0 %576
    %v578 = vsel %vm543, %v568, 0.0
    %579 = vadd.xlane.f32.xlu0 %v578
    %v580 = vpop.xlane.xlu0 %579
    %v581 = vsel %vm543, %v570, 0.0
    %582 = vadd.xlane.f32.xlu0 %v581
    %v583 = vpop.xlane.xlu0 %582
    %v584 = vsel %vm543, %v572, 0.0
    %585 = vadd.xlane.f32.xlu0 %v584
    %v586 = vpop.xlane.xlu0 %585
    %v587 = vsel %vm556, %v574, 0.0
    %588 = vadd.xlane.f32.xlu0 %v587
    %v589 = vpop.xlane.xlu0 %588
    %v590 = vrcp.pop %v577
    %v591 = vrcp.pop %v580
    %v592 = vrcp.pop %v583
    %v593 = vrcp.pop %v586
    %v594 = vrcp.pop %v589
    %v595 = vmul.f32 %v566, %v590
    %v596 = vmul.f32 %v568, %v591
    %v597 = vmul.f32 %v570, %v592
    %v598 = vmul.f32 %v572, %v593
    %v599 = vmul.f32 %v574, %v594
    %600 = vrot.lane.b32.xlu0 %v394, 64
    %v601 = vpop.permute.xlu0 %600
    %602 = vrot.lane.b32.xlu0 %v399, 64
    %v603 = vpop.permute.xlu0 %602
    %604 = vrot.lane.b32.xlu0 %v404, 64
    %v605 = vpop.permute.xlu0 %604
    %606 = vrot.lane.b32.xlu0 %v409, 64
    %v607 = vpop.permute.xlu0 %606
    %608 = vrot.lane.b32.xlu0 %v414, 64
    %v609 = vpop.permute.xlu0 %608
    %v615 = vsel %vm543, %v595, 0
    %v618 = vsel %vm543, %v596, 0
    %v621 = vsel %vm543, %v597, 0
    %v624 = vsel %vm543, %v598, 0
    %v627 = vsel %vm543, %v599, 0
    %vm629 = vcmask 1041408
    %v630 = vsel %vm629, %v609, 0
    %632 = vmatprep.subr.mxu0 0.0
    %633 = vmatpush1.msra.mxu0 %v601
    %634 = vmatprep.subr.mxu0 0.0
    %635 = vmatpush1.msra.mxu0 %v603
    %636 = vmatprep.subr.mxu0 0.0
    %637 = vmatpush1.msra.mxu0 %v605
    %638 = vmatprep.subr.mxu0 0.0
    %639 = vmatpush1.msra.mxu0 %v607
    %640 = vmatprep.subr.mxu0 0.0
    %641 = vmatpush1.msra.mxu0 %v630
    %642 = vmatprep.subr.mxu0 0.0
    %643 = vmatpush1.msra.mxu0 0.0
    %644 = vmatprep.subr.mxu0 0.0
    %645 = vmatpush1.msra.mxu0 0.0
    %646 = vmatprep.subr.mxu0 0.0
    %647 = vmatpush1.msra.mxu0 0.0
    %648 = vmatprep.subr.mxu0 0.0
    %649 = vmatpush1.msra.mxu0 0.0
    %650 = vmatprep.subr.mxu0 0.0
    %651 = vmatpush1.msra.mxu0 0.0
    %652 = vmatprep.subr.mxu0 0.0
    %653 = vmatpush1.msra.mxu0 0.0
    %654 = vmatprep.subr.mxu0 0.0
    %655 = vmatpush1.msra.mxu0 0.0
    %656 = vmatprep.subr.mxu0 0.0
    %657 = vmatpush1.msra.mxu0 0.0
    %658 = vmatprep.subr.mxu0 0.0
    %659 = vmatpush1.msra.mxu0 0.0
    %660 = vmatprep.subr.mxu0 0.0
    %661 = vmatpush1.msra.mxu0 0.0
    %662 = vmatprep.subr.mxu0 0.0
    %663 = vmatpush1.msra.mxu0 0.0
    %664 = vmatprep.subr.mxu0 0.0
    %665 = vmatpush1.msra.mxu0 0.0
    %666 = vmatprep.subr.mxu0 0.0
    %667 = vmatpush1.msra.mxu0 0.0
    %668 = vmatprep.subr.mxu0 0.0
    %669 = vmatpush1.msra.mxu0 0.0
    %670 = vmatprep.subr.mxu0 0.0
    %671 = vmatpush1.msra.mxu0 0.0
    %672 = vmatprep.subr.mxu0 0.0
    %673 = vmatpush1.msra.mxu0 0.0
    %674 = vmatprep.subr.mxu0 0.0
    %675 = vmatpush1.msra.mxu0 0.0
    %676 = vmatprep.subr.mxu0 0.0
    %677 = vmatpush1.msra.mxu0 0.0
    %678 = vmatprep.subr.mxu0 0.0
    %679 = vmatpush1.msra.mxu0 0.0
    %680 = vmatprep.subr.mxu0 0.0
    %681 = vmatpush1.msra.mxu0 0.0
    %682 = vmatprep.subr.mxu0 0.0
    %683 = vmatpush1.msra.mxu0 0.0
    %684 = vmatprep.subr.mxu0 0.0
    %685 = vmatpush1.msra.mxu0 0.0
    %686 = vmatprep.subr.mxu0 0.0
    %687 = vmatpush1.msra.mxu0 0.0
    %688 = vmatprep.subr.mxu0 0.0
    %689 = vmatpush1.msra.mxu0 0.0
    %690 = vmatprep.subr.mxu0 0.0
    %691 = vmatpush1.msra.mxu0 0.0
    %692 = vmatprep.subr.mxu0 0.0
    %693 = vmatpush1.msra.mxu0 0.0
    %694 = vmatprep.subr.mxu0 0.0
    %695 = vmatpush1.msra.mxu0 0.0
    %696 = vmatprep.mubr.f32.mxu0 0.0
    %697 = vmatmul.mubr.f32.gmra.mrb[0].mxu0 %v615
    %v698 = vpop.f32.mrb[0].mxu0
    %v699 = vadd.f32 0.0, %v698
    %v700 = vpop.f32.mrb[0].mxu0
    %701 = vmatprep.mubr.f32.mxu0 0.0
    %702 = vmatmul.mubr.f32.gmra.mrb[0].mxu0 %v618
    %v703 = vpop.f32.mrb[0].mxu0
    %v704 = vadd.f32 0.0, %v703
    %v705 = vpop.f32.mrb[0].mxu0
    %706 = vmatprep.mubr.f32.mxu0 0.0
    %707 = vmatmul.mubr.f32.gmra.mrb[0].mxu0 %v621
    %v708 = vpop.f32.mrb[0].mxu0
    %v709 = vadd.f32 0.0, %v708
    %v710 = vpop.f32.mrb[0].mxu0
    %711 = vmatprep.mubr.f32.mxu0 0.0
    %712 = vmatmul.mubr.f32.gmra.mrb[0].mxu0 %v624
    %v713 = vpop.f32.mrb[0].mxu0
    %v714 = vadd.f32 0.0, %v713
    %v715 = vpop.f32.mrb[0].mxu0
    %716 = vmatprep.mubr.f32.mxu0 0.0
    %717 = vmatmul.mubr.f32.gmra.mrb[0].mxu0 %v627
    %v718 = vpop.f32.mrb[0].mxu0
    %v719 = vadd.f32 0.0, %v718
    %v720 = vpop.f32.mrb[0].mxu0
    %721 = vdwg.mxu0
    %722 = vrot.lane.b32.xlu0 %v394, 120
    %v723 = vpop.permute.xlu0 %722
    %724 = vrot.lane.b32.xlu0 %v399, 120
    %v725 = vpop.permute.xlu0 %724
    %726 = vrot.lane.b32.xlu0 %v404, 120
    %v727 = vpop.permute.xlu0 %726
    %728 = vrot.lane.b32.xlu0 %v409, 120
    %v729 = vpop.permute.xlu0 %728
    %730 = vrot.lane.b32.xlu0 %v414, 120
    %v731 = vpop.permute.xlu0 %730
    %732 = vrot.lane.b32.xlu0 %v394, 88
    %v733 = vpop.permute.xlu0 %732
    %734 = vrot.lane.b32.xlu0 %v399, 88
    %v735 = vpop.permute.xlu0 %734
    %736 = vrot.lane.b32.xlu0 %v404, 88
    %v737 = vpop.permute.xlu0 %736
    %738 = vrot.lane.b32.xlu0 %v409, 88
    %v739 = vpop.permute.xlu0 %738
    %740 = vrot.lane.b32.xlu0 %v414, 88
    %v741 = vpop.permute.xlu0 %740
    %v742 = vsel %vm432, %v723, 0
    %v744 = vsel %vm432, %v725, 0
    %v746 = vsel %vm432, %v727, 0
    %v748 = vsel %vm432, %v729, 0
    %v750 = vsel %vm432, %v731, 0
    %v752 = vsel %vm432, %v733, 0
    %v754 = vsel %vm432, %v735, 0
    %v756 = vsel %vm432, %v737, 0
    %v758 = vsel %vm432, %v739, 0
    %v760 = vsel %vm432, %v741, 0
    %762 = vmatprep.subr.mxu0 0.0
    %763 = vmatpush1.xpose.msra.mxu0 %v752
    %764 = vmatprep.subr.mxu0 0.0
    %765 = vmatpush1.xpose.msra.mxu0 %v754
    %766 = vmatprep.subr.mxu0 0.0
    %767 = vmatpush1.xpose.msra.mxu0 %v756
    %768 = vmatprep.subr.mxu0 0.0
    %769 = vmatpush1.xpose.msra.mxu0 %v758
    %770 = vmatprep.subr.mxu0 0.0
    %771 = vmatpush1.xpose.msra.mxu0 %v760
    %772 = vmatprep.subr.mxu0 0.0
    %773 = vmatpush1.xpose.msra.mxu0 0.0
    %774 = vmatprep.subr.mxu0 0.0
    %775 = vmatpush1.xpose.msra.mxu0 0.0
    %776 = vmatprep.subr.mxu0 0.0
    %777 = vmatpush1.xpose.msra.mxu0 0.0
    %778 = vmatprep.subr.mxu0 0.0
    %779 = vmatpush1.xpose.msra.mxu0 0.0
    %780 = vmatprep.subr.mxu0 0.0
    %781 = vmatpush1.xpose.msra.mxu0 0.0
    %782 = vmatprep.subr.mxu0 0.0
    %783 = vmatpush1.xpose.msra.mxu0 0.0
    %784 = vmatprep.subr.mxu0 0.0
    %785 = vmatpush1.xpose.msra.mxu0 0.0
    %786 = vmatprep.subr.mxu0 0.0
    %787 = vmatpush1.xpose.msra.mxu0 0.0
    %788 = vmatprep.subr.mxu0 0.0
    %789 = vmatpush1.xpose.msra.mxu0 0.0
    %790 = vmatprep.subr.mxu0 0.0
    %791 = vmatpush1.xpose.msra.mxu0 0.0
    %792 = vmatprep.subr.mxu0 0.0
    %793 = vmatpush1.xpose.msra.mxu0 0.0
    %794 = vmatprep.subr.mxu0 0.0
    %795 = vmatpush1.xpose.msra.mxu0 0.0
    %796 = vmatprep.subr.mxu0 0.0
    %797 = vmatpush1.xpose.msra.mxu0 0.0
    %798 = vmatprep.subr.mxu0 0.0
    %799 = vmatpush1.xpose.msra.mxu0 0.0
    %800 = vmatprep.subr.mxu0 0.0
    %801 = vmatpush1.xpose.msra.mxu0 0.0
    %802 = vmatprep.subr.mxu0 0.0
    %803 = vmatpush1.xpose.msra.mxu0 0.0
    %804 = vmatprep.subr.mxu0 0.0
    %805 = vmatpush1.xpose.msra.mxu0 0.0
    %806 = vmatprep.subr.mxu0 0.0
    %807 = vmatpush1.xpose.msra.mxu0 0.0
    %808 = vmatprep.subr.mxu0 0.0
    %809 = vmatpush1.xpose.msra.mxu0 0.0
    %810 = vmatprep.subr.mxu0 0.0
    %811 = vmatpush1.xpose.msra.mxu0 0.0
    %812 = vmatprep.subr.mxu0 0.0
    %813 = vmatpush1.xpose.msra.mxu0 0.0
    %814 = vmatprep.subr.mxu0 0.0
    %815 = vmatpush1.xpose.msra.mxu0 0.0
    %816 = vmatprep.subr.mxu0 0.0
    %817 = vmatpush1.xpose.msra.mxu0 0.0
    %818 = vmatprep.subr.mxu0 0.0
    %819 = vmatpush1.xpose.msra.mxu0 0.0
    %820 = vmatprep.subr.mxu0 0.0
    %821 = vmatpush1.xpose.msra.mxu0 0.0
    %822 = vmatprep.subr.mxu0 0.0
    %823 = vmatpush1.xpose.msra.mxu0 0.0
    %824 = vmatprep.subr.mxu0 0.0
    %825 = vmatpush1.xpose.msra.mxu0 0.0
    %826 = vmatprep.mubr.f32.mxu0 0.0
    %827 = vmatmul.mubr.f32.gmra.mrb[0].mxu0 %v742
    %v828 = vpop.f32.mrb[0].mxu0
    %v829 = vadd.f32 %v60, %v828
    %v830 = vpop.f32.mrb[0].mxu0
    %831 = vmatprep.mubr.f32.mxu0 0.0
    %832 = vmatmul.mubr.f32.gmra.mrb[0].mxu0 %v744
    %v833 = vpop.f32.mrb[0].mxu0
    %v834 = vadd.f32 %v61, %v833
    %v835 = vpop.f32.mrb[0].mxu0
    %836 = vmatprep.mubr.f32.mxu0 0.0
    %837 = vmatmul.mubr.f32.gmra.mrb[0].mxu0 %v746
    %v838 = vpop.f32.mrb[0].mxu0
    %v839 = vadd.f32 %v62, %v838
    %v840 = vpop.f32.mrb[0].mxu0
    %841 = vmatprep.mubr.f32.mxu0 0.0
    %842 = vmatmul.mubr.f32.gmra.mrb[0].mxu0 %v748
    %v843 = vpop.f32.mrb[0].mxu0
    %v844 = vadd.f32 %v63, %v843
    %v845 = vpop.f32.mrb[0].mxu0
    %846 = vmatprep.mubr.f32.mxu0 0.0
    %847 = vmatmul.mubr.f32.gmra.mrb[0].mxu0 %v750
    %v848 = vpop.f32.mrb[0].mxu0
    %v849 = vadd.f32 %v64, %v848
    %v850 = vpop.f32.mrb[0].mxu0
    %851 = vdwg.mxu0
    %v852 = vsel %vm543, %v829, -inf
    %853 = vmax.xlane.f32.xlu0 %v852
    %v854 = vpop.xlane.xlu0 %853
    %v855 = vsel %vm543, %v834, -inf
    %856 = vmax.xlane.f32.xlu0 %v855
    %v857 = vpop.xlane.xlu0 %856
    %v858 = vsel %vm543, %v839, -inf
    %859 = vmax.xlane.f32.xlu0 %v858
    %v860 = vpop.xlane.xlu0 %859
    %v861 = vsel %vm543, %v844, -inf
    %862 = vmax.xlane.f32.xlu0 %v861
    %v863 = vpop.xlane.xlu0 %862
    %v864 = vsel %vm556, %v849, -inf
    %865 = vmax.xlane.f32.xlu0 %v864
    %v866 = vpop.xlane.xlu0 %865
    %v867 = vsub.f32 %v829, %v854
    %v868 = vsub.f32 %v834, %v857
    %v869 = vsub.f32 %v839, %v860
    %v870 = vsub.f32 %v844, %v863
    %v871 = vsub.f32 %v849, %v866
    %v872 = vmul.f32 %v867, 1.442695
    %v873 = vpow.pop %v872
    %v874 = vmul.f32 %v868, 1.442695
    %v875 = vpow.pop %v874
    %v876 = vmul.f32 %v869, 1.442695
    %v877 = vpow.pop %v876
    %v878 = vmul.f32 %v870, 1.442695
    %v879 = vpow.pop %v878
    %v880 = vmul.f32 %v871, 1.442695
    %v881 = vpow.pop %v880
    %v882 = vsel %vm543, %v873, 0.0
    %883 = vadd.xlane.f32.xlu0 %v882
    %v884 = vpop.xlane.xlu0 %883
    %v885 = vsel %vm543, %v875, 0.0
    %886 = vadd.xlane.f32.xlu0 %v885
    %v887 = vpop.xlane.xlu0 %886
    %v888 = vsel %vm543, %v877, 0.0
    %889 = vadd.xlane.f32.xlu0 %v888
    %v890 = vpop.xlane.xlu0 %889
    %v891 = vsel %vm543, %v879, 0.0
    %892 = vadd.xlane.f32.xlu0 %v891
    %v893 = vpop.xlane.xlu0 %892
    %v894 = vsel %vm556, %v881, 0.0
    %895 = vadd.xlane.f32.xlu0 %v894
    %v896 = vpop.xlane.xlu0 %895
    %v897 = vrcp.pop %v884
    %v898 = vrcp.pop %v887
    %v899 = vrcp.pop %v890
    %v900 = vrcp.pop %v893
    %v901 = vrcp.pop %v896
    %v902 = vmul.f32 %v873, %v897
    %v903 = vmul.f32 %v875, %v898
    %v904 = vmul.f32 %v877, %v899
    %v905 = vmul.f32 %v879, %v900
    %v906 = vmul.f32 %v881, %v901
    %907 = vrot.lane.b32.xlu0 %v394, 56
    %v908 = vpop.permute.xlu0 %907
    %909 = vrot.lane.b32.xlu0 %v399, 56
    %v910 = vpop.permute.xlu0 %909
    %911 = vrot.lane.b32.xlu0 %v404, 56
    %v912 = vpop.permute.xlu0 %911
    %913 = vrot.lane.b32.xlu0 %v409, 56
    %v914 = vpop.permute.xlu0 %913
    %915 = vrot.lane.b32.xlu0 %v414, 56
    %v916 = vpop.permute.xlu0 %915
    %v922 = vsel %vm543, %v902, 0
    %v925 = vsel %vm543, %v903, 0
    %v928 = vsel %vm543, %v904, 0
    %v931 = vsel %vm543, %v905, 0
    %v934 = vsel %vm543, %v906, 0
    %v936 = vsel %vm629, %v916, 0
    %938 = vmatprep.subr.mxu0 0.0
    %939 = vmatpush1.msra.mxu0 %v908
    %940 = vmatprep.subr.mxu0 0.0
    %941 = vmatpush1.msra.mxu0 %v910
    %942 = vmatprep.subr.mxu0 0.0
    %943 = vmatpush1.msra.mxu0 %v912
    %944 = vmatprep.subr.mxu0 0.0
    %945 = vmatpush1.msra.mxu0 %v914
    %946 = vmatprep.subr.mxu0 0.0
    %947 = vmatpush1.msra.mxu0 %v936
    %948 = vmatprep.subr.mxu0 0.0
    %949 = vmatpush1.msra.mxu0 0.0
    %950 = vmatprep.subr.mxu0 0.0
    %951 = vmatpush1.msra.mxu0 0.0
    %952 = vmatprep.subr.mxu0 0.0
    %953 = vmatpush1.msra.mxu0 0.0
    %954 = vmatprep.subr.mxu0 0.0
    %955 = vmatpush1.msra.mxu0 0.0
    %956 = vmatprep.subr.mxu0 0.0
    %957 = vmatpush1.msra.mxu0 0.0
    %958 = vmatprep.subr.mxu0 0.0
    %959 = vmatpush1.msra.mxu0 0.0
    %960 = vmatprep.subr.mxu0 0.0
    %961 = vmatpush1.msra.mxu0 0.0
    %962 = vmatprep.subr.mxu0 0.0
    %963 = vmatpush1.msra.mxu0 0.0
    %964 = vmatprep.subr.mxu0 0.0
    %965 = vmatpush1.msra.mxu0 0.0
    %966 = vmatprep.subr.mxu0 0.0
    %967 = vmatpush1.msra.mxu0 0.0
    %968 = vmatprep.subr.mxu0 0.0
    %969 = vmatpush1.msra.mxu0 0.0
    %970 = vmatprep.subr.mxu0 0.0
    %971 = vmatpush1.msra.mxu0 0.0
    %972 = vmatprep.subr.mxu0 0.0
    %973 = vmatpush1.msra.mxu0 0.0
    %974 = vmatprep.subr.mxu0 0.0
    %975 = vmatpush1.msra.mxu0 0.0
    %976 = vmatprep.subr.mxu0 0.0
    %977 = vmatpush1.msra.mxu0 0.0
    %978 = vmatprep.subr.mxu0 0.0
    %979 = vmatpush1.msra.mxu0 0.0
    %980 = vmatprep.subr.mxu0 0.0
    %981 = vmatpush1.msra.mxu0 0.0
    %982 = vmatprep.subr.mxu0 0.0
    %983 = vmatpush1.msra.mxu0 0.0
    %984 = vmatprep.subr.mxu0 0.0
    %985 = vmatpush1.msra.mxu0 0.0
    %986 = vmatprep.subr.mxu0 0.0
    %987 = vmatpush1.msra.mxu0 0.0
    %988 = vmatprep.subr.mxu0 0.0
    %989 = vmatpush1.msra.mxu0 0.0
    %990 = vmatprep.subr.mxu0 0.0
    %991 = vmatpush1.msra.mxu0 0.0
    %992 = vmatprep.subr.mxu0 0.0
    %993 = vmatpush1.msra.mxu0 0.0
    %994 = vmatprep.subr.mxu0 0.0
    %995 = vmatpush1.msra.mxu0 0.0
    %996 = vmatprep.subr.mxu0 0.0
    %997 = vmatpush1.msra.mxu0 0.0
    %998 = vmatprep.subr.mxu0 0.0
    %999 = vmatpush1.msra.mxu0 0.0
    %1000 = vmatprep.subr.mxu0 0.0
    %1001 = vmatpush1.msra.mxu0 0.0
    %1002 = vmatprep.mubr.f32.mxu0 0.0
    %1003 = vmatmul.mubr.f32.gmra.mrb[0].mxu0 %v922
    %v1004 = vpop.f32.mrb[0].mxu0
    %v1005 = vadd.f32 0.0, %v1004
    %v1006 = vpop.f32.mrb[0].mxu0
    %1007 = vmatprep.mubr.f32.mxu0 0.0
    %1008 = vmatmul.mubr.f32.gmra.mrb[0].mxu0 %v925
    %v1009 = vpop.f32.mrb[0].mxu0
    %v1010 = vadd.f32 0.0, %v1009
    %v1011 = vpop.f32.mrb[0].mxu0
    %1012 = vmatprep.mubr.f32.mxu0 0.0
    %1013 = vmatmul.mubr.f32.gmra.mrb[0].mxu0 %v928
    %v1014 = vpop.f32.mrb[0].mxu0
    %v1015 = vadd.f32 0.0, %v1014
    %v1016 = vpop.f32.mrb[0].mxu0
    %1017 = vmatprep.mubr.f32.mxu0 0.0
    %1018 = vmatmul.mubr.f32.gmra.mrb[0].mxu0 %v931
    %v1019 = vpop.f32.mrb[0].mxu0
    %v1020 = vadd.f32 0.0, %v1019
    %v1021 = vpop.f32.mrb[0].mxu0
    %1022 = vmatprep.mubr.f32.mxu0 0.0
    %1023 = vmatmul.mubr.f32.gmra.mrb[0].mxu0 %v934
    %v1024 = vpop.f32.mrb[0].mxu0
    %v1025 = vadd.f32 0.0, %v1024
    %v1026 = vpop.f32.mrb[0].mxu0
    %1027 = vdwg.mxu0
    %1028 = vrot.lane.b32.xlu0 %v394, 112
    %v1029 = vpop.permute.xlu0 %1028
    %1030 = vrot.lane.b32.xlu0 %v399, 112
    %v1031 = vpop.permute.xlu0 %1030
    %1032 = vrot.lane.b32.xlu0 %v404, 112
    %v1033 = vpop.permute.xlu0 %1032
    %1034 = vrot.lane.b32.xlu0 %v409, 112
    %v1035 = vpop.permute.xlu0 %1034
    %1036 = vrot.lane.b32.xlu0 %v414, 112
    %v1037 = vpop.permute.xlu0 %1036
    %1038 = vrot.lane.b32.xlu0 %v394, 80
    %v1039 = vpop.permute.xlu0 %1038
    %1040 = vrot.lane.b32.xlu0 %v399, 80
    %v1041 = vpop.permute.xlu0 %1040
    %1042 = vrot.lane.b32.xlu0 %v404, 80
    %v1043 = vpop.permute.xlu0 %1042
    %1044 = vrot.lane.b32.xlu0 %v409, 80
    %v1045 = vpop.permute.xlu0 %1044
    %1046 = vrot.lane.b32.xlu0 %v414, 80
    %v1047 = vpop.permute.xlu0 %1046
    %v1048 = vsel %vm432, %v1029, 0
    %v1050 = vsel %vm432, %v1031, 0
    %v1052 = vsel %vm432, %v1033, 0
    %v1054 = vsel %vm432, %v1035, 0
    %v1056 = vsel %vm432, %v1037, 0
    %v1058 = vsel %vm432, %v1039, 0
    %v1060 = vsel %vm432, %v1041, 0
    %v1062 = vsel %vm432, %v1043, 0
    %v1064 = vsel %vm432, %v1045, 0
    %v1066 = vsel %vm432, %v1047, 0
    %1068 = vmatprep.subr.mxu0 0.0
    %1069 = vmatpush1.xpose.msra.mxu0 %v1058
    %1070 = vmatprep.subr.mxu0 0.0
    %1071 = vmatpush1.xpose.msra.mxu0 %v1060
    %1072 = vmatprep.subr.mxu0 0.0
    %1073 = vmatpush1.xpose.msra.mxu0 %v1062
    %1074 = vmatprep.subr.mxu0 0.0
    %1075 = vmatpush1.xpose.msra.mxu0 %v1064
    %1076 = vmatprep.subr.mxu0 0.0
    %1077 = vmatpush1.xpose.msra.mxu0 %v1066
    %1078 = vmatprep.subr.mxu0 0.0
    %1079 = vmatpush1.xpose.msra.mxu0 0.0
    %1080 = vmatprep.subr.mxu0 0.0
    %1081 = vmatpush1.xpose.msra.mxu0 0.0
    %1082 = vmatprep.subr.mxu0 0.0
    %1083 = vmatpush1.xpose.msra.mxu0 0.0
    %1084 = vmatprep.subr.mxu0 0.0
    %1085 = vmatpush1.xpose.msra.mxu0 0.0
    %1086 = vmatprep.subr.mxu0 0.0
    %1087 = vmatpush1.xpose.msra.mxu0 0.0
    %1088 = vmatprep.subr.mxu0 0.0
    %1089 = vmatpush1.xpose.msra.mxu0 0.0
    %1090 = vmatprep.subr.mxu0 0.0
    %1091 = vmatpush1.xpose.msra.mxu0 0.0
    %1092 = vmatprep.subr.mxu0 0.0
    %1093 = vmatpush1.xpose.msra.mxu0 0.0
    %1094 = vmatprep.subr.mxu0 0.0
    %1095 = vmatpush1.xpose.msra.mxu0 0.0
    %1096 = vmatprep.subr.mxu0 0.0
    %1097 = vmatpush1.xpose.msra.mxu0 0.0
    %1098 = vmatprep.subr.mxu0 0.0
    %1099 = vmatpush1.xpose.msra.mxu0 0.0
    %1100 = vmatprep.subr.mxu0 0.0
    %1101 = vmatpush1.xpose.msra.mxu0 0.0
    %1102 = vmatprep.subr.mxu0 0.0
    %1103 = vmatpush1.xpose.msra.mxu0 0.0
    %1104 = vmatprep.subr.mxu0 0.0
    %1105 = vmatpush1.xpose.msra.mxu0 0.0
    %1106 = vmatprep.subr.mxu0 0.0
    %1107 = vmatpush1.xpose.msra.mxu0 0.0
    %1108 = vmatprep.subr.mxu0 0.0
    %1109 = vmatpush1.xpose.msra.mxu0 0.0
    %1110 = vmatprep.subr.mxu0 0.0
    %1111 = vmatpush1.xpose.msra.mxu0 0.0
    %1112 = vmatprep.subr.mxu0 0.0
    %1113 = vmatpush1.xpose.msra.mxu0 0.0
    %1114 = vmatprep.subr.mxu0 0.0
    %1115 = vmatpush1.xpose.msra.mxu0 0.0
    %1116 = vmatprep.subr.mxu0 0.0
    %1117 = vmatpush1.xpose.msra.mxu0 0.0
    %1118 = vmatprep.subr.mxu0 0.0
    %1119 = vmatpush1.xpose.msra.mxu0 0.0
    %1120 = vmatprep.subr.mxu0 0.0
    %1121 = vmatpush1.xpose.msra.mxu0 0.0
    %1122 = vmatprep.subr.mxu0 0.0
    %1123 = vmatpush1.xpose.msra.mxu0 0.0
    %1124 = vmatprep.subr.mxu0 0.0
    %1125 = vmatpush1.xpose.msra.mxu0 0.0
    %1126 = vmatprep.subr.mxu0 0.0
    %1127 = vmatpush1.xpose.msra.mxu0 0.0
    %1128 = vmatprep.subr.mxu0 0.0
    %1129 = vmatpush1.xpose.msra.mxu0 0.0
    %1130 = vmatprep.subr.mxu0 0.0
    %1131 = vmatpush1.xpose.msra.mxu0 0.0
    %1132 = vmatprep.mubr.f32.mxu0 0.0
    %1133 = vmatmul.mubr.f32.gmra.mrb[0].mxu0 %v1048
    %v1134 = vpop.f32.mrb[0].mxu0
    %v1135 = vadd.f32 %v60, %v1134
    %v1136 = vpop.f32.mrb[0].mxu0
    %1137 = vmatprep.mubr.f32.mxu0 0.0
    %1138 = vmatmul.mubr.f32.gmra.mrb[0].mxu0 %v1050
    %v1139 = vpop.f32.mrb[0].mxu0
    %v1140 = vadd.f32 %v61, %v1139
    %v1141 = vpop.f32.mrb[0].mxu0
    %1142 = vmatprep.mubr.f32.mxu0 0.0
    %1143 = vmatmul.mubr.f32.gmra.mrb[0].mxu0 %v1052
    %v1144 = vpop.f32.mrb[0].mxu0
    %v1145 = vadd.f32 %v62, %v1144
    %v1146 = vpop.f32.mrb[0].mxu0
    %1147 = vmatprep.mubr.f32.mxu0 0.0
    %1148 = vmatmul.mubr.f32.gmra.mrb[0].mxu0 %v1054
    %v1149 = vpop.f32.mrb[0].mxu0
    %v1150 = vadd.f32 %v63, %v1149
    %v1151 = vpop.f32.mrb[0].mxu0
    %1152 = vmatprep.mubr.f32.mxu0 0.0
    %1153 = vmatmul.mubr.f32.gmra.mrb[0].mxu0 %v1056
    %v1154 = vpop.f32.mrb[0].mxu0
    %v1155 = vadd.f32 %v64, %v1154
    %v1156 = vpop.f32.mrb[0].mxu0
    %1157 = vdwg.mxu0
    %v1158 = vsel %vm543, %v1135, -inf
    %1159 = vmax.xlane.f32.xlu0 %v1158
    %v1160 = vpop.xlane.xlu0 %1159
    %v1161 = vsel %vm543, %v1140, -inf
    %1162 = vmax.xlane.f32.xlu0 %v1161
    %v1163 = vpop.xlane.xlu0 %1162
    %v1164 = vsel %vm543, %v1145, -inf
    %1165 = vmax.xlane.f32.xlu0 %v1164
    %v1166 = vpop.xlane.xlu0 %1165
    %v1167 = vsel %vm543, %v1150, -inf
    %1168 = vmax.xlane.f32.xlu0 %v1167
    %v1169 = vpop.xlane.xlu0 %1168
    %v1170 = vsel %vm556, %v1155, -inf
    %1171 = vmax.xlane.f32.xlu0 %v1170
    %v1172 = vpop.xlane.xlu0 %1171
    %v1173 = vsub.f32 %v1135, %v1160
    %v1174 = vsub.f32 %v1140, %v1163
    %v1175 = vsub.f32 %v1145, %v1166
    %v1176 = vsub.f32 %v1150, %v1169
    %v1177 = vsub.f32 %v1155, %v1172
    %v1178 = vmul.f32 %v1173, 1.442695
    %v1179 = vpow.pop %v1178
    %v1180 = vmul.f32 %v1174, 1.442695
    %v1181 = vpow.pop %v1180
    %v1182 = vmul.f32 %v1175, 1.442695
    %v1183 = vpow.pop %v1182
    %v1184 = vmul.f32 %v1176, 1.442695
    %v1185 = vpow.pop %v1184
    %v1186 = vmul.f32 %v1177, 1.442695
    %v1187 = vpow.pop %v1186
    %v1188 = vsel %vm543, %v1179, 0.0
    %1189 = vadd.xlane.f32.xlu0 %v1188
    %v1190 = vpop.xlane.xlu0 %1189
    %v1191 = vsel %vm543, %v1181, 0.0
    %1192 = vadd.xlane.f32.xlu0 %v1191
    %v1193 = vpop.xlane.xlu0 %1192
    %v1194 = vsel %vm543, %v1183, 0.0
    %1195 = vadd.xlane.f32.xlu0 %v1194
    %v1196 = vpop.xlane.xlu0 %1195
    %v1197 = vsel %vm543, %v1185, 0.0
    %1198 = vadd.xlane.f32.xlu0 %v1197
    %v1199 = vpop.xlane.xlu0 %1198
    %v1200 = vsel %vm556, %v1187, 0.0
    %1201 = vadd.xlane.f32.xlu0 %v1200
    %v1202 = vpop.xlane.xlu0 %1201
    %v1203 = vrcp.pop %v1190
    %v1204 = vrcp.pop %v1193
    %v1205 = vrcp.pop %v1196
    %v1206 = vrcp.pop %v1199
    %v1207 = vrcp.pop %v1202
    %v1208 = vmul.f32 %v1179, %v1203
    %v1209 = vmul.f32 %v1181, %v1204
    %v1210 = vmul.f32 %v1183, %v1205
    %v1211 = vmul.f32 %v1185, %v1206
    %v1212 = vmul.f32 %v1187, %v1207
    %1213 = vrot.lane.b32.xlu0 %v394, 48
    %v1214 = vpop.permute.xlu0 %1213
    %1215 = vrot.lane.b32.xlu0 %v399, 48
    %v1216 = vpop.permute.xlu0 %1215
    %1217 = vrot.lane.b32.xlu0 %v404, 48
    %v1218 = vpop.permute.xlu0 %1217
    %1219 = vrot.lane.b32.xlu0 %v409, 48
    %v1220 = vpop.permute.xlu0 %1219
    %1221 = vrot.lane.b32.xlu0 %v414, 48
    %v1222 = vpop.permute.xlu0 %1221
    %v1228 = vsel %vm543, %v1208, 0
    %v1231 = vsel %vm543, %v1209, 0
    %v1234 = vsel %vm543, %v1210, 0
    %v1237 = vsel %vm543, %v1211, 0
    %v1240 = vsel %vm543, %v1212, 0
    %v1242 = vsel %vm629, %v1222, 0
    %1244 = vmatprep.subr.mxu0 0.0
    %1245 = vmatpush1.msra.mxu0 %v1214
    %1246 = vmatprep.subr.mxu0 0.0
    %1247 = vmatpush1.msra.mxu0 %v1216
    %1248 = vmatprep.subr.mxu0 0.0
    %1249 = vmatpush1.msra.mxu0 %v1218
    %1250 = vmatprep.subr.mxu0 0.0
    %1251 = vmatpush1.msra.mxu0 %v1220
    %1252 = vmatprep.subr.mxu0 0.0
    %1253 = vmatpush1.msra.mxu0 %v1242
    %1254 = vmatprep.subr.mxu0 0.0
    %1255 = vmatpush1.msra.mxu0 0.0
    %1256 = vmatprep.subr.mxu0 0.0
    %1257 = vmatpush1.msra.mxu0 0.0
    %1258 = vmatprep.subr.mxu0 0.0
    %1259 = vmatpush1.msra.mxu0 0.0
    %1260 = vmatprep.subr.mxu0 0.0
    %1261 = vmatpush1.msra.mxu0 0.0
    %1262 = vmatprep.subr.mxu0 0.0
    %1263 = vmatpush1.msra.mxu0 0.0
    %1264 = vmatprep.subr.mxu0 0.0
    %1265 = vmatpush1.msra.mxu0 0.0
    %1266 = vmatprep.subr.mxu0 0.0
    %1267 = vmatpush1.msra.mxu0 0.0
    %1268 = vmatprep.subr.mxu0 0.0
    %1269 = vmatpush1.msra.mxu0 0.0
    %1270 = vmatprep.subr.mxu0 0.0
    %1271 = vmatpush1.msra.mxu0 0.0
    %1272 = vmatprep.subr.mxu0 0.0
    %1273 = vmatpush1.msra.mxu0 0.0
    %1274 = vmatprep.subr.mxu0 0.0
    %1275 = vmatpush1.msra.mxu0 0.0
    %1276 = vmatprep.subr.mxu0 0.0
    %1277 = vmatpush1.msra.mxu0 0.0
    %1278 = vmatprep.subr.mxu0 0.0
    %1279 = vmatpush1.msra.mxu0 0.0
    %1280 = vmatprep.subr.mxu0 0.0
    %1281 = vmatpush1.msra.mxu0 0.0
    %1282 = vmatprep.subr.mxu0 0.0
    %1283 = vmatpush1.msra.mxu0 0.0
    %1284 = vmatprep.subr.mxu0 0.0
    %1285 = vmatpush1.msra.mxu0 0.0
    %1286 = vmatprep.subr.mxu0 0.0
    %1287 = vmatpush1.msra.mxu0 0.0
    %1288 = vmatprep.subr.mxu0 0.0
    %1289 = vmatpush1.msra.mxu0 0.0
    %1290 = vmatprep.subr.mxu0 0.0
    %1291 = vmatpush1.msra.mxu0 0.0
    %1292 = vmatprep.subr.mxu0 0.0
    %1293 = vmatpush1.msra.mxu0 0.0
    %1294 = vmatprep.subr.mxu0 0.0
    %1295 = vmatpush1.msra.mxu0 0.0
    %1296 = vmatprep.subr.mxu0 0.0
    %1297 = vmatpush1.msra.mxu0 0.0
    %1298 = vmatprep.subr.mxu0 0.0
    %1299 = vmatpush1.msra.mxu0 0.0
    %1300 = vmatprep.subr.mxu0 0.0
    %1301 = vmatpush1.msra.mxu0 0.0
    %1302 = vmatprep.subr.mxu0 0.0
    %1303 = vmatpush1.msra.mxu0 0.0
    %1304 = vmatprep.subr.mxu0 0.0
    %1305 = vmatpush1.msra.mxu0 0.0
    %1306 = vmatprep.subr.mxu0 0.0
    %1307 = vmatpush1.msra.mxu0 0.0
    %1308 = vmatprep.mubr.f32.mxu0 0.0
    %1309 = vmatmul.mubr.f32.gmra.mrb[0].mxu0 %v1228
    %v1310 = vpop.f32.mrb[0].mxu0
    %v1311 = vadd.f32 0.0, %v1310
    %v1312 = vpop.f32.mrb[0].mxu0
    %1313 = vmatprep.mubr.f32.mxu0 0.0
    %1314 = vmatmul.mubr.f32.gmra.mrb[0].mxu0 %v1231
    %v1315 = vpop.f32.mrb[0].mxu0
    %v1316 = vadd.f32 0.0, %v1315
    %v1317 = vpop.f32.mrb[0].mxu0
    %1318 = vmatprep.mubr.f32.mxu0 0.0
    %1319 = vmatmul.mubr.f32.gmra.mrb[0].mxu0 %v1234
    %v1320 = vpop.f32.mrb[0].mxu0
    %v1321 = vadd.f32 0.0, %v1320
    %v1322 = vpop.f32.mrb[0].mxu0
    %1323 = vmatprep.mubr.f32.mxu0 0.0
    %1324 = vmatmul.mubr.f32.gmra.mrb[0].mxu0 %v1237
    %v1325 = vpop.f32.mrb[0].mxu0
    %v1326 = vadd.f32 0.0, %v1325
    %v1327 = vpop.f32.mrb[0].mxu0
    %1328 = vmatprep.mubr.f32.mxu0 0.0
    %1329 = vmatmul.mubr.f32.gmra.mrb[0].mxu0 %v1240
    %v1330 = vpop.f32.mrb[0].mxu0
    %v1331 = vadd.f32 0.0, %v1330
    %v1332 = vpop.f32.mrb[0].mxu0
    %1333 = vdwg.mxu0
    %1334 = vrot.lane.b32.xlu0 %v394, 104
    %v1335 = vpop.permute.xlu0 %1334
    %1336 = vrot.lane.b32.xlu0 %v399, 104
    %v1337 = vpop.permute.xlu0 %1336
    %1338 = vrot.lane.b32.xlu0 %v404, 104
    %v1339 = vpop.permute.xlu0 %1338
    %1340 = vrot.lane.b32.xlu0 %v409, 104
    %v1341 = vpop.permute.xlu0 %1340
    %1342 = vrot.lane.b32.xlu0 %v414, 104
    %v1343 = vpop.permute.xlu0 %1342
    %1344 = vrot.lane.b32.xlu0 %v394, 72
    %v1345 = vpop.permute.xlu0 %1344
    %1346 = vrot.lane.b32.xlu0 %v399, 72
    %v1347 = vpop.permute.xlu0 %1346
    %1348 = vrot.lane.b32.xlu0 %v404, 72
    %v1349 = vpop.permute.xlu0 %1348
    %1350 = vrot.lane.b32.xlu0 %v409, 72
    %v1351 = vpop.permute.xlu0 %1350
    %1352 = vrot.lane.b32.xlu0 %v414, 72
    %v1353 = vpop.permute.xlu0 %1352
    %v1354 = vsel %vm432, %v1335, 0
    %v1356 = vsel %vm432, %v1337, 0
    %v1358 = vsel %vm432, %v1339, 0
    %v1360 = vsel %vm432, %v1341, 0
    %v1362 = vsel %vm432, %v1343, 0
    %v1364 = vsel %vm432, %v1345, 0
    %v1366 = vsel %vm432, %v1347, 0
    %v1368 = vsel %vm432, %v1349, 0
    %v1370 = vsel %vm432, %v1351, 0
    %v1372 = vsel %vm432, %v1353, 0
    %1374 = vmatprep.subr.mxu0 0.0
    %1375 = vmatpush1.xpose.msra.mxu0 %v1364
    %1376 = vmatprep.subr.mxu0 0.0
    %1377 = vmatpush1.xpose.msra.mxu0 %v1366
    %1378 = vmatprep.subr.mxu0 0.0
    %1379 = vmatpush1.xpose.msra.mxu0 %v1368
    %1380 = vmatprep.subr.mxu0 0.0
    %1381 = vmatpush1.xpose.msra.mxu0 %v1370
    %1382 = vmatprep.subr.mxu0 0.0
    %1383 = vmatpush1.xpose.msra.mxu0 %v1372
    %1384 = vmatprep.subr.mxu0 0.0
    %1385 = vmatpush1.xpose.msra.mxu0 0.0
    %1386 = vmatprep.subr.mxu0 0.0
    %1387 = vmatpush1.xpose.msra.mxu0 0.0
    %1388 = vmatprep.subr.mxu0 0.0
    %1389 = vmatpush1.xpose.msra.mxu0 0.0
    %1390 = vmatprep.subr.mxu0 0.0
    %1391 = vmatpush1.xpose.msra.mxu0 0.0
    %1392 = vmatprep.subr.mxu0 0.0
    %1393 = vmatpush1.xpose.msra.mxu0 0.0
    %1394 = vmatprep.subr.mxu0 0.0
    %1395 = vmatpush1.xpose.msra.mxu0 0.0
    %1396 = vmatprep.subr.mxu0 0.0
    %1397 = vmatpush1.xpose.msra.mxu0 0.0
    %1398 = vmatprep.subr.mxu0 0.0
    %1399 = vmatpush1.xpose.msra.mxu0 0.0
    %1400 = vmatprep.subr.mxu0 0.0
    %1401 = vmatpush1.xpose.msra.mxu0 0.0
    %1402 = vmatprep.subr.mxu0 0.0
    %1403 = vmatpush1.xpose.msra.mxu0 0.0
    %1404 = vmatprep.subr.mxu0 0.0
    %1405 = vmatpush1.xpose.msra.mxu0 0.0
    %1406 = vmatprep.subr.mxu0 0.0
    %1407 = vmatpush1.xpose.msra.mxu0 0.0
    %1408 = vmatprep.subr.mxu0 0.0
    %1409 = vmatpush1.xpose.msra.mxu0 0.0
    %1410 = vmatprep.subr.mxu0 0.0
    %1411 = vmatpush1.xpose.msra.mxu0 0.0
    %1412 = vmatprep.subr.mxu0 0.0
    %1413 = vmatpush1.xpose.msra.mxu0 0.0
    %1414 = vmatprep.subr.mxu0 0.0
    %1415 = vmatpush1.xpose.msra.mxu0 0.0
    %1416 = vmatprep.subr.mxu0 0.0
    %1417 = vmatpush1.xpose.msra.mxu0 0.0
    %1418 = vmatprep.subr.mxu0 0.0
    %1419 = vmatpush1.xpose.msra.mxu0 0.0
    %1420 = vmatprep.subr.mxu0 0.0
    %1421 = vmatpush1.xpose.msra.mxu0 0.0
    %1422 = vmatprep.subr.mxu0 0.0
    %1423 = vmatpush1.xpose.msra.mxu0 0.0
    %1424 = vmatprep.subr.mxu0 0.0
    %1425 = vmatpush1.xpose.msra.mxu0 0.0
    %1426 = vmatprep.subr.mxu0 0.0
    %1427 = vmatpush1.xpose.msra.mxu0 0.0
    %1428 = vmatprep.subr.mxu0 0.0
    %1429 = vmatpush1.xpose.msra.mxu0 0.0
    %1430 = vmatprep.subr.mxu0 0.0
    %1431 = vmatpush1.xpose.msra.mxu0 0.0
    %1432 = vmatprep.subr.mxu0 0.0
    %1433 = vmatpush1.xpose.msra.mxu0 0.0
    %1434 = vmatprep.subr.mxu0 0.0
    %1435 = vmatpush1.xpose.msra.mxu0 0.0
    %1436 = vmatprep.subr.mxu0 0.0
    %1437 = vmatpush1.xpose.msra.mxu0 0.0
    %1438 = vmatprep.mubr.f32.mxu0 0.0
    %1439 = vmatmul.mubr.f32.gmra.mrb[0].mxu0 %v1354
    %v1440 = vpop.f32.mrb[0].mxu0
    %v1441 = vadd.f32 %v60, %v1440
    %v1442 = vpop.f32.mrb[0].mxu0
    %1443 = vmatprep.mubr.f32.mxu0 0.0
    %1444 = vmatmul.mubr.f32.gmra.mrb[0].mxu0 %v1356
    %v1445 = vpop.f32.mrb[0].mxu0
    %v1446 = vadd.f32 %v61, %v1445
    %v1447 = vpop.f32.mrb[0].mxu0
    %1448 = vmatprep.mubr.f32.mxu0 0.0
    %1449 = vmatmul.mubr.f32.gmra.mrb[0].mxu0 %v1358
    %v1450 = vpop.f32.mrb[0].mxu0
    %v1451 = vadd.f32 %v62, %v1450
    %v1452 = vpop.f32.mrb[0].mxu0
    %1453 = vmatprep.mubr.f32.mxu0 0.0
    %1454 = vmatmul.mubr.f32.gmra.mrb[0].mxu0 %v1360
    %v1455 = vpop.f32.mrb[0].mxu0
    %v1456 = vadd.f32 %v63, %v1455
    %v1457 = vpop.f32.mrb[0].mxu0
    %1458 = vmatprep.mubr.f32.mxu0 0.0
    %1459 = vmatmul.mubr.f32.gmra.mrb[0].mxu0 %v1362
    %v1460 = vpop.f32.mrb[0].mxu0
    %v1461 = vadd.f32 %v64, %v1460
    %v1462 = vpop.f32.mrb[0].mxu0
    %1463 = vdwg.mxu0
    %v1464 = vsel %vm543, %v1441, -inf
    %1465 = vmax.xlane.f32.xlu0 %v1464
    %v1466 = vpop.xlane.xlu0 %1465
    %v1467 = vsel %vm543, %v1446, -inf
    %1468 = vmax.xlane.f32.xlu0 %v1467
    %v1469 = vpop.xlane.xlu0 %1468
    %v1470 = vsel %vm543, %v1451, -inf
    %1471 = vmax.xlane.f32.xlu0 %v1470
    %v1472 = vpop.xlane.xlu0 %1471
    %v1473 = vsel %vm543, %v1456, -inf
    %1474 = vmax.xlane.f32.xlu0 %v1473
    %v1475 = vpop.xlane.xlu0 %1474
    %v1476 = vsel %vm556, %v1461, -inf
    %1477 = vmax.xlane.f32.xlu0 %v1476
    %v1478 = vpop.xlane.xlu0 %1477
    %v1479 = vsub.f32 %v1441, %v1466
    %v1480 = vsub.f32 %v1446, %v1469
    %v1481 = vsub.f32 %v1451, %v1472
    %v1482 = vsub.f32 %v1456, %v1475
    %v1483 = vsub.f32 %v1461, %v1478
    %v1484 = vmul.f32 %v1479, 1.442695
    %v1485 = vpow.pop %v1484
    %v1486 = vmul.f32 %v1480, 1.442695
    %v1487 = vpow.pop %v1486
    %v1488 = vmul.f32 %v1481, 1.442695
    %v1489 = vpow.pop %v1488
    %v1490 = vmul.f32 %v1482, 1.442695
    %v1491 = vpow.pop %v1490
    %v1492 = vmul.f32 %v1483, 1.442695
    %v1493 = vpow.pop %v1492
    %v1494 = vsel %vm543, %v1485, 0.0
    %1495 = vadd.xlane.f32.xlu0 %v1494
    %v1496 = vpop.xlane.xlu0 %1495
    %v1497 = vsel %vm543, %v1487, 0.0
    %1498 = vadd.xlane.f32.xlu0 %v1497
    %v1499 = vpop.xlane.xlu0 %1498
    %v1500 = vsel %vm543, %v1489, 0.0
    %1501 = vadd.xlane.f32.xlu0 %v1500
    %v1502 = vpop.xlane.xlu0 %1501
    %v1503 = vsel %vm543, %v1491, 0.0
    %1504 = vadd.xlane.f32.xlu0 %v1503
    %v1505 = vpop.xlane.xlu0 %1504
    %v1506 = vsel %vm556, %v1493, 0.0
    %1507 = vadd.xlane.f32.xlu0 %v1506
    %v1508 = vpop.xlane.xlu0 %1507
    %v1509 = vrcp.pop %v1496
    %v1510 = vrcp.pop %v1499
    %v1511 = vrcp.pop %v1502
    %v1512 = vrcp.pop %v1505
    %v1513 = vrcp.pop %v1508
    %v1514 = vmul.f32 %v1485, %v1509
    %v1515 = vmul.f32 %v1487, %v1510
    %v1516 = vmul.f32 %v1489, %v1511
    %v1517 = vmul.f32 %v1491, %v1512
    %v1518 = vmul.f32 %v1493, %v1513
    %1519 = vrot.lane.b32.xlu0 %v394, 40
    %v1520 = vpop.permute.xlu0 %1519
    %1521 = vrot.lane.b32.xlu0 %v399, 40
    %v1522 = vpop.permute.xlu0 %1521
    %1523 = vrot.lane.b32.xlu0 %v404, 40
    %v1524 = vpop.permute.xlu0 %1523
    %1525 = vrot.lane.b32.xlu0 %v409, 40
    %v1526 = vpop.permute.xlu0 %1525
    %1527 = vrot.lane.b32.xlu0 %v414, 40
    %v1528 = vpop.permute.xlu0 %1527
    %v1534 = vsel %vm543, %v1514, 0
    %v1537 = vsel %vm543, %v1515, 0
    %v1540 = vsel %vm543, %v1516, 0
    %v1543 = vsel %vm543, %v1517, 0
    %v1546 = vsel %vm543, %v1518, 0
    %v1548 = vsel %vm629, %v1528, 0
    %1550 = vmatprep.subr.mxu0 0.0
    %1551 = vmatpush1.msra.mxu0 %v1520
    %1552 = vmatprep.subr.mxu0 0.0
    %1553 = vmatpush1.msra.mxu0 %v1522
    %1554 = vmatprep.subr.mxu0 0.0
    %1555 = vmatpush1.msra.mxu0 %v1524
    %1556 = vmatprep.subr.mxu0 0.0
    %1557 = vmatpush1.msra.mxu0 %v1526
    %1558 = vmatprep.subr.mxu0 0.0
    %1559 = vmatpush1.msra.mxu0 %v1548
    %1560 = vmatprep.subr.mxu0 0.0
    %1561 = vmatpush1.msra.mxu0 0.0
    %1562 = vmatprep.subr.mxu0 0.0
    %1563 = vmatpush1.msra.mxu0 0.0
    %1564 = vmatprep.subr.mxu0 0.0
    %1565 = vmatpush1.msra.mxu0 0.0
    %1566 = vmatprep.subr.mxu0 0.0
    %1567 = vmatpush1.msra.mxu0 0.0
    %1568 = vmatprep.subr.mxu0 0.0
    %1569 = vmatpush1.msra.mxu0 0.0
    %1570 = vmatprep.subr.mxu0 0.0
    %1571 = vmatpush1.msra.mxu0 0.0
    %1572 = vmatprep.subr.mxu0 0.0
    %1573 = vmatpush1.msra.mxu0 0.0
    %1574 = vmatprep.subr.mxu0 0.0
    %1575 = vmatpush1.msra.mxu0 0.0
    %1576 = vmatprep.subr.mxu0 0.0
    %1577 = vmatpush1.msra.mxu0 0.0
    %1578 = vmatprep.subr.mxu0 0.0
    %1579 = vmatpush1.msra.mxu0 0.0
    %1580 = vmatprep.subr.mxu0 0.0
    %1581 = vmatpush1.msra.mxu0 0.0
    %1582 = vmatprep.subr.mxu0 0.0
    %1583 = vmatpush1.msra.mxu0 0.0
    %1584 = vmatprep.subr.mxu0 0.0
    %1585 = vmatpush1.msra.mxu0 0.0
    %1586 = vmatprep.subr.mxu0 0.0
    %1587 = vmatpush1.msra.mxu0 0.0
    %1588 = vmatprep.subr.mxu0 0.0
    %1589 = vmatpush1.msra.mxu0 0.0
    %1590 = vmatprep.subr.mxu0 0.0
    %1591 = vmatpush1.msra.mxu0 0.0
    %1592 = vmatprep.subr.mxu0 0.0
    %1593 = vmatpush1.msra.mxu0 0.0
    %1594 = vmatprep.subr.mxu0 0.0
    %1595 = vmatpush1.msra.mxu0 0.0
    %1596 = vmatprep.subr.mxu0 0.0
    %1597 = vmatpush1.msra.mxu0 0.0
    %1598 = vmatprep.subr.mxu0 0.0
    %1599 = vmatpush1.msra.mxu0 0.0
    %1600 = vmatprep.subr.mxu0 0.0
    %1601 = vmatpush1.msra.mxu0 0.0
    %1602 = vmatprep.subr.mxu0 0.0
    %1603 = vmatpush1.msra.mxu0 0.0
    %1604 = vmatprep.subr.mxu0 0.0
    %1605 = vmatpush1.msra.mxu0 0.0
    %1606 = vmatprep.subr.mxu0 0.0
    %1607 = vmatpush1.msra.mxu0 0.0
    %1608 = vmatprep.subr.mxu0 0.0
    %1609 = vmatpush1.msra.mxu0 0.0
    %1610 = vmatprep.subr.mxu0 0.0
    %1611 = vmatpush1.msra.mxu0 0.0
    %1612 = vmatprep.subr.mxu0 0.0
    %1613 = vmatpush1.msra.mxu0 0.0
    %1614 = vmatprep.mubr.f32.mxu0 0.0
    %1615 = vmatmul.mubr.f32.gmra.mrb[0].mxu0 %v1534
    %v1616 = vpop.f32.mrb[0].mxu0
    %v1617 = vadd.f32 0.0, %v1616
    %v1618 = vpop.f32.mrb[0].mxu0
    %1619 = vmatprep.mubr.f32.mxu0 0.0
    %1620 = vmatmul.mubr.f32.gmra.mrb[0].mxu0 %v1537
    %v1621 = vpop.f32.mrb[0].mxu0
    %v1622 = vadd.f32 0.0, %v1621
    %v1623 = vpop.f32.mrb[0].mxu0
    %1624 = vmatprep.mubr.f32.mxu0 0.0
    %1625 = vmatmul.mubr.f32.gmra.mrb[0].mxu0 %v1540
    %v1626 = vpop.f32.mrb[0].mxu0
    %v1627 = vadd.f32 0.0, %v1626
    %v1628 = vpop.f32.mrb[0].mxu0
    %1629 = vmatprep.mubr.f32.mxu0 0.0
    %1630 = vmatmul.mubr.f32.gmra.mrb[0].mxu0 %v1543
    %v1631 = vpop.f32.mrb[0].mxu0
    %v1632 = vadd.f32 0.0, %v1631
    %v1633 = vpop.f32.mrb[0].mxu0
    %1634 = vmatprep.mubr.f32.mxu0 0.0
    %1635 = vmatmul.mubr.f32.gmra.mrb[0].mxu0 %v1546
    %v1636 = vpop.f32.mrb[0].mxu0
    %v1637 = vadd.f32 0.0, %v1636
    %v1638 = vpop.f32.mrb[0].mxu0
    %1639 = vdwg.mxu0
    %1645 = vrot.lane.b32.xlu0 %v1005, 8
    %v1646 = vpop.permute.xlu0 %1645
    %1647 = vrot.lane.b32.xlu0 %v1010, 8
    %v1648 = vpop.permute.xlu0 %1647
    %1649 = vrot.lane.b32.xlu0 %v1015, 8
    %v1650 = vpop.permute.xlu0 %1649
    %1651 = vrot.lane.b32.xlu0 %v1020, 8
    %v1652 = vpop.permute.xlu0 %1651
    %1653 = vrot.lane.b32.xlu0 %v1025, 8
    %v1654 = vpop.permute.xlu0 %1653
    %1665 = vrot.lane.b32.xlu0 %v1311, 16
    %v1666 = vpop.permute.xlu0 %1665
    %1667 = vrot.lane.b32.xlu0 %v1316, 16
    %v1668 = vpop.permute.xlu0 %1667
    %1669 = vrot.lane.b32.xlu0 %v1321, 16
    %v1670 = vpop.permute.xlu0 %1669
    %1671 = vrot.lane.b32.xlu0 %v1326, 16
    %v1672 = vpop.permute.xlu0 %1671
    %1673 = vrot.lane.b32.xlu0 %v1331, 16
    %v1674 = vpop.permute.xlu0 %1673
    %1685 = vrot.lane.b32.xlu0 %v1617, 24
    %v1686 = vpop.permute.xlu0 %1685
    %1687 = vrot.lane.b32.xlu0 %v1622, 24
    %v1688 = vpop.permute.xlu0 %1687
    %1689 = vrot.lane.b32.xlu0 %v1627, 24
    %v1690 = vpop.permute.xlu0 %1689
    %1691 = vrot.lane.b32.xlu0 %v1632, 24
    %v1692 = vpop.permute.xlu0 %1691
    %1693 = vrot.lane.b32.xlu0 %v1637, 24
    %v1694 = vpop.permute.xlu0 %1693
    %v1700 = vsel %vm432, %v699, %v1646
    %v1701 = vsel %vm432, %v704, %v1648
    %v1702 = vsel %vm432, %v709, %v1650
    %v1703 = vsel %vm432, %v714, %v1652
    %v1704 = vsel %vm432, %v719, %v1654
    %vm1705 = vcmask 130048
    %v1706 = vsel %vm1705, %v1700, %v1666
    %v1707 = vsel %vm1705, %v1701, %v1668
    %v1708 = vsel %vm1705, %v1702, %v1670
    %v1709 = vsel %vm1705, %v1703, %v1672
    %v1710 = vsel %vm1705, %v1704, %v1674
    %vm1711 = vcmask 195584
    %v1712 = vsel %vm1711, %v1706, %v1686
    %v1713 = vsel %vm1711, %v1707, %v1688
    %v1714 = vsel %vm1711, %v1708, %v1690
    %v1715 = vsel %vm1711, %v1709, %v1692
    %v1716 = vsel %vm1711, %v1710, %v1694
    %v1718 = vsel %vm212, %v1712, 0
    %v1721 = vsel %vm212, %v1713, 0
    %v1724 = vsel %vm212, %v1714, 0
    %v1727 = vsel %vm212, %v1715, 0
    %v1730 = vsel %vm212, %v1716, 0
    %1732 = vmatprep.subr.mxu0 0.0
    %1733 = vmatpush1.msra.mxu0 %v188
    %1734 = vmatprep.subr.mxu0 0.0
    %1735 = vmatpush1.msra.mxu0 %v189
    %1736 = vmatprep.subr.mxu0 0.0
    %1737 = vmatpush1.msra.mxu0 %v190
    %1738 = vmatprep.subr.mxu0 0.0
    %1739 = vmatpush1.msra.mxu0 %v191
    %1740 = vmatprep.subr.mxu0 0.0
    %1741 = vmatpush1.msra.mxu0 0.0
    %1742 = vmatprep.subr.mxu0 0.0
    %1743 = vmatpush1.msra.mxu0 0.0
    %1744 = vmatprep.subr.mxu0 0.0
    %1745 = vmatpush1.msra.mxu0 0.0
    %1746 = vmatprep.subr.mxu0 0.0
    %1747 = vmatpush1.msra.mxu0 0.0
    %1748 = vmatprep.subr.mxu0 0.0
    %1749 = vmatpush1.msra.mxu0 0.0
    %1750 = vmatprep.subr.mxu0 0.0
    %1751 = vmatpush1.msra.mxu0 0.0
    %1752 = vmatprep.subr.mxu0 0.0
    %1753 = vmatpush1.msra.mxu0 0.0
    %1754 = vmatprep.subr.mxu0 0.0
    %1755 = vmatpush1.msra.mxu0 0.0
    %1756 = vmatprep.subr.mxu0 0.0
    %1757 = vmatpush1.msra.mxu0 0.0
    %1758 = vmatprep.subr.mxu0 0.0
    %1759 = vmatpush1.msra.mxu0 0.0
    %1760 = vmatprep.subr.mxu0 0.0
    %1761 = vmatpush1.msra.mxu0 0.0
    %1762 = vmatprep.subr.mxu0 0.0
    %1763 = vmatpush1.msra.mxu0 0.0
    %1764 = vmatprep.subr.mxu0 0.0
    %1765 = vmatpush1.msra.mxu0 0.0
    %1766 = vmatprep.subr.mxu0 0.0
    %1767 = vmatpush1.msra.mxu0 0.0
    %1768 = vmatprep.subr.mxu0 0.0
    %1769 = vmatpush1.msra.mxu0 0.0
    %1770 = vmatprep.subr.mxu0 0.0
    %1771 = vmatpush1.msra.mxu0 0.0
    %1772 = vmatprep.subr.mxu0 0.0
    %1773 = vmatpush1.msra.mxu0 0.0
    %1774 = vmatprep.subr.mxu0 0.0
    %1775 = vmatpush1.msra.mxu0 0.0
    %1776 = vmatprep.subr.mxu0 0.0
    %1777 = vmatpush1.msra.mxu0 0.0
    %1778 = vmatprep.subr.mxu0 0.0
    %1779 = vmatpush1.msra.mxu0 0.0
    %1780 = vmatprep.subr.mxu0 0.0
    %1781 = vmatpush1.msra.mxu0 0.0
    %1782 = vmatprep.subr.mxu0 0.0
    %1783 = vmatpush1.msra.mxu0 0.0
    %1784 = vmatprep.subr.mxu0 0.0
    %1785 = vmatpush1.msra.mxu0 0.0
    %1786 = vmatprep.subr.mxu0 0.0
    %1787 = vmatpush1.msra.mxu0 0.0
    %1788 = vmatprep.subr.mxu0 0.0
    %1789 = vmatpush1.msra.mxu0 0.0
    %1790 = vmatprep.subr.mxu0 0.0
    %1791 = vmatpush1.msra.mxu0 0.0
    %1792 = vmatprep.subr.mxu0 0.0
    %1793 = vmatpush1.msra.mxu0 0.0
    %1794 = vmatprep.subr.mxu0 0.0
    %1795 = vmatpush1.msra.mxu0 0.0
    %1796 = vmatprep.mubr.f32.mxu0 0.0
    %1797 = vmatmul.mubr.f32.gmra.mrb[0].mxu0 %v1718
    %v1798 = vpop.f32.mrb[0].mxu0
    %v1799 = vadd.f32 0.0, %v1798
    %v1800 = vpop.f32.mrb[0].mxu0
    %1801 = vmatprep.mubr.f32.mxu0 0.0
    %1802 = vmatmul.mubr.f32.gmra.mrb[0].mxu0 %v1721
    %v1803 = vpop.f32.mrb[0].mxu0
    %v1804 = vadd.f32 0.0, %v1803
    %v1805 = vpop.f32.mrb[0].mxu0
    %1806 = vmatprep.mubr.f32.mxu0 0.0
    %1807 = vmatmul.mubr.f32.gmra.mrb[0].mxu0 %v1724
    %v1808 = vpop.f32.mrb[0].mxu0
    %v1809 = vadd.f32 0.0, %v1808
    %v1810 = vpop.f32.mrb[0].mxu0
    %1811 = vmatprep.mubr.f32.mxu0 0.0
    %1812 = vmatmul.mubr.f32.gmra.mrb[0].mxu0 %v1727
    %v1813 = vpop.f32.mrb[0].mxu0
    %v1814 = vadd.f32 0.0, %v1813
    %v1815 = vpop.f32.mrb[0].mxu0
    %1816 = vmatprep.mubr.f32.mxu0 0.0
    %1817 = vmatmul.mubr.f32.gmra.mrb[0].mxu0 %v1730
    %v1818 = vpop.f32.mrb[0].mxu0
    %v1819 = vadd.f32 0.0, %v1818
    %v1820 = vpop.f32.mrb[0].mxu0
    %1821 = vdwg.mxu0
    %v1822 = vadd.f32 %v161, %v1799
    %v1823 = vadd.f32 %v166, %v1804
    %v1824 = vadd.f32 %v171, %v1809
    %v1825 = vadd.f32 %v176, %v1814
    %v1826 = vadd.f32 %v181, %v1819
    %v1827 = vlaneseq
    %v1828 = vshrl.u32 %v1827, 7
    %v1829 = vsub.s32 0, %v1828
    %v1830 = vrot.slane %v205, %v1829
    %v1831 = vadd.f32 %v1822, %v1830
    %v1832 = vadd.f32 %v1823, %v1830
    %v1833 = vadd.f32 %v1824, %v1830
    %v1834 = vadd.f32 %v1825, %v1830
    %v1835 = vadd.f32 %v1826, %v1830
    %v1836 = vsel %vm212, %v1831, 0.0
    %1837 = vadd.xlane.f32.xlu0 %v1836
    %v1838 = vpop.xlane.xlu0 %1837
    %v1839 = vsel %vm212, %v1832, 0.0
    %1840 = vadd.xlane.f32.xlu0 %v1839
    %v1841 = vpop.xlane.xlu0 %1840
    %v1842 = vsel %vm212, %v1833, 0.0
    %1843 = vadd.xlane.f32.xlu0 %v1842
    %v1844 = vpop.xlane.xlu0 %1843
    %v1845 = vsel %vm212, %v1834, 0.0
    %1846 = vadd.xlane.f32.xlu0 %v1845
    %v1847 = vpop.xlane.xlu0 %1846
    %v1848 = vsel %vm225, %v1835, 0.0
    %1849 = vadd.xlane.f32.xlu0 %v1848
    %v1850 = vpop.xlane.xlu0 %1849
    %v1851 = vmul.f32 %v1838, %v229
    %v1852 = vmul.f32 %v1841, %v229
    %v1853 = vmul.f32 %v1844, %v229
    %v1854 = vmul.f32 %v1847, %v229
    %v1855 = vmul.f32 %v1850, %v229
    %v1856 = vmul.f32 %v1831, %v1831
    %v1857 = vmul.f32 %v1832, %v1832
    %v1858 = vmul.f32 %v1833, %v1833
    %v1859 = vmul.f32 %v1834, %v1834
    %v1860 = vmul.f32 %v1835, %v1835
    %v1861 = vsel %vm212, %v1856, 0.0
    %1862 = vadd.xlane.f32.xlu0 %v1861
    %v1863 = vpop.xlane.xlu0 %1862
    %v1864 = vsel %vm212, %v1857, 0.0
    %1865 = vadd.xlane.f32.xlu0 %v1864
    %v1866 = vpop.xlane.xlu0 %1865
    %v1867 = vsel %vm212, %v1858, 0.0
    %1868 = vadd.xlane.f32.xlu0 %v1867
    %v1869 = vpop.xlane.xlu0 %1868
    %v1870 = vsel %vm212, %v1859, 0.0
    %1871 = vadd.xlane.f32.xlu0 %v1870
    %v1872 = vpop.xlane.xlu0 %1871
    %v1873 = vsel %vm225, %v1860, 0.0
    %1874 = vadd.xlane.f32.xlu0 %v1873
    %v1875 = vpop.xlane.xlu0 %1874
    %v1876 = vmul.f32 %v1863, %v229
    %v1877 = vmul.f32 %v1866, %v229
    %v1878 = vmul.f32 %v1869, %v229
    %v1879 = vmul.f32 %v1872, %v229
    %v1880 = vmul.f32 %v1875, %v229
    %v1881 = vmul.f32 %v1851, %v1851
    %v1882 = vmul.f32 %v1852, %v1852
    %v1883 = vmul.f32 %v1853, %v1853
    %v1884 = vmul.f32 %v1854, %v1854
    %v1885 = vmul.f32 %v1855, %v1855
    %v1886 = vsub.f32 %v1876, %v1881
    %v1887 = vsub.f32 %v1877, %v1882
    %v1888 = vsub.f32 %v1878, %v1883
    %v1889 = vsub.f32 %v1879, %v1884
    %v1890 = vsub.f32 %v1880, %v1885
    %v1891 = vsub.f32 %v1831, %v1851
    %v1892 = vsub.f32 %v1832, %v1852
    %v1893 = vsub.f32 %v1833, %v1853
    %v1894 = vsub.f32 %v1834, %v1854
    %v1895 = vsub.f32 %v1835, %v1855
    %v1896 = vadd.f32 %v1886, 1e-06
    %v1897 = vadd.f32 %v1887, 1e-06
    %v1898 = vadd.f32 %v1888, 1e-06
    %v1899 = vadd.f32 %v1889, 1e-06
    %v1900 = vadd.f32 %v1890, 1e-06
    %v1901 = vrsqrt.pop %v1896
    %v1902 = vrsqrt.pop %v1897
    %v1903 = vrsqrt.pop %v1898
    %v1904 = vrsqrt.pop %v1899
    %v1905 = vrsqrt.pop %v1900
    %v1906 = vmul.f32 %v1891, %v1901
    %v1907 = vmul.f32 %v1892, %v1902
    %v1908 = vmul.f32 %v1893, %v1903
    %v1909 = vmul.f32 %v1894, %v1904
    %v1910 = vmul.f32 %v1895, %v1905
    %v1911 = vlaneseq
    %v1912 = vshrl.u32 %v1911, 7
    %v1913 = vsub.s32 0, %v1912
    %v1914 = vrot.slane %v210, %v1913
    %v1915 = vmul.f32 %v1906, %v1914
    %v1916 = vmul.f32 %v1907, %v1914
    %v1917 = vmul.f32 %v1908, %v1914
    %v1918 = vmul.f32 %v1909, %v1914
    %v1919 = vmul.f32 %v1910, %v1914
    %v1920 = vlaneseq
    %v1921 = vshrl.u32 %v1920, 7
    %v1922 = vsub.s32 0, %v1921
    %v1923 = vrot.slane %v211, %v1922
    %v1924 = vadd.f32 %v1915, %v1923
    %v1925 = vadd.f32 %v1916, %v1923
    %v1926 = vadd.f32 %v1917, %v1923
    %v1927 = vadd.f32 %v1918, %v1923
    %v1928 = vadd.f32 %v1919, %v1923
    %v1929 = vlaneseq
    %v1930 = vshrl.u32 %v1929, 7
    %v1931 = vsub.s32 0, %v1930
    %v1932 = vrot.slane %v206, %v1931
    %v1934 = vsel %vm212, %v1924, 0
    %v1937 = vsel %vm212, %v1925, 0
    %v1940 = vsel %vm212, %v1926, 0
    %v1943 = vsel %vm212, %v1927, 0
    %v1946 = vsel %vm212, %v1928, 0
    %1948 = vmatprep.subr.mxu0 0.0
    %1949 = vmatpush1.msra.mxu0 %v192
    %1950 = vmatprep.subr.mxu0 0.0
    %1951 = vmatpush1.msra.mxu0 %v193
    %1952 = vmatprep.subr.mxu0 0.0
    %1953 = vmatpush1.msra.mxu0 %v194
    %1954 = vmatprep.subr.mxu0 0.0
    %1955 = vmatpush1.msra.mxu0 %v195
    %1956 = vmatprep.subr.mxu0 0.0
    %1957 = vmatpush1.msra.mxu0 0.0
    %1958 = vmatprep.subr.mxu0 0.0
    %1959 = vmatpush1.msra.mxu0 0.0
    %1960 = vmatprep.subr.mxu0 0.0
    %1961 = vmatpush1.msra.mxu0 0.0
    %1962 = vmatprep.subr.mxu0 0.0
    %1963 = vmatpush1.msra.mxu0 0.0
    %1964 = vmatprep.subr.mxu0 0.0
    %1965 = vmatpush1.msra.mxu0 0.0
    %1966 = vmatprep.subr.mxu0 0.0
    %1967 = vmatpush1.msra.mxu0 0.0
    %1968 = vmatprep.subr.mxu0 0.0
    %1969 = vmatpush1.msra.mxu0 0.0
    %1970 = vmatprep.subr.mxu0 0.0
    %1971 = vmatpush1.msra.mxu0 0.0
    %1972 = vmatprep.subr.mxu0 0.0
    %1973 = vmatpush1.msra.mxu0 0.0
    %1974 = vmatprep.subr.mxu0 0.0
    %1975 = vmatpush1.msra.mxu0 0.0
    %1976 = vmatprep.subr.mxu0 0.0
    %1977 = vmatpush1.msra.mxu0 0.0
    %1978 = vmatprep.subr.mxu0 0.0
    %1979 = vmatpush1.msra.mxu0 0.0
    %1980 = vmatprep.subr.mxu0 0.0
    %1981 = vmatpush1.msra.mxu0 0.0
    %1982 = vmatprep.subr.mxu0 0.0
    %1983 = vmatpush1.msra.mxu0 0.0
    %1984 = vmatprep.subr.mxu0 0.0
    %1985 = vmatpush1.msra.mxu0 0.0
    %1986 = vmatprep.subr.mxu0 0.0
    %1987 = vmatpush1.msra.mxu0 0.0
    %1988 = vmatprep.subr.mxu0 0.0
    %1989 = vmatpush1.msra.mxu0 0.0
    %1990 = vmatprep.subr.mxu0 0.0
    %1991 = vmatpush1.msra.mxu0 0.0
    %1992 = vmatprep.subr.mxu0 0.0
    %1993 = vmatpush1.msra.mxu0 0.0
    %1994 = vmatprep.subr.mxu0 0.0
    %1995 = vmatpush1.msra.mxu0 0.0
    %1996 = vmatprep.subr.mxu0 0.0
    %1997 = vmatpush1.msra.mxu0 0.0
    %1998 = vmatprep.subr.mxu0 0.0
    %1999 = vmatpush1.msra.mxu0 0.0
    %2000 = vmatprep.subr.mxu0 0.0
    %2001 = vmatpush1.msra.mxu0 0.0
    %2002 = vmatprep.subr.mxu0 0.0
    %2003 = vmatpush1.msra.mxu0 0.0
    %2004 = vmatprep.subr.mxu0 0.0
    %2005 = vmatpush1.msra.mxu0 0.0
    %2006 = vmatprep.subr.mxu0 0.0
    %2007 = vmatpush1.msra.mxu0 0.0
    %2008 = vmatprep.subr.mxu0 0.0
    %2009 = vmatpush1.msra.mxu0 0.0
    %2010 = vmatprep.subr.mxu0 0.0
    %2011 = vmatpush1.msra.mxu0 0.0
    %2012 = vmatprep.mubr.f32.mxu0 0.0
    %2013 = vmatmul.mubr.f32.gmra.mrb[0].mxu0 %v1934
    %v2014 = vpop.f32.mrb[0].mxu0
    %v2015 = vadd.f32 %v1932, %v2014
    %v2016 = vpop.f32.mrb[0].mxu0
    %2017 = vmatprep.mubr.f32.mxu0 0.0
    %2018 = vmatmul.mubr.f32.gmra.mrb[0].mxu0 %v1937
    %v2019 = vpop.f32.mrb[0].mxu0
    %v2020 = vadd.f32 %v1932, %v2019
    %v2021 = vpop.f32.mrb[0].mxu0
    %2022 = vmatprep.mubr.f32.mxu0 0.0
    %2023 = vmatmul.mubr.f32.gmra.mrb[0].mxu0 %v1940
    %v2024 = vpop.f32.mrb[0].mxu0
    %v2025 = vadd.f32 %v1932, %v2024
    %v2026 = vpop.f32.mrb[0].mxu0
    %2027 = vmatprep.mubr.f32.mxu0 0.0
    %2028 = vmatmul.mubr.f32.gmra.mrb[0].mxu0 %v1943
    %v2029 = vpop.f32.mrb[0].mxu0
    %v2030 = vadd.f32 %v1932, %v2029
    %v2031 = vpop.f32.mrb[0].mxu0
    %2032 = vmatprep.mubr.f32.mxu0 0.0
    %2033 = vmatmul.mubr.f32.gmra.mrb[0].mxu0 %v1946
    %v2034 = vpop.f32.mrb[0].mxu0
    %v2035 = vadd.f32 %v1932, %v2034
    %v2036 = vpop.f32.mrb[0].mxu0
    %2037 = vdwg.mxu0
    %v2038 = vmul.f32 %v2015, 0.5
    %v2039 = vmul.f32 %v2020, 0.5
    %v2040 = vmul.f32 %v2025, 0.5
    %v2041 = vmul.f32 %v2030, 0.5
    %v2042 = vmul.f32 %v2035, 0.5
    %v2043 = vmul.f32 %v2015, %v2015
    %v2044 = vmul.f32 %v2020, %v2020
    %v2045 = vmul.f32 %v2025, %v2025
    %v2046 = vmul.f32 %v2030, %v2030
    %v2047 = vmul.f32 %v2035, %v2035
    %v2048 = vmul.f32 %v2043, %v2015
    %v2049 = vmul.f32 %v2044, %v2020
    %v2050 = vmul.f32 %v2045, %v2025
    %v2051 = vmul.f32 %v2046, %v2030
    %v2052 = vmul.f32 %v2047, %v2035
    %v2053 = vmul.f32 %v2048, 0.044715
    %v2054 = vmul.f32 %v2049, 0.044715
    %v2055 = vmul.f32 %v2050, 0.044715
    %v2056 = vmul.f32 %v2051, 0.044715
    %v2057 = vmul.f32 %v2052, 0.044715
    %v2058 = vadd.f32 %v2015, %v2053
    %v2059 = vadd.f32 %v2020, %v2054
    %v2060 = vadd.f32 %v2025, %v2055
    %v2061 = vadd.f32 %v2030, %v2056
    %v2062 = vadd.f32 %v2035, %v2057
    %v2063 = vmul.f32 %v2058, 0.7978846
    %v2064 = vmul.f32 %v2059, 0.7978846
    %v2065 = vmul.f32 %v2060, 0.7978846
    %v2066 = vmul.f32 %v2061, 0.7978846
    %v2067 = vmul.f32 %v2062, 0.7978846
    %v2068 = vtanh.pop %v2063
    %v2069 = vtanh.pop %v2064
    %v2070 = vtanh.pop %v2065
    %v2071 = vtanh.pop %v2066
    %v2072 = vtanh.pop %v2067
    %v2073 = vadd.f32 %v2068, 1.0
    %v2074 = vadd.f32 %v2069, 1.0
    %v2075 = vadd.f32 %v2070, 1.0
    %v2076 = vadd.f32 %v2071, 1.0
    %v2077 = vadd.f32 %v2072, 1.0
    %v2078 = vmul.f32 %v2038, %v2073
    %v2079 = vmul.f32 %v2039, %v2074
    %v2080 = vmul.f32 %v2040, %v2075
    %v2081 = vmul.f32 %v2041, %v2076
    %v2082 = vmul.f32 %v2042, %v2077
    %vm2083 = vcmask 523264
    %v2085 = vsel %vm2083, %v2078, 0
    %v2088 = vsel %vm2083, %v2079, 0
    %v2091 = vsel %vm2083, %v2080, 0
    %v2094 = vsel %vm2083, %v2081, 0
    %v2097 = vsel %vm2083, %v2082, 0
    %2099 = vmatprep.subr.mxu0 0.0
    %2100 = vmatpush1.msra.mxu0 %v196
    %2101 = vmatprep.subr.mxu0 0.0
    %2102 = vmatpush1.msra.mxu0 %v197
    %2103 = vmatprep.subr.mxu0 0.0
    %2104 = vmatpush1.msra.mxu0 %v198
    %2105 = vmatprep.subr.mxu0 0.0
    %2106 = vmatpush1.msra.mxu0 %v199
    %2107 = vmatprep.subr.mxu0 0.0
    %2108 = vmatpush1.msra.mxu0 %v200
    %2109 = vmatprep.subr.mxu0 0.0
    %2110 = vmatpush1.msra.mxu0 %v201
    %2111 = vmatprep.subr.mxu0 0.0
    %2112 = vmatpush1.msra.mxu0 %v202
    %2113 = vmatprep.subr.mxu0 0.0
    %2114 = vmatpush1.msra.mxu0 %v203
    %2115 = vmatprep.subr.mxu0 0.0
    %2116 = vmatpush1.msra.mxu0 0.0
    %2117 = vmatprep.subr.mxu0 0.0
    %2118 = vmatpush1.msra.mxu0 0.0
    %2119 = vmatprep.subr.mxu0 0.0
    %2120 = vmatpush1.msra.mxu0 0.0
    %2121 = vmatprep.subr.mxu0 0.0
    %2122 = vmatpush1.msra.mxu0 0.0
    %2123 = vmatprep.subr.mxu0 0.0
    %2124 = vmatpush1.msra.mxu0 0.0
    %2125 = vmatprep.subr.mxu0 0.0
    %2126 = vmatpush1.msra.mxu0 0.0
    %2127 = vmatprep.subr.mxu0 0.0
    %2128 = vmatpush1.msra.mxu0 0.0
    %2129 = vmatprep.subr.mxu0 0.0
    %2130 = vmatpush1.msra.mxu0 0.0
    %2131 = vmatprep.subr.mxu0 0.0
    %2132 = vmatpush1.msra.mxu0 0.0
    %2133 = vmatprep.subr.mxu0 0.0
    %2134 = vmatpush1.msra.mxu0 0.0
    %2135 = vmatprep.subr.mxu0 0.0
    %2136 = vmatpush1.msra.mxu0 0.0
    %2137 = vmatprep.subr.mxu0 0.0
    %2138 = vmatpush1.msra.mxu0 0.0
    %2139 = vmatprep.subr.mxu0 0.0
    %2140 = vmatpush1.msra.mxu0 0.0
    %2141 = vmatprep.subr.mxu0 0.0
    %2142 = vmatpush1.msra.mxu0 0.0
    %2143 = vmatprep.subr.mxu0 0.0
    %2144 = vmatpush1.msra.mxu0 0.0
    %2145 = vmatprep.subr.mxu0 0.0
    %2146 = vmatpush1.msra.mxu0 0.0
    %2147 = vmatprep.subr.mxu0 0.0
    %2148 = vmatpush1.msra.mxu0 0.0
    %2149 = vmatprep.subr.mxu0 0.0
    %2150 = vmatpush1.msra.mxu0 0.0
    %2151 = vmatprep.subr.mxu0 0.0
    %2152 = vmatpush1.msra.mxu0 0.0
    %2153 = vmatprep.subr.mxu0 0.0
    %2154 = vmatpush1.msra.mxu0 0.0
    %2155 = vmatprep.subr.mxu0 0.0
    %2156 = vmatpush1.msra.mxu0 0.0
    %2157 = vmatprep.subr.mxu0 0.0
    %2158 = vmatpush1.msra.mxu0 0.0
    %2159 = vmatprep.subr.mxu0 0.0
    %2160 = vmatpush1.msra.mxu0 0.0
    %2161 = vmatprep.subr.mxu0 0.0
    %2162 = vmatpush1.msra.mxu0 0.0
    %2163 = vmatprep.mubr.f32.mxu0 0.0
    %2164 = vmatmul.mubr.f32.gmra.mrb[0].mxu0 %v2085
    %v2165 = vpop.f32.mrb[0].mxu0
    %v2166 = vadd.f32 0.0, %v2165
    %v2167 = vpop.f32.mrb[0].mxu0
    %2168 = vmatprep.mubr.f32.mxu0 0.0
    %2169 = vmatmul.mubr.f32.gmra.mrb[0].mxu0 %v2088
    %v2170 = vpop.f32.mrb[0].mxu0
    %v2171 = vadd.f32 0.0, %v2170
    %v2172 = vpop.f32.mrb[0].mxu0
    %2173 = vmatprep.mubr.f32.mxu0 0.0
    %2174 = vmatmul.mubr.f32.gmra.mrb[0].mxu0 %v2091
    %v2175 = vpop.f32.mrb[0].mxu0
    %v2176 = vadd.f32 0.0, %v2175
    %v2177 = vpop.f32.mrb[0].mxu0
    %2178 = vmatprep.mubr.f32.mxu0 0.0
    %2179 = vmatmul.mubr.f32.gmra.mrb[0].mxu0 %v2094
    %v2180 = vpop.f32.mrb[0].mxu0
    %v2181 = vadd.f32 0.0, %v2180
    %v2182 = vpop.f32.mrb[0].mxu0
    %2183 = vmatprep.mubr.f32.mxu0 0.0
    %2184 = vmatmul.mubr.f32.gmra.mrb[0].mxu0 %v2097
    %v2185 = vpop.f32.mrb[0].mxu0
    %v2186 = vadd.f32 0.0, %v2185
    %v2187 = vpop.f32.mrb[0].mxu0
    %2188 = vdwg.mxu0
    %v2189 = vadd.f32 %v1831, %v2166
    %v2190 = vadd.f32 %v1832, %v2171
    %v2191 = vadd.f32 %v1833, %v2176
    %v2192 = vadd.f32 %v1834, %v2181
    %v2193 = vadd.f32 %v1835, %v2186
    %v2194 = vlaneseq
    %v2195 = vshrl.u32 %v2194, 7
    %v2196 = vsub.s32 0, %v2195
    %v2197 = vrot.slane %v207, %v2196
    %v2198 = vadd.f32 %v2189, %v2197
    %v2199 = vadd.f32 %v2190, %v2197
    %v2200 = vadd.f32 %v2191, %v2197
    %v2201 = vadd.f32 %v2192, %v2197
    %v2202 = vadd.f32 %v2193, %v2197
    %s2203 = scalar_lea.vmem [#allocation4], 160
    %v2204 = vld [vmem:[%s2203] sm:$0xff]
    %v2205 = vld [vmem:[%s2203 + $0x8] sm:$0xff]
    %v2206 = vld [vmem:[%s2203 + $0x10] sm:$0xff]
    %v2207 = vld [vmem:[%s2203 + $0x18] sm:$0xff]
    %v2208 = vld [vmem:[%s2203 + $0x20] sm:$0xff]
    %v2209 = vld [vmem:[%s2203 + $0x28] sm:$0xff]
    %v2210 = vld [vmem:[%s2203 + $0x30] sm:$0xff]
    %v2211 = vld [vmem:[%s2203 + $0x38] sm:$0xff]
    %v2212 = vld [vmem:[%s2203 + $0x40] sm:$0xff]
    %v2213 = vld [vmem:[%s2203 + $0x48] sm:$0xff]
    %v2214 = vld [vmem:[%s2203 + $0x50] sm:$0xff]
    %v2215 = vld [vmem:[%s2203 + $0x58] sm:$0xff]
    %v2216 = vld [vmem:[%s2203 + $0x60] sm:$0xff]
    %v2217 = vld [vmem:[%s2203 + $0x68] sm:$0xff]
    %v2218 = vld [vmem:[%s2203 + $0x70] sm:$0xff]
    %v2219 = vld [vmem:[%s2203 + $0x78] sm:$0xff]
    %v2220 = vld [vmem:[%s2203 + $0x80] sm:$0xff]
    %v2221 = vld [vmem:[%s2203 + $0x88] sm:$0xff]
    %v2222 = vld [vmem:[%s2203 + $0x90] sm:$0xff]
    %v2223 = vld [vmem:[%s2203 + $0x98] sm:$0xff]
    %s2224 = scalar_lea.vmem [#allocation6], 8
    %v2225 = vld [vmem:[%s2224] sm:$0x1]
    %v2226 = vld [vmem:[%s2224 + $0x1] sm:$0x1]
    %v2227 = vld [vmem:[%s2224 + $0x2] sm:$0x1]
    %v2228 = vld [vmem:[%s2224 + $0x3] sm:$0x1]
    %v2229 = vld [vmem:[%s2224 + $0x4] sm:$0x1]
    %v2230 = vld [vmem:[%s2224 + $0x5] sm:$0x1]
    %v2231 = vld [vmem:[%s2224 + $0x6] sm:$0x1]
    %v2232 = vld [vmem:[%s2224 + $0x7] sm:$0x1]
    %v2233 = vsel %vm212, %v2198, 0.0
    %2234 = vadd.xlane.f32.xlu0 %v2233
    %v2235 = vpop.xlane.xlu0 %2234
    %v2236 = vsel %vm212, %v2199, 0.0
    %2237 = vadd.xlane.f32.xlu0 %v2236
    %v2238 = vpop.xlane.xlu0 %2237
    %v2239 = vsel %vm212, %v2200, 0.0
    %2240 = vadd.xlane.f32.xlu0 %v2239
    %v2241 = vpop.xlane.xlu0 %2240
    %v2242 = vsel %vm212, %v2201, 0.0
    %2243 = vadd.xlane.f32.xlu0 %v2242
    %v2244 = vpop.xlane.xlu0 %2243
    %v2245 = vsel %vm225, %v2202, 0.0
    %2246 = vadd.xlane.f32.xlu0 %v2245
    %v2247 = vpop.xlane.xlu0 %2246
    %v2248 = vmul.f32 %v2235, %v229
    %v2249 = vmul.f32 %v2238, %v229
    %v2250 = vmul.f32 %v2241, %v229
    %v2251 = vmul.f32 %v2244, %v229
    %v2252 = vmul.f32 %v2247, %v229
    %v2253 = vmul.f32 %v2198, %v2198
    %v2254 = vmul.f32 %v2199, %v2199
    %v2255 = vmul.f32 %v2200, %v2200
    %v2256 = vmul.f32 %v2201, %v2201
    %v2257 = vmul.f32 %v2202, %v2202
    %v2258 = vsel %vm212, %v2253, 0.0
    %2259 = vadd.xlane.f32.xlu0 %v2258
    %v2260 = vpop.xlane.xlu0 %2259
    %v2261 = vsel %vm212, %v2254, 0.0
    %2262 = vadd.xlane.f32.xlu0 %v2261
    %v2263 = vpop.xlane.xlu0 %2262
    %v2264 = vsel %vm212, %v2255, 0.0
    %2265 = vadd.xlane.f32.xlu0 %v2264
    %v2266 = vpop.xlane.xlu0 %2265
    %v2267 = vsel %vm212, %v2256, 0.0
    %2268 = vadd.xlane.f32.xlu0 %v2267
    %v2269 = vpop.xlane.xlu0 %2268
    %v2270 = vsel %vm225, %v2257, 0.0
    %2271 = vadd.xlane.f32.xlu0 %v2270
    %v2272 = vpop.xlane.xlu0 %2271
    %v2273 = vmul.f32 %v2260, %v229
    %v2274 = vmul.f32 %v2263, %v229
    %v2275 = vmul.f32 %v2266, %v229
    %v2276 = vmul.f32 %v2269, %v229
    %v2277 = vmul.f32 %v2272, %v229
    %v2278 = vmul.f32 %v2248, %v2248
    %v2279 = vmul.f32 %v2249, %v2249
    %v2280 = vmul.f32 %v2250, %v2250
    %v2281 = vmul.f32 %v2251, %v2251
    %v2282 = vmul.f32 %v2252, %v2252
    %v2283 = vsub.f32 %v2273, %v2278
    %v2284 = vsub.f32 %v2274, %v2279
    %v2285 = vsub.f32 %v2275, %v2280
    %v2286 = vsub.f32 %v2276, %v2281
    %v2287 = vsub.f32 %v2277, %v2282
    %v2288 = vsub.f32 %v2198, %v2248
    %v2289 = vsub.f32 %v2199, %v2249
    %v2290 = vsub.f32 %v2200, %v2250
    %v2291 = vsub.f32 %v2201, %v2251
    %v2292 = vsub.f32 %v2202, %v2252
    %v2293 = vadd.f32 %v2283, 1e-06
    %v2294 = vadd.f32 %v2284, 1e-06
    %v2295 = vadd.f32 %v2285, 1e-06
    %v2296 = vadd.f32 %v2286, 1e-06
    %v2297 = vadd.f32 %v2287, 1e-06
    %v2298 = vrsqrt.pop %v2293
    %v2299 = vrsqrt.pop %v2294
    %v2300 = vrsqrt.pop %v2295
    %v2301 = vrsqrt.pop %v2296
    %v2302 = vrsqrt.pop %v2297
    %v2303 = vmul.f32 %v2288, %v2298
    %v2304 = vmul.f32 %v2289, %v2299
    %v2305 = vmul.f32 %v2290, %v2300
    %v2306 = vmul.f32 %v2291, %v2301
    %v2307 = vmul.f32 %v2292, %v2302
    %v2308 = vlaneseq
    %v2309 = vshrl.u32 %v2308, 7
    %v2310 = vsub.s32 0, %v2309
    %v2311 = vrot.slane %v2229, %v2310
    %v2312 = vmul.f32 %v2303, %v2311
    %v2313 = vmul.f32 %v2304, %v2311
    %v2314 = vmul.f32 %v2305, %v2311
    %v2315 = vmul.f32 %v2306, %v2311
    %v2316 = vmul.f32 %v2307, %v2311
    %v2317 = vlaneseq
    %v2318 = vshrl.u32 %v2317, 7
    %v2319 = vsub.s32 0, %v2318
    %v2320 = vrot.slane %v2230, %v2319
    %v2321 = vadd.f32 %v2312, %v2320
    %v2322 = vadd.f32 %v2313, %v2320
    %v2323 = vadd.f32 %v2314, %v2320
    %v2324 = vadd.f32 %v2315, %v2320
    %v2325 = vadd.f32 %v2316, %v2320
    %v2326 = vlaneseq
    %v2327 = vshrl.u32 %v2326, 7
    %v2328 = vsub.s32 0, %v2327
    %v2329 = vrot.slane %v2225, %v2328
    %v2331 = vsel %vm212, %v2321, 0
    %v2334 = vsel %vm212, %v2322, 0
    %v2337 = vsel %vm212, %v2323, 0
    %v2340 = vsel %vm212, %v2324, 0
    %v2343 = vsel %vm212, %v2325, 0
    %2345 = vmatprep.subr.mxu0 0.0
    %2346 = vmatpush1.msra.mxu0 %v2204
    %2347 = vmatprep.subr.mxu0 0.0
    %2348 = vmatpush1.msra.mxu0 %v2205
    %2349 = vmatprep.subr.mxu0 0.0
    %2350 = vmatpush1.msra.mxu0 %v2206
    %2351 = vmatprep.subr.mxu0 0.0
    %2352 = vmatpush1.msra.mxu0 %v2207
    %2353 = vmatprep.subr.mxu0 0.0
    %2354 = vmatpush1.msra.mxu0 0.0
    %2355 = vmatprep.subr.mxu0 0.0
    %2356 = vmatpush1.msra.mxu0 0.0
    %2357 = vmatprep.subr.mxu0 0.0
    %2358 = vmatpush1.msra.mxu0 0.0
    %2359 = vmatprep.subr.mxu0 0.0
    %2360 = vmatpush1.msra.mxu0 0.0
    %2361 = vmatprep.subr.mxu0 0.0
    %2362 = vmatpush1.msra.mxu0 0.0
    %2363 = vmatprep.subr.mxu0 0.0
    %2364 = vmatpush1.msra.mxu0 0.0
    %2365 = vmatprep.subr.mxu0 0.0
    %2366 = vmatpush1.msra.mxu0 0.0
    %2367 = vmatprep.subr.mxu0 0.0
    %2368 = vmatpush1.msra.mxu0 0.0
    %2369 = vmatprep.subr.mxu0 0.0
    %2370 = vmatpush1.msra.mxu0 0.0
    %2371 = vmatprep.subr.mxu0 0.0
    %2372 = vmatpush1.msra.mxu0 0.0
    %2373 = vmatprep.subr.mxu0 0.0
    %2374 = vmatpush1.msra.mxu0 0.0
    %2375 = vmatprep.subr.mxu0 0.0
    %2376 = vmatpush1.msra.mxu0 0.0
    %2377 = vmatprep.subr.mxu0 0.0
    %2378 = vmatpush1.msra.mxu0 0.0
    %2379 = vmatprep.subr.mxu0 0.0
    %2380 = vmatpush1.msra.mxu0 0.0
    %2381 = vmatprep.subr.mxu0 0.0
    %2382 = vmatpush1.msra.mxu0 0.0
    %2383 = vmatprep.subr.mxu0 0.0
    %2384 = vmatpush1.msra.mxu0 0.0
    %2385 = vmatprep.subr.mxu0 0.0
    %2386 = vmatpush1.msra.mxu0 0.0
    %2387 = vmatprep.subr.mxu0 0.0
    %2388 = vmatpush1.msra.mxu0 0.0
    %2389 = vmatprep.subr.mxu0 0.0
    %2390 = vmatpush1.msra.mxu0 0.0
    %2391 = vmatprep.subr.mxu0 0.0
    %2392 = vmatpush1.msra.mxu0 0.0
    %2393 = vmatprep.subr.mxu0 0.0
    %2394 = vmatpush1.msra.mxu0 0.0
    %2395 = vmatprep.subr.mxu0 0.0
    %2396 = vmatpush1.msra.mxu0 0.0
    %2397 = vmatprep.subr.mxu0 0.0
    %2398 = vmatpush1.msra.mxu0 0.0
    %2399 = vmatprep.subr.mxu0 0.0
    %2400 = vmatpush1.msra.mxu0 0.0
    %2401 = vmatprep.subr.mxu0 0.0
    %2402 = vmatpush1.msra.mxu0 0.0
    %2403 = vmatprep.subr.mxu0 0.0
    %2404 = vmatpush1.msra.mxu0 0.0
    %2405 = vmatprep.subr.mxu0 0.0
    %2406 = vmatpush1.msra.mxu0 0.0
    %2407 = vmatprep.subr.mxu0 0.0
    %2408 = vmatpush1.msra.mxu0 0.0
    %2409 = vmatprep.mubr.f32.mxu0 0.0
    %2410 = vmatmul.mubr.f32.gmra.mrb[0].mxu0 %v2331
    %v2411 = vpop.f32.mrb[0].mxu0
    %v2412 = vadd.f32 %v2329, %v2411
    %v2413 = vpop.f32.mrb[0].mxu0
    %2414 = vmatprep.mubr.f32.mxu0 0.0
    %2415 = vmatmul.mubr.f32.gmra.mrb[0].mxu0 %v2334
    %v2416 = vpop.f32.mrb[0].mxu0
    %v2417 = vadd.f32 %v2329, %v2416
    %v2418 = vpop.f32.mrb[0].mxu0
    %2419 = vmatprep.mubr.f32.mxu0 0.0
    %2420 = vmatmul.mubr.f32.gmra.mrb[0].mxu0 %v2337
    %v2421 = vpop.f32.mrb[0].mxu0
    %v2422 = vadd.f32 %v2329, %v2421
    %v2423 = vpop.f32.mrb[0].mxu0
    %2424 = vmatprep.mubr.f32.mxu0 0.0
    %2425 = vmatmul.mubr.f32.gmra.mrb[0].mxu0 %v2340
    %v2426 = vpop.f32.mrb[0].mxu0
    %v2427 = vadd.f32 %v2329, %v2426
    %v2428 = vpop.f32.mrb[0].mxu0
    %2429 = vmatprep.mubr.f32.mxu0 0.0
    %2430 = vmatmul.mubr.f32.gmra.mrb[0].mxu0 %v2343
    %v2431 = vpop.f32.mrb[0].mxu0
    %v2432 = vadd.f32 %v2329, %v2431
    %v2433 = vpop.f32.mrb[0].mxu0
    %2434 = vdwg.mxu0
    %2440 = vrot.lane.b32.xlu0 %v2412, 96
    %v2441 = vpop.permute.xlu0 %2440
    %2442 = vrot.lane.b32.xlu0 %v2417, 96
    %v2443 = vpop.permute.xlu0 %2442
    %2444 = vrot.lane.b32.xlu0 %v2422, 96
    %v2445 = vpop.permute.xlu0 %2444
    %2446 = vrot.lane.b32.xlu0 %v2427, 96
    %v2447 = vpop.permute.xlu0 %2446
    %2448 = vrot.lane.b32.xlu0 %v2432, 96
    %v2449 = vpop.permute.xlu0 %2448
    %v2450 = vsel %vm432, %v2412, 0
    %v2452 = vsel %vm432, %v2417, 0
    %v2454 = vsel %vm432, %v2422, 0
    %v2456 = vsel %vm432, %v2427, 0
    %v2458 = vsel %vm432, %v2432, 0
    %v2460 = vsel %vm432, %v2441, 0
    %v2462 = vsel %vm432, %v2443, 0
    %v2464 = vsel %vm432, %v2445, 0
    %v2466 = vsel %vm432, %v2447, 0
    %v2468 = vsel %vm432, %v2449, 0
    %2470 = vmatprep.subr.mxu0 0.0
    %2471 = vmatpush1.xpose.msra.mxu0 %v2460
    %2472 = vmatprep.subr.mxu0 0.0
    %2473 = vmatpush1.xpose.msra.mxu0 %v2462
    %2474 = vmatprep.subr.mxu0 0.0
    %2475 = vmatpush1.xpose.msra.mxu0 %v2464
    %2476 = vmatprep.subr.mxu0 0.0
    %2477 = vmatpush1.xpose.msra.mxu0 %v2466
    %2478 = vmatprep.subr.mxu0 0.0
    %2479 = vmatpush1.xpose.msra.mxu0 %v2468
    %2480 = vmatprep.subr.mxu0 0.0
    %2481 = vmatpush1.xpose.msra.mxu0 0.0
    %2482 = vmatprep.subr.mxu0 0.0
    %2483 = vmatpush1.xpose.msra.mxu0 0.0
    %2484 = vmatprep.subr.mxu0 0.0
    %2485 = vmatpush1.xpose.msra.mxu0 0.0
    %2486 = vmatprep.subr.mxu0 0.0
    %2487 = vmatpush1.xpose.msra.mxu0 0.0
    %2488 = vmatprep.subr.mxu0 0.0
    %2489 = vmatpush1.xpose.msra.mxu0 0.0
    %2490 = vmatprep.subr.mxu0 0.0
    %2491 = vmatpush1.xpose.msra.mxu0 0.0
    %2492 = vmatprep.subr.mxu0 0.0
    %2493 = vmatpush1.xpose.msra.mxu0 0.0
    %2494 = vmatprep.subr.mxu0 0.0
    %2495 = vmatpush1.xpose.msra.mxu0 0.0
    %2496 = vmatprep.subr.mxu0 0.0
    %2497 = vmatpush1.xpose.msra.mxu0 0.0
    %2498 = vmatprep.subr.mxu0 0.0
    %2499 = vmatpush1.xpose.msra.mxu0 0.0
    %2500 = vmatprep.subr.mxu0 0.0
    %2501 = vmatpush1.xpose.msra.mxu0 0.0
    %2502 = vmatprep.subr.mxu0 0.0
    %2503 = vmatpush1.xpose.msra.mxu0 0.0
    %2504 = vmatprep.subr.mxu0 0.0
    %2505 = vmatpush1.xpose.msra.mxu0 0.0
    %2506 = vmatprep.subr.mxu0 0.0
    %2507 = vmatpush1.xpose.msra.mxu0 0.0
    %2508 = vmatprep.subr.mxu0 0.0
    %2509 = vmatpush1.xpose.msra.mxu0 0.0
    %2510 = vmatprep.subr.mxu0 0.0
    %2511 = vmatpush1.xpose.msra.mxu0 0.0
    %2512 = vmatprep.subr.mxu0 0.0
    %2513 = vmatpush1.xpose.msra.mxu0 0.0
    %2514 = vmatprep.subr.mxu0 0.0
    %2515 = vmatpush1.xpose.msra.mxu0 0.0
    %2516 = vmatprep.subr.mxu0 0.0
    %2517 = vmatpush1.xpose.msra.mxu0 0.0
    %2518 = vmatprep.subr.mxu0 0.0
    %2519 = vmatpush1.xpose.msra.mxu0 0.0
    %2520 = vmatprep.subr.mxu0 0.0
    %2521 = vmatpush1.xpose.msra.mxu0 0.0
    %2522 = vmatprep.subr.mxu0 0.0
    %2523 = vmatpush1.xpose.msra.mxu0 0.0
    %2524 = vmatprep.subr.mxu0 0.0
    %2525 = vmatpush1.xpose.msra.mxu0 0.0
    %2526 = vmatprep.subr.mxu0 0.0
    %2527 = vmatpush1.xpose.msra.mxu0 0.0
    %2528 = vmatprep.subr.mxu0 0.0
    %2529 = vmatpush1.xpose.msra.mxu0 0.0
    %2530 = vmatprep.subr.mxu0 0.0
    %2531 = vmatpush1.xpose.msra.mxu0 0.0
    %2532 = vmatprep.subr.mxu0 0.0
    %2533 = vmatpush1.xpose.msra.mxu0 0.0
    %2534 = vmatprep.mubr.f32.mxu0 0.0
    %2535 = vmatmul.mubr.f32.gmra.mrb[0].mxu0 %v2450
    %v2536 = vpop.f32.mrb[0].mxu0
    %v2537 = vadd.f32 %v60, %v2536
    %v2538 = vpop.f32.mrb[0].mxu0
    %2539 = vmatprep.mubr.f32.mxu0 0.0
    %2540 = vmatmul.mubr.f32.gmra.mrb[0].mxu0 %v2452
    %v2541 = vpop.f32.mrb[0].mxu0
    %v2542 = vadd.f32 %v61, %v2541
    %v2543 = vpop.f32.mrb[0].mxu0
    %2544 = vmatprep.mubr.f32.mxu0 0.0
    %2545 = vmatmul.mubr.f32.gmra.mrb[0].mxu0 %v2454
    %v2546 = vpop.f32.mrb[0].mxu0
    %v2547 = vadd.f32 %v62, %v2546
    %v2548 = vpop.f32.mrb[0].mxu0
    %2549 = vmatprep.mubr.f32.mxu0 0.0
    %2550 = vmatmul.mubr.f32.gmra.mrb[0].mxu0 %v2456
    %v2551 = vpop.f32.mrb[0].mxu0
    %v2552 = vadd.f32 %v63, %v2551
    %v2553 = vpop.f32.mrb[0].mxu0
    %2554 = vmatprep.mubr.f32.mxu0 0.0
    %2555 = vmatmul.mubr.f32.gmra.mrb[0].mxu0 %v2458
    %v2556 = vpop.f32.mrb[0].mxu0
    %v2557 = vadd.f32 %v64, %v2556
    %v2558 = vpop.f32.mrb[0].mxu0
    %2559 = vdwg.mxu0
    %v2560 = vsel %vm543, %v2537, -inf
    %2561 = vmax.xlane.f32.xlu0 %v2560
    %v2562 = vpop.xlane.xlu0 %2561
    %v2563 = vsel %vm543, %v2542, -inf
    %2564 = vmax.xlane.f32.xlu0 %v2563
    %v2565 = vpop.xlane.xlu0 %2564
    %v2566 = vsel %vm543, %v2547, -inf
    %2567 = vmax.xlane.f32.xlu0 %v2566
    %v2568 = vpop.xlane.xlu0 %2567
    %v2569 = vsel %vm543, %v2552, -inf
    %2570 = vmax.xlane.f32.xlu0 %v2569
    %v2571 = vpop.xlane.xlu0 %2570
    %v2572 = vsel %vm556, %v2557, -inf
    %2573 = vmax.xlane.f32.xlu0 %v2572
    %v2574 = vpop.xlane.xlu0 %2573
    %v2575 = vsub.f32 %v2537, %v2562
    %v2576 = vsub.f32 %v2542, %v2565
    %v2577 = vsub.f32 %v2547, %v2568
    %v2578 = vsub.f32 %v2552, %v2571
    %v2579 = vsub.f32 %v2557, %v2574
    %v2580 = vmul.f32 %v2575, 1.442695
    %v2581 = vpow.pop %v2580
    %v2582 = vmul.f32 %v2576, 1.442695
    %v2583 = vpow.pop %v2582
    %v2584 = vmul.f32 %v2577, 1.442695
    %v2585 = vpow.pop %v2584
    %v2586 = vmul.f32 %v2578, 1.442695
    %v2587 = vpow.pop %v2586
    %v2588 = vmul.f32 %v2579, 1.442695
    %v2589 = vpow.pop %v2588
    %v2590 = vsel %vm543, %v2581, 0.0
    %2591 = vadd.xlane.f32.xlu0 %v2590
    %v2592 = vpop.xlane.xlu0 %2591
    %v2593 = vsel %vm543, %v2583, 0.0
    %2594 = vadd.xlane.f32.xlu0 %v2593
    %v2595 = vpop.xlane.xlu0 %2594
    %v2596 = vsel %vm543, %v2585, 0.0
    %2597 = vadd.xlane.f32.xlu0 %v2596
    %v2598 = vpop.xlane.xlu0 %2597
    %v2599 = vsel %vm543, %v2587, 0.0
    %2600 = vadd.xlane.f32.xlu0 %v2599
    %v2601 = vpop.xlane.xlu0 %2600
    %v2602 = vsel %vm556, %v2589, 0.0
    %2603 = vadd.xlane.f32.xlu0 %v2602
    %v2604 = vpop.xlane.xlu0 %2603
    %v2605 = vrcp.pop %v2592
    %v2606 = vrcp.pop %v2595
    %v2607 = vrcp.pop %v2598
    %v2608 = vrcp.pop %v2601
    %v2609 = vrcp.pop %v2604
    %v2610 = vmul.f32 %v2581, %v2605
    %v2611 = vmul.f32 %v2583, %v2606
    %v2612 = vmul.f32 %v2585, %v2607
    %v2613 = vmul.f32 %v2587, %v2608
    %v2614 = vmul.f32 %v2589, %v2609
    %2615 = vrot.lane.b32.xlu0 %v2412, 64
    %v2616 = vpop.permute.xlu0 %2615
    %2617 = vrot.lane.b32.xlu0 %v2417, 64
    %v2618 = vpop.permute.xlu0 %2617
    %2619 = vrot.lane.b32.xlu0 %v2422, 64
    %v2620 = vpop.permute.xlu0 %2619
    %2621 = vrot.lane.b32.xlu0 %v2427, 64
    %v2622 = vpop.permute.xlu0 %2621
    %2623 = vrot.lane.b32.xlu0 %v2432, 64
    %v2624 = vpop.permute.xlu0 %2623
    %v2630 = vsel %vm543, %v2610, 0
    %v2633 = vsel %vm543, %v2611, 0
    %v2636 = vsel %vm543, %v2612, 0
    %v2639 = vsel %vm543, %v2613, 0
    %v2642 = vsel %vm543, %v2614, 0
    %v2644 = vsel %vm629, %v2624, 0
    %2646 = vmatprep.subr.mxu0 0.0
    %2647 = vmatpush1.msra.mxu0 %v2616
    %2648 = vmatprep.subr.mxu0 0.0
    %2649 = vmatpush1.msra.mxu0 %v2618
    %2650 = vmatprep.subr.mxu0 0.0
    %2651 = vmatpush1.msra.mxu0 %v2620
    %2652 = vmatprep.subr.mxu0 0.0
    %2653 = vmatpush1.msra.mxu0 %v2622
    %2654 = vmatprep.subr.mxu0 0.0
    %2655 = vmatpush1.msra.mxu0 %v2644
    %2656 = vmatprep.subr.mxu0 0.0
    %2657 = vmatpush1.msra.mxu0 0.0
    %2658 = vmatprep.subr.mxu0 0.0
    %2659 = vmatpush1.msra.mxu0 0.0
    %2660 = vmatprep.subr.mxu0 0.0
    %2661 = vmatpush1.msra.mxu0 0.0
    %2662 = vmatprep.subr.mxu0 0.0
    %2663 = vmatpush1.msra.mxu0 0.0
    %2664 = vmatprep.subr.mxu0 0.0
    %2665 = vmatpush1.msra.mxu0 0.0
    %2666 = vmatprep.subr.mxu0 0.0
    %2667 = vmatpush1.msra.mxu0 0.0
    %2668 = vmatprep.subr.mxu0 0.0
    %2669 = vmatpush1.msra.mxu0 0.0
    %2670 = vmatprep.subr.mxu0 0.0
    %2671 = vmatpush1.msra.mxu0 0.0
    %2672 = vmatprep.subr.mxu0 0.0
    %2673 = vmatpush1.msra.mxu0 0.0
    %2674 = vmatprep.subr.mxu0 0.0
    %2675 = vmatpush1.msra.mxu0 0.0
    %2676 = vmatprep.subr.mxu0 0.0
    %2677 = vmatpush1.msra.mxu0 0.0
    %2678 = vmatprep.subr.mxu0 0.0
    %2679 = vmatpush1.msra.mxu0 0.0
    %2680 = vmatprep.subr.mxu0 0.0
    %2681 = vmatpush1.msra.mxu0 0.0
    %2682 = vmatprep.subr.mxu0 0.0
    %2683 = vmatpush1.msra.mxu0 0.0
    %2684 = vmatprep.subr.mxu0 0.0
    %2685 = vmatpush1.msra.mxu0 0.0
    %2686 = vmatprep.subr.mxu0 0.0
    %2687 = vmatpush1.msra.mxu0 0.0
    %2688 = vmatprep.subr.mxu0 0.0
    %2689 = vmatpush1.msra.mxu0 0.0
    %2690 = vmatprep.subr.mxu0 0.0
    %2691 = vmatpush1.msra.mxu0 0.0
    %2692 = vmatprep.subr.mxu0 0.0
    %2693 = vmatpush1.msra.mxu0 0.0
    %2694 = vmatprep.subr.mxu0 0.0
    %2695 = vmatpush1.msra.mxu0 0.0
    %2696 = vmatprep.subr.mxu0 0.0
    %2697 = vmatpush1.msra.mxu0 0.0
    %2698 = vmatprep.subr.mxu0 0.0
    %2699 = vmatpush1.msra.mxu0 0.0
    %2700 = vmatprep.subr.mxu0 0.0
    %2701 = vmatpush1.msra.mxu0 0.0
    %2702 = vmatprep.subr.mxu0 0.0
    %2703 = vmatpush1.msra.mxu0 0.0
    %2704 = vmatprep.subr.mxu0 0.0
    %2705 = vmatpush1.msra.mxu0 0.0
    %2706 = vmatprep.subr.mxu0 0.0
    %2707 = vmatpush1.msra.mxu0 0.0
    %2708 = vmatprep.subr.mxu0 0.0
    %2709 = vmatpush1.msra.mxu0 0.0
    %2710 = vmatprep.mubr.f32.mxu0 0.0
    %2711 = vmatmul.mubr.f32.gmra.mrb[0].mxu0 %v2630
    %v2712 = vpop.f32.mrb[0].mxu0
    %v2713 = vadd.f32 0.0, %v2712
    %v2714 = vpop.f32.mrb[0].mxu0
    %2715 = vmatprep.mubr.f32.mxu0 0.0
    %2716 = vmatmul.mubr.f32.gmra.mrb[0].mxu0 %v2633
    %v2717 = vpop.f32.mrb[0].mxu0
    %v2718 = vadd.f32 0.0, %v2717
    %v2719 = vpop.f32.mrb[0].mxu0
    %2720 = vmatprep.mubr.f32.mxu0 0.0
    %2721 = vmatmul.mubr.f32.gmra.mrb[0].mxu0 %v2636
    %v2722 = vpop.f32.mrb[0].mxu0
    %v2723 = vadd.f32 0.0, %v2722
    %v2724 = vpop.f32.mrb[0].mxu0
    %2725 = vmatprep.mubr.f32.mxu0 0.0
    %2726 = vmatmul.mubr.f32.gmra.mrb[0].mxu0 %v2639
    %v2727 = vpop.f32.mrb[0].mxu0
    %v2728 = vadd.f32 0.0, %v2727
    %v2729 = vpop.f32.mrb[0].mxu0
    %2730 = vmatprep.mubr.f32.mxu0 0.0
    %2731 = vmatmul.mubr.f32.gmra.mrb[0].mxu0 %v2642
    %v2732 = vpop.f32.mrb[0].mxu0
    %v2733 = vadd.f32 0.0, %v2732
    %v2734 = vpop.f32.mrb[0].mxu0
    %2735 = vdwg.mxu0
    %2736 = vrot.lane.b32.xlu0 %v2412, 120
    %v2737 = vpop.permute.xlu0 %2736
    %2738 = vrot.lane.b32.xlu0 %v2417, 120
    %v2739 = vpop.permute.xlu0 %2738
    %2740 = vrot.lane.b32.xlu0 %v2422, 120
    %v2741 = vpop.permute.xlu0 %2740
    %2742 = vrot.lane.b32.xlu0 %v2427, 120
    %v2743 = vpop.permute.xlu0 %2742
    %2744 = vrot.lane.b32.xlu0 %v2432, 120
    %v2745 = vpop.permute.xlu0 %2744
    %2746 = vrot.lane.b32.xlu0 %v2412, 88
    %v2747 = vpop.permute.xlu0 %2746
    %2748 = vrot.lane.b32.xlu0 %v2417, 88
    %v2749 = vpop.permute.xlu0 %2748
    %2750 = vrot.lane.b32.xlu0 %v2422, 88
    %v2751 = vpop.permute.xlu0 %2750
    %2752 = vrot.lane.b32.xlu0 %v2427, 88
    %v2753 = vpop.permute.xlu0 %2752
    %2754 = vrot.lane.b32.xlu0 %v2432, 88
    %v2755 = vpop.permute.xlu0 %2754
    %v2756 = vsel %vm432, %v2737, 0
    %v2758 = vsel %vm432, %v2739, 0
    %v2760 = vsel %vm432, %v2741, 0
    %v2762 = vsel %vm432, %v2743, 0
    %v2764 = vsel %vm432, %v2745, 0
    %v2766 = vsel %vm432, %v2747, 0
    %v2768 = vsel %vm432, %v2749, 0
    %v2770 = vsel %vm432, %v2751, 0
    %v2772 = vsel %vm432, %v2753, 0
    %v2774 = vsel %vm432, %v2755, 0
    %2776 = vmatprep.subr.mxu0 0.0
    %2777 = vmatpush1.xpose.msra.mxu0 %v2766
    %2778 = vmatprep.subr.mxu0 0.0
    %2779 = vmatpush1.xpose.msra.mxu0 %v2768
    %2780 = vmatprep.subr.mxu0 0.0
    %2781 = vmatpush1.xpose.msra.mxu0 %v2770
    %2782 = vmatprep.subr.mxu0 0.0
    %2783 = vmatpush1.xpose.msra.mxu0 %v2772
    %2784 = vmatprep.subr.mxu0 0.0
    %2785 = vmatpush1.xpose.msra.mxu0 %v2774
    %2786 = vmatprep.subr.mxu0 0.0
    %2787 = vmatpush1.xpose.msra.mxu0 0.0
    %2788 = vmatprep.subr.mxu0 0.0
    %2789 = vmatpush1.xpose.msra.mxu0 0.0
    %2790 = vmatprep.subr.mxu0 0.0
    %2791 = vmatpush1.xpose.msra.mxu0 0.0
    %2792 = vmatprep.subr.mxu0 0.0
    %2793 = vmatpush1.xpose.msra.mxu0 0.0
    %2794 = vmatprep.subr.mxu0 0.0
    %2795 = vmatpush1.xpose.msra.mxu0 0.0
    %2796 = vmatprep.subr.mxu0 0.0
    %2797 = vmatpush1.xpose.msra.mxu0 0.0
    %2798 = vmatprep.subr.mxu0 0.0
    %2799 = vmatpush1.xpose.msra.mxu0 0.0
    %2800 = vmatprep.subr.mxu0 0.0
    %2801 = vmatpush1.xpose.msra.mxu0 0.0
    %2802 = vmatprep.subr.mxu0 0.0
    %2803 = vmatpush1.xpose.msra.mxu0 0.0
    %2804 = vmatprep.subr.mxu0 0.0
    %2805 = vmatpush1.xpose.msra.mxu0 0.0
    %2806 = vmatprep.subr.mxu0 0.0
    %2807 = vmatpush1.xpose.msra.mxu0 0.0
    %2808 = vmatprep.subr.mxu0 0.0
    %2809 = vmatpush1.xpose.msra.mxu0 0.0
    %2810 = vmatprep.subr.mxu0 0.0
    %2811 = vmatpush1.xpose.msra.mxu0 0.0
    %2812 = vmatprep.subr.mxu0 0.0
    %2813 = vmatpush1.xpose.msra.mxu0 0.0
    %2814 = vmatprep.subr.mxu0 0.0
    %2815 = vmatpush1.xpose.msra.mxu0 0.0
    %2816 = vmatprep.subr.mxu0 0.0
    %2817 = vmatpush1.xpose.msra.mxu0 0.0
    %2818 = vmatprep.subr.mxu0 0.0
    %2819 = vmatpush1.xpose.msra.mxu0 0.0
    %2820 = vmatprep.subr.mxu0 0.0
    %2821 = vmatpush1.xpose.msra.mxu0 0.0
    %2822 = vmatprep.subr.mxu0 0.0
    %2823 = vmatpush1.xpose.msra.mxu0 0.0
    %2824 = vmatprep.subr.mxu0 0.0
    %2825 = vmatpush1.xpose.msra.mxu0 0.0
    %2826 = vmatprep.subr.mxu0 0.0
    %2827 = vmatpush1.xpose.msra.mxu0 0.0
    %2828 = vmatprep.subr.mxu0 0.0
    %2829 = vmatpush1.xpose.msra.mxu0 0.0
    %2830 = vmatprep.subr.mxu0 0.0
    %2831 = vmatpush1.xpose.msra.mxu0 0.0
    %2832 = vmatprep.subr.mxu0 0.0
    %2833 = vmatpush1.xpose.msra.mxu0 0.0
    %2834 = vmatprep.subr.mxu0 0.0
    %2835 = vmatpush1.xpose.msra.mxu0 0.0
    %2836 = vmatprep.subr.mxu0 0.0
    %2837 = vmatpush1.xpose.msra.mxu0 0.0
    %2838 = vmatprep.subr.mxu0 0.0
    %2839 = vmatpush1.xpose.msra.mxu0 0.0
    %2840 = vmatprep.mubr.f32.mxu0 0.0
    %2841 = vmatmul.mubr.f32.gmra.mrb[0].mxu0 %v2756
    %v2842 = vpop.f32.mrb[0].mxu0
    %v2843 = vadd.f32 %v60, %v2842
    %v2844 = vpop.f32.mrb[0].mxu0
    %2845 = vmatprep.mubr.f32.mxu0 0.0
    %2846 = vmatmul.mubr.f32.gmra.mrb[0].mxu0 %v2758
    %v2847 = vpop.f32.mrb[0].mxu0
    %v2848 = vadd.f32 %v61, %v2847
    %v2849 = vpop.f32.mrb[0].mxu0
    %2850 = vmatprep.mubr.f32.mxu0 0.0
    %2851 = vmatmul.mubr.f32.gmra.mrb[0].mxu0 %v2760
    %v2852 = vpop.f32.mrb[0].mxu0
    %v2853 = vadd.f32 %v62, %v2852
    %v2854 = vpop.f32.mrb[0].mxu0
    %2855 = vmatprep.mubr.f32.mxu0 0.0
    %2856 = vmatmul.mubr.f32.gmra.mrb[0].mxu0 %v2762
    %v2857 = vpop.f32.mrb[0].mxu0
    %v2858 = vadd.f32 %v63, %v2857
    %v2859 = vpop.f32.mrb[0].mxu0
    %2860 = vmatprep.mubr.f32.mxu0 0.0
    %2861 = vmatmul.mubr.f32.gmra.mrb[0].mxu0 %v2764
    %v2862 = vpop.f32.mrb[0].mxu0
    %v2863 = vadd.f32 %v64, %v2862
    %v2864 = vpop.f32.mrb[0].mxu0
    %2865 = vdwg.mxu0
    %v2866 = vsel %vm543, %v2843, -inf
    %2867 = vmax.xlane.f32.xlu0 %v2866
    %v2868 = vpop.xlane.xlu0 %2867
    %v2869 = vsel %vm543, %v2848, -inf
    %2870 = vmax.xlane.f32.xlu0 %v2869
    %v2871 = vpop.xlane.xlu0 %2870
    %v2872 = vsel %vm543, %v2853, -inf
    %2873 = vmax.xlane.f32.xlu0 %v2872
    %v2874 = vpop.xlane.xlu0 %2873
    %v2875 = vsel %vm543, %v2858, -inf
    %2876 = vmax.xlane.f32.xlu0 %v2875
    %v2877 = vpop.xlane.xlu0 %2876
    %v2878 = vsel %vm556, %v2863, -inf
    %2879 = vmax.xlane.f32.xlu0 %v2878
    %v2880 = vpop.xlane.xlu0 %2879
    %v2881 = vsub.f32 %v2843, %v2868
    %v2882 = vsub.f32 %v2848, %v2871
    %v2883 = vsub.f32 %v2853, %v2874
    %v2884 = vsub.f32 %v2858, %v2877
    %v2885 = vsub.f32 %v2863, %v2880
    %v2886 = vmul.f32 %v2881, 1.442695
    %v2887 = vpow.pop %v2886
    %v2888 = vmul.f32 %v2882, 1.442695
    %v2889 = vpow.pop %v2888
    %v2890 = vmul.f32 %v2883, 1.442695
    %v2891 = vpow.pop %v2890
    %v2892 = vmul.f32 %v2884, 1.442695
    %v2893 = vpow.pop %v2892
    %v2894 = vmul.f32 %v2885, 1.442695
    %v2895 = vpow.pop %v2894
    %v2896 = vsel %vm543, %v2887, 0.0
    %2897 = vadd.xlane.f32.xlu0 %v2896
    %v2898 = vpop.xlane.xlu0 %2897
    %v2899 = vsel %vm543, %v2889, 0.0
    %2900 = vadd.xlane.f32.xlu0 %v2899
    %v2901 = vpop.xlane.xlu0 %2900
    %v2902 = vsel %vm543, %v2891, 0.0
    %2903 = vadd.xlane.f32.xlu0 %v2902
    %v2904 = vpop.xlane.xlu0 %2903
    %v2905 = vsel %vm543, %v2893, 0.0
    %2906 = vadd.xlane.f32.xlu0 %v2905
    %v2907 = vpop.xlane.xlu0 %2906
    %v2908 = vsel %vm556, %v2895, 0.0
    %2909 = vadd.xlane.f32.xlu0 %v2908
    %v2910 = vpop.xlane.xlu0 %2909
    %v2911 = vrcp.pop %v2898
    %v2912 = vrcp.pop %v2901
    %v2913 = vrcp.pop %v2904
    %v2914 = vrcp.pop %v2907
    %v2915 = vrcp.pop %v2910
    %v2916 = vmul.f32 %v2887, %v2911
    %v2917 = vmul.f32 %v2889, %v2912
    %v2918 = vmul.f32 %v2891, %v2913
    %v2919 = vmul.f32 %v2893, %v2914
    %v2920 = vmul.f32 %v2895, %v2915
    %2921 = vrot.lane.b32.xlu0 %v2412, 56
    %v2922 = vpop.permute.xlu0 %2921
    %2923 = vrot.lane.b32.xlu0 %v2417, 56
    %v2924 = vpop.permute.xlu0 %2923
    %2925 = vrot.lane.b32.xlu0 %v2422, 56
    %v2926 = vpop.permute.xlu0 %2925
    %2927 = vrot.lane.b32.xlu0 %v2427, 56
    %v2928 = vpop.permute.xlu0 %2927
    %2929 = vrot.lane.b32.xlu0 %v2432, 56
    %v2930 = vpop.permute.xlu0 %2929
    %v2936 = vsel %vm543, %v2916, 0
    %v2939 = vsel %vm543, %v2917, 0
    %v2942 = vsel %vm543, %v2918, 0
    %v2945 = vsel %vm543, %v2919, 0
    %v2948 = vsel %vm543, %v2920, 0
    %v2950 = vsel %vm629, %v2930, 0
    %2952 = vmatprep.subr.mxu0 0.0
    %2953 = vmatpush1.msra.mxu0 %v2922
    %2954 = vmatprep.subr.mxu0 0.0
    %2955 = vmatpush1.msra.mxu0 %v2924
    %2956 = vmatprep.subr.mxu0 0.0
    %2957 = vmatpush1.msra.mxu0 %v2926
    %2958 = vmatprep.subr.mxu0 0.0
    %2959 = vmatpush1.msra.mxu0 %v2928
    %2960 = vmatprep.subr.mxu0 0.0
    %2961 = vmatpush1.msra.mxu0 %v2950
    %2962 = vmatprep.subr.mxu0 0.0
    %2963 = vmatpush1.msra.mxu0 0.0
    %2964 = vmatprep.subr.mxu0 0.0
    %2965 = vmatpush1.msra.mxu0 0.0
    %2966 = vmatprep.subr.mxu0 0.0
    %2967 = vmatpush1.msra.mxu0 0.0
    %2968 = vmatprep.subr.mxu0 0.0
    %2969 = vmatpush1.msra.mxu0 0.0
    %2970 = vmatprep.subr.mxu0 0.0
    %2971 = vmatpush1.msra.mxu0 0.0
    %2972 = vmatprep.subr.mxu0 0.0
    %2973 = vmatpush1.msra.mxu0 0.0
    %2974 = vmatprep.subr.mxu0 0.0
    %2975 = vmatpush1.msra.mxu0 0.0
    %2976 = vmatprep.subr.mxu0 0.0
    %2977 = vmatpush1.msra.mxu0 0.0
    %2978 = vmatprep.subr.mxu0 0.0
    %2979 = vmatpush1.msra.mxu0 0.0
    %2980 = vmatprep.subr.mxu0 0.0
    %2981 = vmatpush1.msra.mxu0 0.0
    %2982 = vmatprep.subr.mxu0 0.0
    %2983 = vmatpush1.msra.mxu0 0.0
    %2984 = vmatprep.subr.mxu0 0.0
    %2985 = vmatpush1.msra.mxu0 0.0
    %2986 = vmatprep.subr.mxu0 0.0
    %2987 = vmatpush1.msra.mxu0 0.0
    %2988 = vmatprep.subr.mxu0 0.0
    %2989 = vmatpush1.msra.mxu0 0.0
    %2990 = vmatprep.subr.mxu0 0.0
    %2991 = vmatpush1.msra.mxu0 0.0
    %2992 = vmatprep.subr.mxu0 0.0
    %2993 = vmatpush1.msra.mxu0 0.0
    %2994 = vmatprep.subr.mxu0 0.0
    %2995 = vmatpush1.msra.mxu0 0.0
    %2996 = vmatprep.subr.mxu0 0.0
    %2997 = vmatpush1.msra.mxu0 0.0
    %2998 = vmatprep.subr.mxu0 0.0
    %2999 = vmatpush1.msra.mxu0 0.0
    %3000 = vmatprep.subr.mxu0 0.0
    %3001 = vmatpush1.msra.mxu0 0.0
    %3002 = vmatprep.subr.mxu0 0.0
    %3003 = vmatpush1.msra.mxu0 0.0
    %3004 = vmatprep.subr.mxu0 0.0
    %3005 = vmatpush1.msra.mxu0 0.0
    %3006 = vmatprep.subr.mxu0 0.0
    %3007 = vmatpush1.msra.mxu0 0.0
    %3008 = vmatprep.subr.mxu0 0.0
    %3009 = vmatpush1.msra.mxu0 0.0
    %3010 = vmatprep.subr.mxu0 0.0
    %3011 = vmatpush1.msra.mxu0 0.0
    %3012 = vmatprep.subr.mxu0 0.0
    %3013 = vmatpush1.msra.mxu0 0.0
    %3014 = vmatprep.subr.mxu0 0.0
    %3015 = vmatpush1.msra.mxu0 0.0
    %3016 = vmatprep.mubr.f32.mxu0 0.0
    %3017 = vmatmul.mubr.f32.gmra.mrb[0].mxu0 %v2936
    %v3018 = vpop.f32.mrb[0].mxu0
    %v3019 = vadd.f32 0.0, %v3018
    %v3020 = vpop.f32.mrb[0].mxu0
    %3021 = vmatprep.mubr.f32.mxu0 0.0
    %3022 = vmatmul.mubr.f32.gmra.mrb[0].mxu0 %v2939
    %v3023 = vpop.f32.mrb[0].mxu0
    %v3024 = vadd.f32 0.0, %v3023
    %v3025 = vpop.f32.mrb[0].mxu0
    %3026 = vmatprep.mubr.f32.mxu0 0.0
    %3027 = vmatmul.mubr.f32.gmra.mrb[0].mxu0 %v2942
    %v3028 = vpop.f32.mrb[0].mxu0
    %v3029 = vadd.f32 0.0, %v3028
    %v3030 = vpop.f32.mrb[0].mxu0
    %3031 = vmatprep.mubr.f32.mxu0 0.0
    %3032 = vmatmul.mubr.f32.gmra.mrb[0].mxu0 %v2945
    %v3033 = vpop.f32.mrb[0].mxu0
    %v3034 = vadd.f32 0.0, %v3033
    %v3035 = vpop.f32.mrb[0].mxu0
    %3036 = vmatprep.mubr.f32.mxu0 0.0
    %3037 = vmatmul.mubr.f32.gmra.mrb[0].mxu0 %v2948
    %v3038 = vpop.f32.mrb[0].mxu0
    %v3039 = vadd.f32 0.0, %v3038
    %v3040 = vpop.f32.mrb[0].mxu0
    %3041 = vdwg.mxu0
    %3042 = vrot.lane.b32.xlu0 %v2412, 112
    %v3043 = vpop.permute.xlu0 %3042
    %3044 = vrot.lane.b32.xlu0 %v2417, 112
    %v3045 = vpop.permute.xlu0 %3044
    %3046 = vrot.lane.b32.xlu0 %v2422, 112
    %v3047 = vpop.permute.xlu0 %3046
    %3048 = vrot.lane.b32.xlu0 %v2427, 112
    %v3049 = vpop.permute.xlu0 %3048
    %3050 = vrot.lane.b32.xlu0 %v2432, 112
    %v3051 = vpop.permute.xlu0 %3050
    %3052 = vrot.lane.b32.xlu0 %v2412, 80
    %v3053 = vpop.permute.xlu0 %3052
    %3054 = vrot.lane.b32.xlu0 %v2417, 80
    %v3055 = vpop.permute.xlu0 %3054
    %3056 = vrot.lane.b32.xlu0 %v2422, 80
    %v3057 = vpop.permute.xlu0 %3056
    %3058 = vrot.lane.b32.xlu0 %v2427, 80
    %v3059 = vpop.permute.xlu0 %3058
    %3060 = vrot.lane.b32.xlu0 %v2432, 80
    %v3061 = vpop.permute.xlu0 %3060
    %v3062 = vsel %vm432, %v3043, 0
    %v3064 = vsel %vm432, %v3045, 0
    %v3066 = vsel %vm432, %v3047, 0
    %v3068 = vsel %vm432, %v3049, 0
    %v3070 = vsel %vm432, %v3051, 0
    %v3072 = vsel %vm432, %v3053, 0
    %v3074 = vsel %vm432, %v3055, 0
    %v3076 = vsel %vm432, %v3057, 0
    %v3078 = vsel %vm432, %v3059, 0
    %v3080 = vsel %vm432, %v3061, 0
    %3082 = vmatprep.subr.mxu0 0.0
    %3083 = vmatpush1.xpose.msra.mxu0 %v3072
    %3084 = vmatprep.subr.mxu0 0.0
    %3085 = vmatpush1.xpose.msra.mxu0 %v3074
    %3086 = vmatprep.subr.mxu0 0.0
    %3087 = vmatpush1.xpose.msra.mxu0 %v3076
    %3088 = vmatprep.subr.mxu0 0.0
    %3089 = vmatpush1.xpose.msra.mxu0 %v3078
    %3090 = vmatprep.subr.mxu0 0.0
    %3091 = vmatpush1.xpose.msra.mxu0 %v3080
    %3092 = vmatprep.subr.mxu0 0.0
    %3093 = vmatpush1.xpose.msra.mxu0 0.0
    %3094 = vmatprep.subr.mxu0 0.0
    %3095 = vmatpush1.xpose.msra.mxu0 0.0
    %3096 = vmatprep.subr.mxu0 0.0
    %3097 = vmatpush1.xpose.msra.mxu0 0.0
    %3098 = vmatprep.subr.mxu0 0.0
    %3099 = vmatpush1.xpose.msra.mxu0 0.0
    %3100 = vmatprep.subr.mxu0 0.0
    %3101 = vmatpush1.xpose.msra.mxu0 0.0
    %3102 = vmatprep.subr.mxu0 0.0
    %3103 = vmatpush1.xpose.msra.mxu0 0.0
    %3104 = vmatprep.subr.mxu0 0.0
    %3105 = vmatpush1.xpose.msra.mxu0 0.0
    %3106 = vmatprep.subr.mxu0 0.0
    %3107 = vmatpush1.xpose.msra.mxu0 0.0
    %3108 = vmatprep.subr.mxu0 0.0
    %3109 = vmatpush1.xpose.msra.mxu0 0.0
    %3110 = vmatprep.subr.mxu0 0.0
    %3111 = vmatpush1.xpose.msra.mxu0 0.0
    %3112 = vmatprep.subr.mxu0 0.0
    %3113 = vmatpush1.xpose.msra.mxu0 0.0
    %3114 = vmatprep.subr.mxu0 0.0
    %3115 = vmatpush1.xpose.msra.mxu0 0.0
    %3116 = vmatprep.subr.mxu0 0.0
    %3117 = vmatpush1.xpose.msra.mxu0 0.0
    %3118 = vmatprep.subr.mxu0 0.0
    %3119 = vmatpush1.xpose.msra.mxu0 0.0
    %3120 = vmatprep.subr.mxu0 0.0
    %3121 = vmatpush1.xpose.msra.mxu0 0.0
    %3122 = vmatprep.subr.mxu0 0.0
    %3123 = vmatpush1.xpose.msra.mxu0 0.0
    %3124 = vmatprep.subr.mxu0 0.0
    %3125 = vmatpush1.xpose.msra.mxu0 0.0
    %3126 = vmatprep.subr.mxu0 0.0
    %3127 = vmatpush1.xpose.msra.mxu0 0.0
    %3128 = vmatprep.subr.mxu0 0.0
    %3129 = vmatpush1.xpose.msra.mxu0 0.0
    %3130 = vmatprep.subr.mxu0 0.0
    %3131 = vmatpush1.xpose.msra.mxu0 0.0
    %3132 = vmatprep.subr.mxu0 0.0
    %3133 = vmatpush1.xpose.msra.mxu0 0.0
    %3134 = vmatprep.subr.mxu0 0.0
    %3135 = vmatpush1.xpose.msra.mxu0 0.0
    %3136 = vmatprep.subr.mxu0 0.0
    %3137 = vmatpush1.xpose.msra.mxu0 0.0
    %3138 = vmatprep.subr.mxu0 0.0
    %3139 = vmatpush1.xpose.msra.mxu0 0.0
    %3140 = vmatprep.subr.mxu0 0.0
    %3141 = vmatpush1.xpose.msra.mxu0 0.0
    %3142 = vmatprep.subr.mxu0 0.0
    %3143 = vmatpush1.xpose.msra.mxu0 0.0
    %3144 = vmatprep.subr.mxu0 0.0
    %3145 = vmatpush1.xpose.msra.mxu0 0.0
    %3146 = vmatprep.mubr.f32.mxu0 0.0
    %3147 = vmatmul.mubr.f32.gmra.mrb[0].mxu0 %v3062
    %v3148 = vpop.f32.mrb[0].mxu0
    %v3149 = vadd.f32 %v60, %v3148
    %v3150 = vpop.f32.mrb[0].mxu0
    %3151 = vmatprep.mubr.f32.mxu0 0.0
    %3152 = vmatmul.mubr.f32.gmra.mrb[0].mxu0 %v3064
    %v3153 = vpop.f32.mrb[0].mxu0
    %v3154 = vadd.f32 %v61, %v3153
    %v3155 = vpop.f32.mrb[0].mxu0
    %3156 = vmatprep.mubr.f32.mxu0 0.0
    %3157 = vmatmul.mubr.f32.gmra.mrb[0].mxu0 %v3066
    %v3158 = vpop.f32.mrb[0].mxu0
    %v3159 = vadd.f32 %v62, %v3158
    %v3160 = vpop.f32.mrb[0].mxu0
    %3161 = vmatprep.mubr.f32.mxu0 0.0
    %3162 = vmatmul.mubr.f32.gmra.mrb[0].mxu0 %v3068
    %v3163 = vpop.f32.mrb[0].mxu0
    %v3164 = vadd.f32 %v63, %v3163
    %v3165 = vpop.f32.mrb[0].mxu0
    %3166 = vmatprep.mubr.f32.mxu0 0.0
    %3167 = vmatmul.mubr.f32.gmra.mrb[0].mxu0 %v3070
    %v3168 = vpop.f32.mrb[0].mxu0
    %v3169 = vadd.f32 %v64, %v3168
    %v3170 = vpop.f32.mrb[0].mxu0
    %3171 = vdwg.mxu0
    %v3172 = vsel %vm543, %v3149, -inf
    %3173 = vmax.xlane.f32.xlu0 %v3172
    %v3174 = vpop.xlane.xlu0 %3173
    %v3175 = vsel %vm543, %v3154, -inf
    %3176 = vmax.xlane.f32.xlu0 %v3175
    %v3177 = vpop.xlane.xlu0 %3176
    %v3178 = vsel %vm543, %v3159, -inf
    %3179 = vmax.xlane.f32.xlu0 %v3178
    %v3180 = vpop.xlane.xlu0 %3179
    %v3181 = vsel %vm543, %v3164, -inf
    %3182 = vmax.xlane.f32.xlu0 %v3181
    %v3183 = vpop.xlane.xlu0 %3182
    %v3184 = vsel %vm556, %v3169, -inf
    %3185 = vmax.xlane.f32.xlu0 %v3184
    %v3186 = vpop.xlane.xlu0 %3185
    %v3187 = vsub.f32 %v3149, %v3174
    %v3188 = vsub.f32 %v3154, %v3177
    %v3189 = vsub.f32 %v3159, %v3180
    %v3190 = vsub.f32 %v3164, %v3183
    %v3191 = vsub.f32 %v3169, %v3186
    %v3192 = vmul.f32 %v3187, 1.442695
    %v3193 = vpow.pop %v3192
    %v3194 = vmul.f32 %v3188, 1.442695
    %v3195 = vpow.pop %v3194
    %v3196 = vmul.f32 %v3189, 1.442695
    %v3197 = vpow.pop %v3196
    %v3198 = vmul.f32 %v3190, 1.442695
    %v3199 = vpow.pop %v3198
    %v3200 = vmul.f32 %v3191, 1.442695
    %v3201 = vpow.pop %v3200
    %v3202 = vsel %vm543, %v3193, 0.0
    %3203 = vadd.xlane.f32.xlu0 %v3202
    %v3204 = vpop.xlane.xlu0 %3203
    %v3205 = vsel %vm543, %v3195, 0.0
    %3206 = vadd.xlane.f32.xlu0 %v3205
    %v3207 = vpop.xlane.xlu0 %3206
    %v3208 = vsel %vm543, %v3197, 0.0
    %3209 = vadd.xlane.f32.xlu0 %v3208
    %v3210 = vpop.xlane.xlu0 %3209
    %v3211 = vsel %vm543, %v3199, 0.0
    %3212 = vadd.xlane.f32.xlu0 %v3211
    %v3213 = vpop.xlane.xlu0 %3212
    %v3214 = vsel %vm556, %v3201, 0.0
    %3215 = vadd.xlane.f32.xlu0 %v3214
    %v3216 = vpop.xlane.xlu0 %3215
    %v3217 = vrcp.pop %v3204
    %v3218 = vrcp.pop %v3207
    %v3219 = vrcp.pop %v3210
    %v3220 = vrcp.pop %v3213
    %v3221 = vrcp.pop %v3216
    %v3222 = vmul.f32 %v3193, %v3217
    %v3223 = vmul.f32 %v3195, %v3218
    %v3224 = vmul.f32 %v3197, %v3219
    %v3225 = vmul.f32 %v3199, %v3220
    %v3226 = vmul.f32 %v3201, %v3221
    %3227 = vrot.lane.b32.xlu0 %v2412, 48
    %v3228 = vpop.permute.xlu0 %3227
    %3229 = vrot.lane.b32.xlu0 %v2417, 48
    %v3230 = vpop.permute.xlu0 %3229
    %3231 = vrot.lane.b32.xlu0 %v2422, 48
    %v3232 = vpop.permute.xlu0 %3231
    %3233 = vrot.lane.b32.xlu0 %v2427, 48
    %v3234 = vpop.permute.xlu0 %3233
    %3235 = vrot.lane.b32.xlu0 %v2432, 48
    %v3236 = vpop.permute.xlu0 %3235
    %v3242 = vsel %vm543, %v3222, 0
    %v3245 = vsel %vm543, %v3223, 0
    %v3248 = vsel %vm543, %v3224, 0
    %v3251 = vsel %vm543, %v3225, 0
    %v3254 = vsel %vm543, %v3226, 0
    %v3256 = vsel %vm629, %v3236, 0
    %3258 = vmatprep.subr.mxu0 0.0
    %3259 = vmatpush1.msra.mxu0 %v3228
    %3260 = vmatprep.subr.mxu0 0.0
    %3261 = vmatpush1.msra.mxu0 %v3230
    %3262 = vmatprep.subr.mxu0 0.0
    %3263 = vmatpush1.msra.mxu0 %v3232
    %3264 = vmatprep.subr.mxu0 0.0
    %3265 = vmatpush1.msra.mxu0 %v3234
    %3266 = vmatprep.subr.mxu0 0.0
    %3267 = vmatpush1.msra.mxu0 %v3256
    %3268 = vmatprep.subr.mxu0 0.0
    %3269 = vmatpush1.msra.mxu0 0.0
    %3270 = vmatprep.subr.mxu0 0.0
    %3271 = vmatpush1.msra.mxu0 0.0
    %3272 = vmatprep.subr.mxu0 0.0
    %3273 = vmatpush1.msra.mxu0 0.0
    %3274 = vmatprep.subr.mxu0 0.0
    %3275 = vmatpush1.msra.mxu0 0.0
    %3276 = vmatprep.subr.mxu0 0.0
    %3277 = vmatpush1.msra.mxu0 0.0
    %3278 = vmatprep.subr.mxu0 0.0
    %3279 = vmatpush1.msra.mxu0 0.0
    %3280 = vmatprep.subr.mxu0 0.0
    %3281 = vmatpush1.msra.mxu0 0.0
    %3282 = vmatprep.subr.mxu0 0.0
    %3283 = vmatpush1.msra.mxu0 0.0
    %3284 = vmatprep.subr.mxu0 0.0
    %3285 = vmatpush1.msra.mxu0 0.0
    %3286 = vmatprep.subr.mxu0 0.0
    %3287 = vmatpush1.msra.mxu0 0.0
    %3288 = vmatprep.subr.mxu0 0.0
    %3289 = vmatpush1.msra.mxu0 0.0
    %3290 = vmatprep.subr.mxu0 0.0
    %3291 = vmatpush1.msra.mxu0 0.0
    %3292 = vmatprep.subr.mxu0 0.0
    %3293 = vmatpush1.msra.mxu0 0.0
    %3294 = vmatprep.subr.mxu0 0.0
    %3295 = vmatpush1.msra.mxu0 0.0
    %3296 = vmatprep.subr.mxu0 0.0
    %3297 = vmatpush1.msra.mxu0 0.0
    %3298 = vmatprep.subr.mxu0 0.0
    %3299 = vmatpush1.msra.mxu0 0.0
    %3300 = vmatprep.subr.mxu0 0.0
    %3301 = vmatpush1.msra.mxu0 0.0
    %3302 = vmatprep.subr.mxu0 0.0
    %3303 = vmatpush1.msra.mxu0 0.0
    %3304 = vmatprep.subr.mxu0 0.0
    %3305 = vmatpush1.msra.mxu0 0.0
    %3306 = vmatprep.subr.mxu0 0.0
    %3307 = vmatpush1.msra.mxu0 0.0
    %3308 = vmatprep.subr.mxu0 0.0
    %3309 = vmatpush1.msra.mxu0 0.0
    %3310 = vmatprep.subr.mxu0 0.0
    %3311 = vmatpush1.msra.mxu0 0.0
    %3312 = vmatprep.subr.mxu0 0.0
    %3313 = vmatpush1.msra.mxu0 0.0
    %3314 = vmatprep.subr.mxu0 0.0
    %3315 = vmatpush1.msra.mxu0 0.0
    %3316 = vmatprep.subr.mxu0 0.0
    %3317 = vmatpush1.msra.mxu0 0.0
    %3318 = vmatprep.subr.mxu0 0.0
    %3319 = vmatpush1.msra.mxu0 0.0
    %3320 = vmatprep.subr.mxu0 0.0
    %3321 = vmatpush1.msra.mxu0 0.0
    %3322 = vmatprep.mubr.f32.mxu0 0.0
    %3323 = vmatmul.mubr.f32.gmra.mrb[0].mxu0 %v3242
    %v3324 = vpop.f32.mrb[0].mxu0
    %v3325 = vadd.f32 0.0, %v3324
    %v3326 = vpop.f32.mrb[0].mxu0
    %3327 = vmatprep.mubr.f32.mxu0 0.0
    %3328 = vmatmul.mubr.f32.gmra.mrb[0].mxu0 %v3245
    %v3329 = vpop.f32.mrb[0].mxu0
    %v3330 = vadd.f32 0.0, %v3329
    %v3331 = vpop.f32.mrb[0].mxu0
    %3332 = vmatprep.mubr.f32.mxu0 0.0
    %3333 = vmatmul.mubr.f32.gmra.mrb[0].mxu0 %v3248
    %v3334 = vpop.f32.mrb[0].mxu0
    %v3335 = vadd.f32 0.0, %v3334
    %v3336 = vpop.f32.mrb[0].mxu0
    %3337 = vmatprep.mubr.f32.mxu0 0.0
    %3338 = vmatmul.mubr.f32.gmra.mrb[0].mxu0 %v3251
    %v3339 = vpop.f32.mrb[0].mxu0
    %v3340 = vadd.f32 0.0, %v3339
    %v3341 = vpop.f32.mrb[0].mxu0
    %3342 = vmatprep.mubr.f32.mxu0 0.0
    %3343 = vmatmul.mubr.f32.gmra.mrb[0].mxu0 %v3254
    %v3344 = vpop.f32.mrb[0].mxu0
    %v3345 = vadd.f32 0.0, %v3344
    %v3346 = vpop.f32.mrb[0].mxu0
    %3347 = vdwg.mxu0
    %3348 = vrot.lane.b32.xlu0 %v2412, 104
    %v3349 = vpop.permute.xlu0 %3348
    %3350 = vrot.lane.b32.xlu0 %v2417, 104
    %v3351 = vpop.permute.xlu0 %3350
    %3352 = vrot.lane.b32.xlu0 %v2422, 104
    %v3353 = vpop.permute.xlu0 %3352
    %3354 = vrot.lane.b32.xlu0 %v2427, 104
    %v3355 = vpop.permute.xlu0 %3354
    %3356 = vrot.lane.b32.xlu0 %v2432, 104
    %v3357 = vpop.permute.xlu0 %3356
    %3358 = vrot.lane.b32.xlu0 %v2412, 72
    %v3359 = vpop.permute.xlu0 %3358
    %3360 = vrot.lane.b32.xlu0 %v2417, 72
    %v3361 = vpop.permute.xlu0 %3360
    %3362 = vrot.lane.b32.xlu0 %v2422, 72
    %v3363 = vpop.permute.xlu0 %3362
    %3364 = vrot.lane.b32.xlu0 %v2427, 72
    %v3365 = vpop.permute.xlu0 %3364
    %3366 = vrot.lane.b32.xlu0 %v2432, 72
    %v3367 = vpop.permute.xlu0 %3366
    %v3368 = vsel %vm432, %v3349, 0
    %v3370 = vsel %vm432, %v3351, 0
    %v3372 = vsel %vm432, %v3353, 0
    %v3374 = vsel %vm432, %v3355, 0
    %v3376 = vsel %vm432, %v3357, 0
    %v3378 = vsel %vm432, %v3359, 0
    %v3380 = vsel %vm432, %v3361, 0
    %v3382 = vsel %vm432, %v3363, 0
    %v3384 = vsel %vm432, %v3365, 0
    %v3386 = vsel %vm432, %v3367, 0
    %3388 = vmatprep.subr.mxu0 0.0
    %3389 = vmatpush1.xpose.msra.mxu0 %v3378
    %3390 = vmatprep.subr.mxu0 0.0
    %3391 = vmatpush1.xpose.msra.mxu0 %v3380
    %3392 = vmatprep.subr.mxu0 0.0
    %3393 = vmatpush1.xpose.msra.mxu0 %v3382
    %3394 = vmatprep.subr.mxu0 0.0
    %3395 = vmatpush1.xpose.msra.mxu0 %v3384
    %3396 = vmatprep.subr.mxu0 0.0
    %3397 = vmatpush1.xpose.msra.mxu0 %v3386
    %3398 = vmatprep.subr.mxu0 0.0
    %3399 = vmatpush1.xpose.msra.mxu0 0.0
    %3400 = vmatprep.subr.mxu0 0.0
    %3401 = vmatpush1.xpose.msra.mxu0 0.0
    %3402 = vmatprep.subr.mxu0 0.0
    %3403 = vmatpush1.xpose.msra.mxu0 0.0
    %3404 = vmatprep.subr.mxu0 0.0
    %3405 = vmatpush1.xpose.msra.mxu0 0.0
    %3406 = vmatprep.subr.mxu0 0.0
    %3407 = vmatpush1.xpose.msra.mxu0 0.0
    %3408 = vmatprep.subr.mxu0 0.0
    %3409 = vmatpush1.xpose.msra.mxu0 0.0
    %3410 = vmatprep.subr.mxu0 0.0
    %3411 = vmatpush1.xpose.msra.mxu0 0.0
    %3412 = vmatprep.subr.mxu0 0.0
    %3413 = vmatpush1.xpose.msra.mxu0 0.0
    %3414 = vmatprep.subr.mxu0 0.0
    %3415 = vmatpush1.xpose.msra.mxu0 0.0
    %3416 = vmatprep.subr.mxu0 0.0
    %3417 = vmatpush1.xpose.msra.mxu0 0.0
    %3418 = vmatprep.subr.mxu0 0.0
    %3419 = vmatpush1.xpose.msra.mxu0 0.0
    %3420 = vmatprep.subr.mxu0 0.0
    %3421 = vmatpush1.xpose.msra.mxu0 0.0
    %3422 = vmatprep.subr.mxu0 0.0
    %3423 = vmatpush1.xpose.msra.mxu0 0.0
    %3424 = vmatprep.subr.mxu0 0.0
    %3425 = vmatpush1.xpose.msra.mxu0 0.0
    %3426 = vmatprep.subr.mxu0 0.0
    %3427 = vmatpush1.xpose.msra.mxu0 0.0
    %3428 = vmatprep.subr.mxu0 0.0
    %3429 = vmatpush1.xpose.msra.mxu0 0.0
    %3430 = vmatprep.subr.mxu0 0.0
    %3431 = vmatpush1.xpose.msra.mxu0 0.0
    %3432 = vmatprep.subr.mxu0 0.0
    %3433 = vmatpush1.xpose.msra.mxu0 0.0
    %3434 = vmatprep.subr.mxu0 0.0
    %3435 = vmatpush1.xpose.msra.mxu0 0.0
    %3436 = vmatprep.subr.mxu0 0.0
    %3437 = vmatpush1.xpose.msra.mxu0 0.0
    %3438 = vmatprep.subr.mxu0 0.0
    %3439 = vmatpush1.xpose.msra.mxu0 0.0
    %3440 = vmatprep.subr.mxu0 0.0
    %3441 = vmatpush1.xpose.msra.mxu0 0.0
    %3442 = vmatprep.subr.mxu0 0.0
    %3443 = vmatpush1.xpose.msra.mxu0 0.0
    %3444 = vmatprep.subr.mxu0 0.0
    %3445 = vmatpush1.xpose.msra.mxu0 0.0
    %3446 = vmatprep.subr.mxu0 0.0
    %3447 = vmatpush1.xpose.msra.mxu0 0.0
    %3448 = vmatprep.subr.mxu0 0.0
    %3449 = vmatpush1.xpose.msra.mxu0 0.0
    %3450 = vmatprep.subr.mxu0 0.0
    %3451 = vmatpush1.xpose.msra.mxu0 0.0
    %3452 = vmatprep.mubr.f32.mxu0 0.0
    %3453 = vmatmul.mubr.f32.gmra.mrb[0].mxu0 %v3368
    %v3454 = vpop.f32.mrb[0].mxu0
    %v3455 = vadd.f32 %v60, %v3454
    %v3456 = vpop.f32.mrb[0].mxu0
    %3457 = vmatprep.mubr.f32.mxu0 0.0
    %3458 = vmatmul.mubr.f32.gmra.mrb[0].mxu0 %v3370
    %v3459 = vpop.f32.mrb[0].mxu0
    %v3460 = vadd.f32 %v61, %v3459
    %v3461 = vpop.f32.mrb[0].mxu0
    %3462 = vmatprep.mubr.f32.mxu0 0.0
    %3463 = vmatmul.mubr.f32.gmra.mrb[0].mxu0 %v3372
    %v3464 = vpop.f32.mrb[0].mxu0
    %v3465 = vadd.f32 %v62, %v3464
    %v3466 = vpop.f32.mrb[0].mxu0
    %3467 = vmatprep.mubr.f32.mxu0 0.0
    %3468 = vmatmul.mubr.f32.gmra.mrb[0].mxu0 %v3374
    %v3469 = vpop.f32.mrb[0].mxu0
    %v3470 = vadd.f32 %v63, %v3469
    %v3471 = vpop.f32.mrb[0].mxu0
    %3472 = vmatprep.mubr.f32.mxu0 0.0
    %3473 = vmatmul.mubr.f32.gmra.mrb[0].mxu0 %v3376
    %v3474 = vpop.f32.mrb[0].mxu0
    %v3475 = vadd.f32 %v64, %v3474
    %v3476 = vpop.f32.mrb[0].mxu0
    %3477 = vdwg.mxu0
    %v3478 = vsel %vm543, %v3455, -inf
    %3479 = vmax.xlane.f32.xlu0 %v3478
    %v3480 = vpop.xlane.xlu0 %3479
    %v3481 = vsel %vm543, %v3460, -inf
    %3482 = vmax.xlane.f32.xlu0 %v3481
    %v3483 = vpop.xlane.xlu0 %3482
    %v3484 = vsel %vm543, %v3465, -inf
    %3485 = vmax.xlane.f32.xlu0 %v3484
    %v3486 = vpop.xlane.xlu0 %3485
    %v3487 = vsel %vm543, %v3470, -inf
    %3488 = vmax.xlane.f32.xlu0 %v3487
    %v3489 = vpop.xlane.xlu0 %3488
    %v3490 = vsel %vm556, %v3475, -inf
    %3491 = vmax.xlane.f32.xlu0 %v3490
    %v3492 = vpop.xlane.xlu0 %3491
    %v3493 = vsub.f32 %v3455, %v3480
    %v3494 = vsub.f32 %v3460, %v3483
    %v3495 = vsub.f32 %v3465, %v3486
    %v3496 = vsub.f32 %v3470, %v3489
    %v3497 = vsub.f32 %v3475, %v3492
    %v3498 = vmul.f32 %v3493, 1.442695
    %v3499 = vpow.pop %v3498
    %v3500 = vmul.f32 %v3494, 1.442695
    %v3501 = vpow.pop %v3500
    %v3502 = vmul.f32 %v3495, 1.442695
    %v3503 = vpow.pop %v3502
    %v3504 = vmul.f32 %v3496, 1.442695
    %v3505 = vpow.pop %v3504
    %v3506 = vmul.f32 %v3497, 1.442695
    %v3507 = vpow.pop %v3506
    %v3508 = vsel %vm543, %v3499, 0.0
    %3509 = vadd.xlane.f32.xlu0 %v3508
    %v3510 = vpop.xlane.xlu0 %3509
    %v3511 = vsel %vm543, %v3501, 0.0
    %3512 = vadd.xlane.f32.xlu0 %v3511
    %v3513 = vpop.xlane.xlu0 %3512
    %v3514 = vsel %vm543, %v3503, 0.0
    %3515 = vadd.xlane.f32.xlu0 %v3514
    %v3516 = vpop.xlane.xlu0 %3515
    %v3517 = vsel %vm543, %v3505, 0.0
    %3518 = vadd.xlane.f32.xlu0 %v3517
    %v3519 = vpop.xlane.xlu0 %3518
    %v3520 = vsel %vm556, %v3507, 0.0
    %3521 = vadd.xlane.f32.xlu0 %v3520
    %v3522 = vpop.xlane.xlu0 %3521
    %v3523 = vrcp.pop %v3510
    %v3524 = vrcp.pop %v3513
    %v3525 = vrcp.pop %v3516
    %v3526 = vrcp.pop %v3519
    %v3527 = vrcp.pop %v3522
    %v3528 = vmul.f32 %v3499, %v3523
    %v3529 = vmul.f32 %v3501, %v3524
    %v3530 = vmul.f32 %v3503, %v3525
    %v3531 = vmul.f32 %v3505, %v3526
    %v3532 = vmul.f32 %v3507, %v3527
    %3533 = vrot.lane.b32.xlu0 %v2412, 40
    %v3534 = vpop.permute.xlu0 %3533
    %3535 = vrot.lane.b32.xlu0 %v2417, 40
    %v3536 = vpop.permute.xlu0 %3535
    %3537 = vrot.lane.b32.xlu0 %v2422, 40
    %v3538 = vpop.permute.xlu0 %3537
    %3539 = vrot.lane.b32.xlu0 %v2427, 40
    %v3540 = vpop.permute.xlu0 %3539
    %3541 = vrot.lane.b32.xlu0 %v2432, 40
    %v3542 = vpop.permute.xlu0 %3541
    %v3548 = vsel %vm543, %v3528, 0
    %v3551 = vsel %vm543, %v3529, 0
    %v3554 = vsel %vm543, %v3530, 0
    %v3557 = vsel %vm543, %v3531, 0
    %v3560 = vsel %vm543, %v3532, 0
    %v3562 = vsel %vm629, %v3542, 0
    %3564 = vmatprep.subr.mxu0 0.0
    %3565 = vmatpush1.msra.mxu0 %v3534
    %3566 = vmatprep.subr.mxu0 0.0
    %3567 = vmatpush1.msra.mxu0 %v3536
    %3568 = vmatprep.subr.mxu0 0.0
    %3569 = vmatpush1.msra.mxu0 %v3538
    %3570 = vmatprep.subr.mxu0 0.0
    %3571 = vmatpush1.msra.mxu0 %v3540
    %3572 = vmatprep.subr.mxu0 0.0
    %3573 = vmatpush1.msra.mxu0 %v3562
    %3574 = vmatprep.subr.mxu0 0.0
    %3575 = vmatpush1.msra.mxu0 0.0
    %3576 = vmatprep.subr.mxu0 0.0
    %3577 = vmatpush1.msra.mxu0 0.0
    %3578 = vmatprep.subr.mxu0 0.0
    %3579 = vmatpush1.msra.mxu0 0.0
    %3580 = vmatprep.subr.mxu0 0.0
    %3581 = vmatpush1.msra.mxu0 0.0
    %3582 = vmatprep.subr.mxu0 0.0
    %3583 = vmatpush1.msra.mxu0 0.0
    %3584 = vmatprep.subr.mxu0 0.0
    %3585 = vmatpush1.msra.mxu0 0.0
    %3586 = vmatprep.subr.mxu0 0.0
    %3587 = vmatpush1.msra.mxu0 0.0
    %3588 = vmatprep.subr.mxu0 0.0
    %3589 = vmatpush1.msra.mxu0 0.0
    %3590 = vmatprep.subr.mxu0 0.0
    %3591 = vmatpush1.msra.mxu0 0.0
    %3592 = vmatprep.subr.mxu0 0.0
    %3593 = vmatpush1.msra.mxu0 0.0
    %3594 = vmatprep.subr.mxu0 0.0
    %3595 = vmatpush1.msra.mxu0 0.0
    %3596 = vmatprep.subr.mxu0 0.0
    %3597 = vmatpush1.msra.mxu0 0.0
    %3598 = vmatprep.subr.mxu0 0.0
    %3599 = vmatpush1.msra.mxu0 0.0
    %3600 = vmatprep.subr.mxu0 0.0
    %3601 = vmatpush1.msra.mxu0 0.0
    %3602 = vmatprep.subr.mxu0 0.0
    %3603 = vmatpush1.msra.mxu0 0.0
    %3604 = vmatprep.subr.mxu0 0.0
    %3605 = vmatpush1.msra.mxu0 0.0
    %3606 = vmatprep.subr.mxu0 0.0
    %3607 = vmatpush1.msra.mxu0 0.0
    %3608 = vmatprep.subr.mxu0 0.0
    %3609 = vmatpush1.msra.mxu0 0.0
    %3610 = vmatprep.subr.mxu0 0.0
    %3611 = vmatpush1.msra.mxu0 0.0
    %3612 = vmatprep.subr.mxu0 0.0
    %3613 = vmatpush1.msra.mxu0 0.0
    %3614 = vmatprep.subr.mxu0 0.0
    %3615 = vmatpush1.msra.mxu0 0.0
    %3616 = vmatprep.subr.mxu0 0.0
    %3617 = vmatpush1.msra.mxu0 0.0
    %3618 = vmatprep.subr.mxu0 0.0
    %3619 = vmatpush1.msra.mxu0 0.0
    %3620 = vmatprep.subr.mxu0 0.0
    %3621 = vmatpush1.msra.mxu0 0.0
    %3622 = vmatprep.subr.mxu0 0.0
    %3623 = vmatpush1.msra.mxu0 0.0
    %3624 = vmatprep.subr.mxu0 0.0
    %3625 = vmatpush1.msra.mxu0 0.0
    %3626 = vmatprep.subr.mxu0 0.0
    %3627 = vmatpush1.msra.mxu0 0.0
    %3628 = vmatprep.mubr.f32.mxu0 0.0
    %3629 = vmatmul.mubr.f32.gmra.mrb[0].mxu0 %v3548
    %v3630 = vpop.f32.mrb[0].mxu0
    %v3631 = vadd.f32 0.0, %v3630
    %v3632 = vpop.f32.mrb[0].mxu0
    %3633 = vmatprep.mubr.f32.mxu0 0.0
    %3634 = vmatmul.mubr.f32.gmra.mrb[0].mxu0 %v3551
    %v3635 = vpop.f32.mrb[0].mxu0
    %v3636 = vadd.f32 0.0, %v3635
    %v3637 = vpop.f32.mrb[0].mxu0
    %3638 = vmatprep.mubr.f32.mxu0 0.0
    %3639 = vmatmul.mubr.f32.gmra.mrb[0].mxu0 %v3554
    %v3640 = vpop.f32.mrb[0].mxu0
    %v3641 = vadd.f32 0.0, %v3640
    %v3642 = vpop.f32.mrb[0].mxu0
    %3643 = vmatprep.mubr.f32.mxu0 0.0
    %3644 = vmatmul.mubr.f32.gmra.mrb[0].mxu0 %v3557
    %v3645 = vpop.f32.mrb[0].mxu0
    %v3646 = vadd.f32 0.0, %v3645
    %v3647 = vpop.f32.mrb[0].mxu0
    %3648 = vmatprep.mubr.f32.mxu0 0.0
    %3649 = vmatmul.mubr.f32.gmra.mrb[0].mxu0 %v3560
    %v3650 = vpop.f32.mrb[0].mxu0
    %v3651 = vadd.f32 0.0, %v3650
    %v3652 = vpop.f32.mrb[0].mxu0
    %3653 = vdwg.mxu0
    %3659 = vrot.lane.b32.xlu0 %v3019, 8
    %v3660 = vpop.permute.xlu0 %3659
    %3661 = vrot.lane.b32.xlu0 %v3024, 8
    %v3662 = vpop.permute.xlu0 %3661
    %3663 = vrot.lane.b32.xlu0 %v3029, 8
    %v3664 = vpop.permute.xlu0 %3663
    %3665 = vrot.lane.b32.xlu0 %v3034, 8
    %v3666 = vpop.permute.xlu0 %3665
    %3667 = vrot.lane.b32.xlu0 %v3039, 8
    %v3668 = vpop.permute.xlu0 %3667
    %3679 = vrot.lane.b32.xlu0 %v3325, 16
    %v3680 = vpop.permute.xlu0 %3679
    %3681 = vrot.lane.b32.xlu0 %v3330, 16
    %v3682 = vpop.permute.xlu0 %3681
    %3683 = vrot.lane.b32.xlu0 %v3335, 16
    %v3684 = vpop.permute.xlu0 %3683
    %3685 = vrot.lane.b32.xlu0 %v3340, 16
    %v3686 = vpop.permute.xlu0 %3685
    %3687 = vrot.lane.b32.xlu0 %v3345, 16
    %v3688 = vpop.permute.xlu0 %3687
    %3699 = vrot.lane.b32.xlu0 %v3631, 24
    %v3700 = vpop.permute.xlu0 %3699
    %3701 = vrot.lane.b32.xlu0 %v3636, 24
    %v3702 = vpop.permute.xlu0 %3701
    %3703 = vrot.lane.b32.xlu0 %v3641, 24
    %v3704 = vpop.permute.xlu0 %3703
    %3705 = vrot.lane.b32.xlu0 %v3646, 24
    %v3706 = vpop.permute.xlu0 %3705
    %3707 = vrot.lane.b32.xlu0 %v3651, 24
    %v3708 = vpop.permute.xlu0 %3707
    %v3714 = vsel %vm432, %v2713, %v3660
    %v3715 = vsel %vm432, %v2718, %v3662
    %v3716 = vsel %vm432, %v2723, %v3664
    %v3717 = vsel %vm432, %v2728, %v3666
    %v3718 = vsel %vm432, %v2733, %v3668
    %v3719 = vsel %vm1705, %v3714, %v3680
    %v3720 = vsel %vm1705, %v3715, %v3682
    %v3721 = vsel %vm1705, %v3716, %v3684
    %v3722 = vsel %vm1705, %v3717, %v3686
    %v3723 = vsel %vm1705, %v3718, %v3688
    %v3724 = vsel %vm1711, %v3719, %v3700
    %v3725 = vsel %vm1711, %v3720, %v3702
    %v3726 = vsel %vm1711, %v3721, %v3704
    %v3727 = vsel %vm1711, %v3722, %v3706
    %v3728 = vsel %vm1711, %v3723, %v3708
    %v3730 = vsel %vm212, %v3724, 0
    %v3733 = vsel %vm212, %v3725, 0
    %v3736 = vsel %vm212, %v3726, 0
    %v3739 = vsel %vm212, %v3727, 0
    %v3742 = vsel %vm212, %v3728, 0
    %3744 = vmatprep.subr.mxu0 0.0
    %3745 = vmatpush1.msra.mxu0 %v2208
    %3746 = vmatprep.subr.mxu0 0.0
    %3747 = vmatpush1.msra.mxu0 %v2209
    %3748 = vmatprep.subr.mxu0 0.0
    %3749 = vmatpush1.msra.mxu0 %v2210
    %3750 = vmatprep.subr.mxu0 0.0
    %3751 = vmatpush1.msra.mxu0 %v2211
    %3752 = vmatprep.subr.mxu0 0.0
    %3753 = vmatpush1.msra.mxu0 0.0
    %3754 = vmatprep.subr.mxu0 0.0
    %3755 = vmatpush1.msra.mxu0 0.0
    %3756 = vmatprep.subr.mxu0 0.0
    %3757 = vmatpush1.msra.mxu0 0.0
    %3758 = vmatprep.subr.mxu0 0.0
    %3759 = vmatpush1.msra.mxu0 0.0
    %3760 = vmatprep.subr.mxu0 0.0
    %3761 = vmatpush1.msra.mxu0 0.0
    %3762 = vmatprep.subr.mxu0 0.0
    %3763 = vmatpush1.msra.mxu0 0.0
    %3764 = vmatprep.subr.mxu0 0.0
    %3765 = vmatpush1.msra.mxu0 0.0
    %3766 = vmatprep.subr.mxu0 0.0
    %3767 = vmatpush1.msra.mxu0 0.0
    %3768 = vmatprep.subr.mxu0 0.0
    %3769 = vmatpush1.msra.mxu0 0.0
    %3770 = vmatprep.subr.mxu0 0.0
    %3771 = vmatpush1.msra.mxu0 0.0
    %3772 = vmatprep.subr.mxu0 0.0
    %3773 = vmatpush1.msra.mxu0 0.0
    %3774 = vmatprep.subr.mxu0 0.0
    %3775 = vmatpush1.msra.mxu0 0.0
    %3776 = vmatprep.subr.mxu0 0.0
    %3777 = vmatpush1.msra.mxu0 0.0
    %3778 = vmatprep.subr.mxu0 0.0
    %3779 = vmatpush1.msra.mxu0 0.0
    %3780 = vmatprep.subr.mxu0 0.0
    %3781 = vmatpush1.msra.mxu0 0.0
    %3782 = vmatprep.subr.mxu0 0.0
    %3783 = vmatpush1.msra.mxu0 0.0
    %3784 = vmatprep.subr.mxu0 0.0
    %3785 = vmatpush1.msra.mxu0 0.0
    %3786 = vmatprep.subr.mxu0 0.0
    %3787 = vmatpush1.msra.mxu0 0.0
    %3788 = vmatprep.subr.mxu0 0.0
    %3789 = vmatpush1.msra.mxu0 0.0
    %3790 = vmatprep.subr.mxu0 0.0
    %3791 = vmatpush1.msra.mxu0 0.0
    %3792 = vmatprep.subr.mxu0 0.0
    %3793 = vmatpush1.msra.mxu0 0.0
    %3794 = vmatprep.subr.mxu0 0.0
    %3795 = vmatpush1.msra.mxu0 0.0
    %3796 = vmatprep.subr.mxu0 0.0
    %3797 = vmatpush1.msra.mxu0 0.0
    %3798 = vmatprep.subr.mxu0 0.0
    %3799 = vmatpush1.msra.mxu0 0.0
    %3800 = vmatprep.subr.mxu0 0.0
    %3801 = vmatpush1.msra.mxu0 0.0
    %3802 = vmatprep.subr.mxu0 0.0
    %3803 = vmatpush1.msra.mxu0 0.0
    %3804 = vmatprep.subr.mxu0 0.0
    %3805 = vmatpush1.msra.mxu0 0.0
    %3806 = vmatprep.subr.mxu0 0.0
    %3807 = vmatpush1.msra.mxu0 0.0
    %3808 = vmatprep.mubr.f32.mxu0 0.0
    %3809 = vmatmul.mubr.f32.gmra.mrb[0].mxu0 %v3730
    %v3810 = vpop.f32.mrb[0].mxu0
    %v3811 = vadd.f32 0.0, %v3810
    %v3812 = vpop.f32.mrb[0].mxu0
    %3813 = vmatprep.mubr.f32.mxu0 0.0
    %3814 = vmatmul.mubr.f32.gmra.mrb[0].mxu0 %v3733
    %v3815 = vpop.f32.mrb[0].mxu0
    %v3816 = vadd.f32 0.0, %v3815
    %v3817 = vpop.f32.mrb[0].mxu0
    %3818 = vmatprep.mubr.f32.mxu0 0.0
    %3819 = vmatmul.mubr.f32.gmra.mrb[0].mxu0 %v3736
    %v3820 = vpop.f32.mrb[0].mxu0
    %v3821 = vadd.f32 0.0, %v3820
    %v3822 = vpop.f32.mrb[0].mxu0
    %3823 = vmatprep.mubr.f32.mxu0 0.0
    %3824 = vmatmul.mubr.f32.gmra.mrb[0].mxu0 %v3739
    %v3825 = vpop.f32.mrb[0].mxu0
    %v3826 = vadd.f32 0.0, %v3825
    %v3827 = vpop.f32.mrb[0].mxu0
    %3828 = vmatprep.mubr.f32.mxu0 0.0
    %3829 = vmatmul.mubr.f32.gmra.mrb[0].mxu0 %v3742
    %v3830 = vpop.f32.mrb[0].mxu0
    %v3831 = vadd.f32 0.0, %v3830
    %v3832 = vpop.f32.mrb[0].mxu0
    %3833 = vdwg.mxu0
    %v3834 = vadd.f32 %v2198, %v3811
    %v3835 = vadd.f32 %v2199, %v3816
    %v3836 = vadd.f32 %v2200, %v3821
    %v3837 = vadd.f32 %v2201, %v3826
    %v3838 = vadd.f32 %v2202, %v3831
    %v3839 = vlaneseq
    %v3840 = vshrl.u32 %v3839, 7
    %v3841 = vsub.s32 0, %v3840
    %v3842 = vrot.slane %v2226, %v3841
    %v3843 = vadd.f32 %v3834, %v3842
    %v3844 = vadd.f32 %v3835, %v3842
    %v3845 = vadd.f32 %v3836, %v3842
    %v3846 = vadd.f32 %v3837, %v3842
    %v3847 = vadd.f32 %v3838, %v3842
    %v3848 = vsel %vm212, %v3843, 0.0
    %3849 = vadd.xlane.f32.xlu0 %v3848
    %v3850 = vpop.xlane.xlu0 %3849
    %v3851 = vsel %vm212, %v3844, 0.0
    %3852 = vadd.xlane.f32.xlu0 %v3851
    %v3853 = vpop.xlane.xlu0 %3852
    %v3854 = vsel %vm212, %v3845, 0.0
    %3855 = vadd.xlane.f32.xlu0 %v3854
    %v3856 = vpop.xlane.xlu0 %3855
    %v3857 = vsel %vm212, %v3846, 0.0
    %3858 = vadd.xlane.f32.xlu0 %v3857
    %v3859 = vpop.xlane.xlu0 %3858
    %v3860 = vsel %vm225, %v3847, 0.0
    %3861 = vadd.xlane.f32.xlu0 %v3860
    %v3862 = vpop.xlane.xlu0 %3861
    %v3863 = vmul.f32 %v3850, %v229
    %v3864 = vmul.f32 %v3853, %v229
    %v3865 = vmul.f32 %v3856, %v229
    %v3866 = vmul.f32 %v3859, %v229
    %v3867 = vmul.f32 %v3862, %v229
    %v3868 = vmul.f32 %v3843, %v3843
    %v3869 = vmul.f32 %v3844, %v3844
    %v3870 = vmul.f32 %v3845, %v3845
    %v3871 = vmul.f32 %v3846, %v3846
    %v3872 = vmul.f32 %v3847, %v3847
    %v3873 = vsel %vm212, %v3868, 0.0
    %3874 = vadd.xlane.f32.xlu0 %v3873
    %v3875 = vpop.xlane.xlu0 %3874
    %v3876 = vsel %vm212, %v3869, 0.0
    %3877 = vadd.xlane.f32.xlu0 %v3876
    %v3878 = vpop.xlane.xlu0 %3877
    %v3879 = vsel %vm212, %v3870, 0.0
    %3880 = vadd.xlane.f32.xlu0 %v3879
    %v3881 = vpop.xlane.xlu0 %3880
    %v3882 = vsel %vm212, %v3871, 0.0
    %3883 = vadd.xlane.f32.xlu0 %v3882
    %v3884 = vpop.xlane.xlu0 %3883
    %v3885 = vsel %vm225, %v3872, 0.0
    %3886 = vadd.xlane.f32.xlu0 %v3885
    %v3887 = vpop.xlane.xlu0 %3886
    %v3888 = vmul.f32 %v3875, %v229
    %v3889 = vmul.f32 %v3878, %v229
    %v3890 = vmul.f32 %v3881, %v229
    %v3891 = vmul.f32 %v3884, %v229
    %v3892 = vmul.f32 %v3887, %v229
    %v3893 = vmul.f32 %v3863, %v3863
    %v3894 = vmul.f32 %v3864, %v3864
    %v3895 = vmul.f32 %v3865, %v3865
    %v3896 = vmul.f32 %v3866, %v3866
    %v3897 = vmul.f32 %v3867, %v3867
    %v3898 = vsub.f32 %v3888, %v3893
    %v3899 = vsub.f32 %v3889, %v3894
    %v3900 = vsub.f32 %v3890, %v3895
    %v3901 = vsub.f32 %v3891, %v3896
    %v3902 = vsub.f32 %v3892, %v3897
    %v3903 = vsub.f32 %v3843, %v3863
    %v3904 = vsub.f32 %v3844, %v3864
    %v3905 = vsub.f32 %v3845, %v3865
    %v3906 = vsub.f32 %v3846, %v3866
    %v3907 = vsub.f32 %v3847, %v3867
    %v3908 = vadd.f32 %v3898, 1e-06
    %v3909 = vadd.f32 %v3899, 1e-06
    %v3910 = vadd.f32 %v3900, 1e-06
    %v3911 = vadd.f32 %v3901, 1e-06
    %v3912 = vadd.f32 %v3902, 1e-06
    %v3913 = vrsqrt.pop %v3908
    %v3914 = vrsqrt.pop %v3909
    %v3915 = vrsqrt.pop %v3910
    %v3916 = vrsqrt.pop %v3911
    %v3917 = vrsqrt.pop %v3912
    %v3918 = vmul.f32 %v3903, %v3913
    %v3919 = vmul.f32 %v3904, %v3914
    %v3920 = vmul.f32 %v3905, %v3915
    %v3921 = vmul.f32 %v3906, %v3916
    %v3922 = vmul.f32 %v3907, %v3917
    %v3923 = vlaneseq
    %v3924 = vshrl.u32 %v3923, 7
    %v3925 = vsub.s32 0, %v3924
    %v3926 = vrot.slane %v2231, %v3925
    %v3927 = vmul.f32 %v3918, %v3926
    %v3928 = vmul.f32 %v3919, %v3926
    %v3929 = vmul.f32 %v3920, %v3926
    %v3930 = vmul.f32 %v3921, %v3926
    %v3931 = vmul.f32 %v3922, %v3926
    %v3932 = vlaneseq
    %v3933 = vshrl.u32 %v3932, 7
    %v3934 = vsub.s32 0, %v3933
    %v3935 = vrot.slane %v2232, %v3934
    %v3936 = vadd.f32 %v3927, %v3935
    %v3937 = vadd.f32 %v3928, %v3935
    %v3938 = vadd.f32 %v3929, %v3935
    %v3939 = vadd.f32 %v3930, %v3935
    %v3940 = vadd.f32 %v3931, %v3935
    %v3941 = vlaneseq
    %v3942 = vshrl.u32 %v3941, 7
    %v3943 = vsub.s32 0, %v3942
    %v3944 = vrot.slane %v2227, %v3943
    %v3946 = vsel %vm212, %v3936, 0
    %v3949 = vsel %vm212, %v3937, 0
    %v3952 = vsel %vm212, %v3938, 0
    %v3955 = vsel %vm212, %v3939, 0
    %v3958 = vsel %vm212, %v3940, 0
    %3960 = vmatprep.subr.mxu0 0.0
    %3961 = vmatpush1.msra.mxu0 %v2212
    %3962 = vmatprep.subr.mxu0 0.0
    %3963 = vmatpush1.msra.mxu0 %v2213
    %3964 = vmatprep.subr.mxu0 0.0
    %3965 = vmatpush1.msra.mxu0 %v2214
    %3966 = vmatprep.subr.mxu0 0.0
    %3967 = vmatpush1.msra.mxu0 %v2215
    %3968 = vmatprep.subr.mxu0 0.0
    %3969 = vmatpush1.msra.mxu0 0.0
    %3970 = vmatprep.subr.mxu0 0.0
    %3971 = vmatpush1.msra.mxu0 0.0
    %3972 = vmatprep.subr.mxu0 0.0
    %3973 = vmatpush1.msra.mxu0 0.0
    %3974 = vmatprep.subr.mxu0 0.0
    %3975 = vmatpush1.msra.mxu0 0.0
    %3976 = vmatprep.subr.mxu0 0.0
    %3977 = vmatpush1.msra.mxu0 0.0
    %3978 = vmatprep.subr.mxu0 0.0
    %3979 = vmatpush1.msra.mxu0 0.0
    %3980 = vmatprep.subr.mxu0 0.0
    %3981 = vmatpush1.msra.mxu0 0.0
    %3982 = vmatprep.subr.mxu0 0.0
    %3983 = vmatpush1.msra.mxu0 0.0
    %3984 = vmatprep.subr.mxu0 0.0
    %3985 = vmatpush1.msra.mxu0 0.0
    %3986 = vmatprep.subr.mxu0 0.0
    %3987 = vmatpush1.msra.mxu0 0.0
    %3988 = vmatprep.subr.mxu0 0.0
    %3989 = vmatpush1.msra.mxu0 0.0
    %3990 = vmatprep.subr.mxu0 0.0
    %3991 = vmatpush1.msra.mxu0 0.0
    %3992 = vmatprep.subr.mxu0 0.0
    %3993 = vmatpush1.msra.mxu0 0.0
    %3994 = vmatprep.subr.mxu0 0.0
    %3995 = vmatpush1.msra.mxu0 0.0
    %3996 = vmatprep.subr.mxu0 0.0
    %3997 = vmatpush1.msra.mxu0 0.0
    %3998 = vmatprep.subr.mxu0 0.0
    %3999 = vmatpush1.msra.mxu0 0.0
    %4000 = vmatprep.subr.mxu0 0.0
    %4001 = vmatpush1.msra.mxu0 0.0
    %4002 = vmatprep.subr.mxu0 0.0
    %4003 = vmatpush1.msra.mxu0 0.0
    %4004 = vmatprep.subr.mxu0 0.0
    %4005 = vmatpush1.msra.mxu0 0.0
    %4006 = vmatprep.subr.mxu0 0.0
    %4007 = vmatpush1.msra.mxu0 0.0
    %4008 = vmatprep.subr.mxu0 0.0
    %4009 = vmatpush1.msra.mxu0 0.0
    %4010 = vmatprep.subr.mxu0 0.0
    %4011 = vmatpush1.msra.mxu0 0.0
    %4012 = vmatprep.subr.mxu0 0.0
    %4013 = vmatpush1.msra.mxu0 0.0
    %4014 = vmatprep.subr.mxu0 0.0
    %4015 = vmatpush1.msra.mxu0 0.0
    %4016 = vmatprep.subr.mxu0 0.0
    %4017 = vmatpush1.msra.mxu0 0.0
    %4018 = vmatprep.subr.mxu0 0.0
    %4019 = vmatpush1.msra.mxu0 0.0
    %4020 = vmatprep.subr.mxu0 0.0
    %4021 = vmatpush1.msra.mxu0 0.0
    %4022 = vmatprep.subr.mxu0 0.0
    %4023 = vmatpush1.msra.mxu0 0.0
    %4024 = vmatprep.mubr.f32.mxu0 0.0
    %4025 = vmatmul.mubr.f32.gmra.mrb[0].mxu0 %v3946
    %v4026 = vpop.f32.mrb[0].mxu0
    %v4027 = vadd.f32 %v3944, %v4026
    %v4028 = vpop.f32.mrb[0].mxu0
    %4029 = vmatprep.mubr.f32.mxu0 0.0
    %4030 = vmatmul.mubr.f32.gmra.mrb[0].mxu0 %v3949
    %v4031 = vpop.f32.mrb[0].mxu0
    %v4032 = vadd.f32 %v3944, %v4031
    %v4033 = vpop.f32.mrb[0].mxu0
    %4034 = vmatprep.mubr.f32.mxu0 0.0
    %4035 = vmatmul.mubr.f32.gmra.mrb[0].mxu0 %v3952
    %v4036 = vpop.f32.mrb[0].mxu0
    %v4037 = vadd.f32 %v3944, %v4036
    %v4038 = vpop.f32.mrb[0].mxu0
    %4039 = vmatprep.mubr.f32.mxu0 0.0
    %4040 = vmatmul.mubr.f32.gmra.mrb[0].mxu0 %v3955
    %v4041 = vpop.f32.mrb[0].mxu0
    %v4042 = vadd.f32 %v3944, %v4041
    %v4043 = vpop.f32.mrb[0].mxu0
    %4044 = vmatprep.mubr.f32.mxu0 0.0
    %4045 = vmatmul.mubr.f32.gmra.mrb[0].mxu0 %v3958
    %v4046 = vpop.f32.mrb[0].mxu0
    %v4047 = vadd.f32 %v3944, %v4046
    %v4048 = vpop.f32.mrb[0].mxu0
    %4049 = vdwg.mxu0
    %v4050 = vmul.f32 %v4027, 0.5
    %v4051 = vmul.f32 %v4032, 0.5
    %v4052 = vmul.f32 %v4037, 0.5
    %v4053 = vmul.f32 %v4042, 0.5
    %v4054 = vmul.f32 %v4047, 0.5
    %v4055 = vmul.f32 %v4027, %v4027
    %v4056 = vmul.f32 %v4032, %v4032
    %v4057 = vmul.f32 %v4037, %v4037
    %v4058 = vmul.f32 %v4042, %v4042
    %v4059 = vmul.f32 %v4047, %v4047
    %v4060 = vmul.f32 %v4055, %v4027
    %v4061 = vmul.f32 %v4056, %v4032
    %v4062 = vmul.f32 %v4057, %v4037
    %v4063 = vmul.f32 %v4058, %v4042
    %v4064 = vmul.f32 %v4059, %v4047
    %v4065 = vmul.f32 %v4060, 0.044715
    %v4066 = vmul.f32 %v4061, 0.044715
    %v4067 = vmul.f32 %v4062, 0.044715
    %v4068 = vmul.f32 %v4063, 0.044715
    %v4069 = vmul.f32 %v4064, 0.044715
    %v4070 = vadd.f32 %v4027, %v4065
    %v4071 = vadd.f32 %v4032, %v4066
    %v4072 = vadd.f32 %v4037, %v4067
    %v4073 = vadd.f32 %v4042, %v4068
    %v4074 = vadd.f32 %v4047, %v4069
    %v4075 = vmul.f32 %v4070, 0.7978846
    %v4076 = vmul.f32 %v4071, 0.7978846
    %v4077 = vmul.f32 %v4072, 0.7978846
    %v4078 = vmul.f32 %v4073, 0.7978846
    %v4079 = vmul.f32 %v4074, 0.7978846
    %v4080 = vtanh.pop %v4075
    %v4081 = vtanh.pop %v4076
    %v4082 = vtanh.pop %v4077
    %v4083 = vtanh.pop %v4078
    %v4084 = vtanh.pop %v4079
    %v4085 = vadd.f32 %v4080, 1.0
    %v4086 = vadd.f32 %v4081, 1.0
    %v4087 = vadd.f32 %v4082, 1.0
    %v4088 = vadd.f32 %v4083, 1.0
    %v4089 = vadd.f32 %v4084, 1.0
    %v4090 = vmul.f32 %v4050, %v4085
    %v4091 = vmul.f32 %v4051, %v4086
    %v4092 = vmul.f32 %v4052, %v4087
    %v4093 = vmul.f32 %v4053, %v4088
    %v4094 = vmul.f32 %v4054, %v4089
    %v4096 = vsel %vm2083, %v4090, 0
    %v4099 = vsel %vm2083, %v4091, 0
    %v4102 = vsel %vm2083, %v4092, 0
    %v4105 = vsel %vm2083, %v4093, 0
    %v4108 = vsel %vm2083, %v4094, 0
    %4110 = vmatprep.subr.mxu0 0.0
    %4111 = vmatpush1.msra.mxu0 %v2216
    %4112 = vmatprep.subr.mxu0 0.0
    %4113 = vmatpush1.msra.mxu0 %v2217
    %4114 = vmatprep.subr.mxu0 0.0
    %4115 = vmatpush1.msra.mxu0 %v2218
    %4116 = vmatprep.subr.mxu0 0.0
    %4117 = vmatpush1.msra.mxu0 %v2219
    %4118 = vmatprep.subr.mxu0 0.0
    %4119 = vmatpush1.msra.mxu0 %v2220
    %4120 = vmatprep.subr.mxu0 0.0
    %4121 = vmatpush1.msra.mxu0 %v2221
    %4122 = vmatprep.subr.mxu0 0.0
    %4123 = vmatpush1.msra.mxu0 %v2222
    %4124 = vmatprep.subr.mxu0 0.0
    %4125 = vmatpush1.msra.mxu0 %v2223
    %4126 = vmatprep.subr.mxu0 0.0
    %4127 = vmatpush1.msra.mxu0 0.0
    %4128 = vmatprep.subr.mxu0 0.0
    %4129 = vmatpush1.msra.mxu0 0.0
    %4130 = vmatprep.subr.mxu0 0.0
    %4131 = vmatpush1.msra.mxu0 0.0
    %4132 = vmatprep.subr.mxu0 0.0
    %4133 = vmatpush1.msra.mxu0 0.0
    %4134 = vmatprep.subr.mxu0 0.0
    %4135 = vmatpush1.msra.mxu0 0.0
    %4136 = vmatprep.subr.mxu0 0.0
    %4137 = vmatpush1.msra.mxu0 0.0
    %4138 = vmatprep.subr.mxu0 0.0
    %4139 = vmatpush1.msra.mxu0 0.0
    %4140 = vmatprep.subr.mxu0 0.0
    %4141 = vmatpush1.msra.mxu0 0.0
    %4142 = vmatprep.subr.mxu0 0.0
    %4143 = vmatpush1.msra.mxu0 0.0
    %4144 = vmatprep.subr.mxu0 0.0
    %4145 = vmatpush1.msra.mxu0 0.0
    %4146 = vmatprep.subr.mxu0 0.0
    %4147 = vmatpush1.msra.mxu0 0.0
    %4148 = vmatprep.subr.mxu0 0.0
    %4149 = vmatpush1.msra.mxu0 0.0
    %4150 = vmatprep.subr.mxu0 0.0
    %4151 = vmatpush1.msra.mxu0 0.0
    %4152 = vmatprep.subr.mxu0 0.0
    %4153 = vmatpush1.msra.mxu0 0.0
    %4154 = vmatprep.subr.mxu0 0.0
    %4155 = vmatpush1.msra.mxu0 0.0
    %4156 = vmatprep.subr.mxu0 0.0
    %4157 = vmatpush1.msra.mxu0 0.0
    %4158 = vmatprep.subr.mxu0 0.0
    %4159 = vmatpush1.msra.mxu0 0.0
    %4160 = vmatprep.subr.mxu0 0.0
    %4161 = vmatpush1.msra.mxu0 0.0
    %4162 = vmatprep.subr.mxu0 0.0
    %4163 = vmatpush1.msra.mxu0 0.0
    %4164 = vmatprep.subr.mxu0 0.0
    %4165 = vmatpush1.msra.mxu0 0.0
    %4166 = vmatprep.subr.mxu0 0.0
    %4167 = vmatpush1.msra.mxu0 0.0
    %4168 = vmatprep.subr.mxu0 0.0
    %4169 = vmatpush1.msra.mxu0 0.0
    %4170 = vmatprep.subr.mxu0 0.0
    %4171 = vmatpush1.msra.mxu0 0.0
    %4172 = vmatprep.subr.mxu0 0.0
    %4173 = vmatpush1.msra.mxu0 0.0
    %4174 = vmatprep.mubr.f32.mxu0 0.0
    %4175 = vmatmul.mubr.f32.gmra.mrb[0].mxu0 %v4096
    %v4176 = vpop.f32.mrb[0].mxu0
    %v4177 = vadd.f32 0.0, %v4176
    %v4178 = vpop.f32.mrb[0].mxu0
    %4179 = vmatprep.mubr.f32.mxu0 0.0
    %4180 = vmatmul.mubr.f32.gmra.mrb[0].mxu0 %v4099
    %v4181 = vpop.f32.mrb[0].mxu0
    %v4182 = vadd.f32 0.0, %v4181
    %v4183 = vpop.f32.mrb[0].mxu0
    %4184 = vmatprep.mubr.f32.mxu0 0.0
    %4185 = vmatmul.mubr.f32.gmra.mrb[0].mxu0 %v4102
    %v4186 = vpop.f32.mrb[0].mxu0
    %v4187 = vadd.f32 0.0, %v4186
    %v4188 = vpop.f32.mrb[0].mxu0
    %4189 = vmatprep.mubr.f32.mxu0 0.0
    %4190 = vmatmul.mubr.f32.gmra.mrb[0].mxu0 %v4105
    %v4191 = vpop.f32.mrb[0].mxu0
    %v4192 = vadd.f32 0.0, %v4191
    %v4193 = vpop.f32.mrb[0].mxu0
    %4194 = vmatprep.mubr.f32.mxu0 0.0
    %4195 = vmatmul.mubr.f32.gmra.mrb[0].mxu0 %v4108
    %v4196 = vpop.f32.mrb[0].mxu0
    %v4197 = vadd.f32 0.0, %v4196
    %v4198 = vpop.f32.mrb[0].mxu0
    %4199 = vdwg.mxu0
    %v4200 = vadd.f32 %v3843, %v4177
    %v4201 = vadd.f32 %v3844, %v4182
    %v4202 = vadd.f32 %v3845, %v4187
    %v4203 = vadd.f32 %v3846, %v4192
    %v4204 = vadd.f32 %v3847, %v4197
    %v4205 = vlaneseq
    %v4206 = vshrl.u32 %v4205, 7
    %v4207 = vsub.s32 0, %v4206
    %v4208 = vrot.slane %v2228, %v4207
    %v4209 = vadd.f32 %v4200, %v4208
    %v4210 = vadd.f32 %v4201, %v4208
    %v4211 = vadd.f32 %v4202, %v4208
    %v4212 = vadd.f32 %v4203, %v4208
    %v4213 = vadd.f32 %v4204, %v4208
    %s4214 = scalar_lea.vmem [#allocation6], 16
    %v4215 = vld [vmem:[%s4214] sm:$0x1]
    %v4216 = vld [vmem:[%s4214 + $0x1] sm:$0x1]
    %v4217 = vsel %vm212, %v4209, 0.0
    %4218 = vadd.xlane.f32.xlu0 %v4217
    %v4219 = vpop.xlane.xlu0 %4218
    %v4220 = vsel %vm212, %v4210, 0.0
    %4221 = vadd.xlane.f32.xlu0 %v4220
    %v4222 = vpop.xlane.xlu0 %4221
    %v4223 = vsel %vm212, %v4211, 0.0
    %4224 = vadd.xlane.f32.xlu0 %v4223
    %v4225 = vpop.xlane.xlu0 %4224
    %v4226 = vsel %vm212, %v4212, 0.0
    %4227 = vadd.xlane.f32.xlu0 %v4226
    %v4228 = vpop.xlane.xlu0 %4227
    %v4229 = vsel %vm225, %v4213, 0.0
    %4230 = vadd.xlane.f32.xlu0 %v4229
    %v4231 = vpop.xlane.xlu0 %4230
    %v4232 = vmul.f32 %v4219, %v229
    %v4233 = vmul.f32 %v4222, %v229
    %v4234 = vmul.f32 %v4225, %v229
    %v4235 = vmul.f32 %v4228, %v229
    %v4236 = vmul.f32 %v4231, %v229
    %v4237 = vmul.f32 %v4209, %v4209
    %v4238 = vmul.f32 %v4210, %v4210
    %v4239 = vmul.f32 %v4211, %v4211
    %v4240 = vmul.f32 %v4212, %v4212
    %v4241 = vmul.f32 %v4213, %v4213
    %v4242 = vsel %vm212, %v4237, 0.0
    %4243 = vadd.xlane.f32.xlu0 %v4242
    %v4244 = vpop.xlane.xlu0 %4243
    %v4245 = vsel %vm212, %v4238, 0.0
    %4246 = vadd.xlane.f32.xlu0 %v4245
    %v4247 = vpop.xlane.xlu0 %4246
    %v4248 = vsel %vm212, %v4239, 0.0
    %4249 = vadd.xlane.f32.xlu0 %v4248
    %v4250 = vpop.xlane.xlu0 %4249
    %v4251 = vsel %vm212, %v4240, 0.0
    %4252 = vadd.xlane.f32.xlu0 %v4251
    %v4253 = vpop.xlane.xlu0 %4252
    %v4254 = vsel %vm225, %v4241, 0.0
    %4255 = vadd.xlane.f32.xlu0 %v4254
    %v4256 = vpop.xlane.xlu0 %4255
    %v4257 = vmul.f32 %v4244, %v229
    %v4258 = vmul.f32 %v4247, %v229
    %v4259 = vmul.f32 %v4250, %v229
    %v4260 = vmul.f32 %v4253, %v229
    %v4261 = vmul.f32 %v4256, %v229
    %v4262 = vmul.f32 %v4232, %v4232
    %v4263 = vmul.f32 %v4233, %v4233
    %v4264 = vmul.f32 %v4234, %v4234
    %v4265 = vmul.f32 %v4235, %v4235
    %v4266 = vmul.f32 %v4236, %v4236
    %v4267 = vsub.f32 %v4257, %v4262
    %v4268 = vsub.f32 %v4258, %v4263
    %v4269 = vsub.f32 %v4259, %v4264
    %v4270 = vsub.f32 %v4260, %v4265
    %v4271 = vsub.f32 %v4261, %v4266
    %v4272 = vsub.f32 %v4209, %v4232
    %v4273 = vsub.f32 %v4210, %v4233
    %v4274 = vsub.f32 %v4211, %v4234
    %v4275 = vsub.f32 %v4212, %v4235
    %v4276 = vsub.f32 %v4213, %v4236
    %v4277 = vadd.f32 %v4267, 1e-06
    %v4278 = vadd.f32 %v4268, 1e-06
    %v4279 = vadd.f32 %v4269, 1e-06
    %v4280 = vadd.f32 %v4270, 1e-06
    %v4281 = vadd.f32 %v4271, 1e-06
    %v4282 = vrsqrt.pop %v4277
    %v4283 = vrsqrt.pop %v4278
    %v4284 = vrsqrt.pop %v4279
    %v4285 = vrsqrt.pop %v4280
    %v4286 = vrsqrt.pop %v4281
    %v4287 = vmul.f32 %v4272, %v4282
    %v4288 = vmul.f32 %v4273, %v4283
    %v4289 = vmul.f32 %v4274, %v4284
    %v4290 = vmul.f32 %v4275, %v4285
    %v4291 = vmul.f32 %v4276, %v4286
    %v4292 = vlaneseq
    %v4293 = vshrl.u32 %v4292, 7
    %v4294 = vsub.s32 0, %v4293
    %v4295 = vrot.slane %v4215, %v4294
    %v4296 = vmul.f32 %v4287, %v4295
    %v4297 = vmul.f32 %v4288, %v4295
    %v4298 = vmul.f32 %v4289, %v4295
    %v4299 = vmul.f32 %v4290, %v4295
    %v4300 = vmul.f32 %v4291, %v4295
    %v4301 = vlaneseq
    %v4302 = vshrl.u32 %v4301, 7
    %v4303 = vsub.s32 0, %v4302
    %v4304 = vrot.slane %v4216, %v4303
    %v4305 = vadd.f32 %v4296, %v4304
    %v4306 = vadd.f32 %v4297, %v4304
    %v4307 = vadd.f32 %v4298, %v4304
    %v4308 = vadd.f32 %v4299, %v4304
    %v4309 = vadd.f32 %v4300, %v4304
    %4310 = vst.msk [vmem:[%s3] sm:$0xff] %vm212, %v4305
    %4311 = vst.msk [vmem:[%s3 + $0x8] sm:$0xff] %vm212, %v4306
    %4312 = vst.msk [vmem:[%s3 + $0x10] sm:$0xff] %vm212, %v4307
    %4313 = vst.msk [vmem:[%s3 + $0x18] sm:$0xff] %vm212, %v4308
    %4314 = vst.msk [vmem:[%s3 + $0x20] sm:$0x3] %vm225, %v4309
    // Predicated region
    $region26: #{tpu_custom_call.1} parent=1 // pred_check
      _
    $region27: #{tpu_custom_call.1} parent=1 // pred_check_branch
      %4316 = sbr.rel (0) target = $region29
    $region28: #{tpu_custom_call.1} parent=1 // pred_region
      _
    $region29: #{tpu_custom_call.1} parent=1 // pred_fallthru
      _
    // Predicated region
    $region30: #{tpu_custom_call.1} parent=1 // pred_check
      _
    $region31: #{tpu_custom_call.1} parent=1 // pred_check_branch
      %4318 = sbr.rel (0) target = $region33
    $region32: #{tpu_custom_call.1} parent=1 // pred_region
      _
    $region33: #{tpu_custom_call.1} parent=1 // pred_fallthru
      _
    %4319 = vsyncpa [#allocation3], 1
    %4320 = vsyncpa [#allocation5], 1

</llo_original>
